<compile_context>
chip_gen: v7x
topology: tpu7x:2x2x1
jax: 0.10.0
libtpu: 0.0.40
codegen_flags: <defaults>
</compile_context>

<pallas_src>
import jax
import jax.numpy as jnp
from jax.experimental import pallas as pl
from jax.experimental.pallas import tpu as pltpu


# ----------------------------- Pallas kernel ---------------------------------

def _ffn_kernel(x_ref, w1_ref, b1_ref, w2_ref, b2_ref, o_ref):
    """Fused FFN for one tile of rows.

    x_ref : (TM, C)   w1_ref : (C, H)   b1_ref : (1, H)
    w2_ref: (H, C)    b2_ref : (1, C)   o_ref  : (TM, C)
    """
    x = x_ref[...]

    # Linear1 + bias + ReLU   (MXU matmul, f32 accumulation; bias/ReLU on the VPU)
    h = jnp.dot(x, w1_ref[...], preferred_element_type=jnp.float32) + b1_ref[...]
    h = jnp.maximum(h, 0.0)

    # Linear2 + bias          (cast activations back to weight dtype for the MXU)
    out = jnp.dot(h.astype(w2_ref.dtype), w2_ref[...],
                  preferred_element_type=jnp.float32) + b2_ref[...]

    o_ref[...] = out.astype(o_ref.dtype)


# ------------------------------- wrapper --------------------------------------

def _pick_block_rows(rows):
    """Biggest row tile (multiple of 128) that still gives >= 2 grid steps."""
    for cand in (512, 256, 128):
        if rows >= 2 * cand:
            return cand
    return 128


def feed_forward(x, w1, b1, w2, b2, *, block_rows=None, compute_dtype=jnp.bfloat16):
    """x: (B, T, C); w1: (C, H); b1: (H,); w2: (H, C); b2: (C,)  ->  (B, T, C).

    Weights are in "already transposed" layout (PyTorch Linear.weight.T), so the
    kernel computes x @ w1 + b1 etc., matching nn.Linear.

    compute_dtype: dtype for x / w1 / w2 fed to the MXU (default bf16, f32
    accumulation).  Pass None to keep the original dtype (exact f32 semantics).
    """
    B, T, C = x.shape
    H = w1.shape[1]
    assert w1.shape == (C, H) and w2.shape == (H, C)
    out_dtype = x.dtype

    if compute_dtype is not None:
        x = x.astype(compute_dtype)
        w1 = w1.astype(compute_dtype)
        w2 = w2.astype(compute_dtype)

    # Biases stay f32 and are added to the f32 accumulator.
    b1 = b1.astype(jnp.float32).reshape(1, H)
    b2 = b2.astype(jnp.float32).reshape(1, C)

    rows = B * T
    xf = x.reshape(rows, C)                         # pure reshape, no transpose

    if block_rows is None:
        block_rows = _pick_block_rows(rows)
    grid = (pl.cdiv(rows, block_rows),)             # partial last block handled by Pallas

    in_itemsize = jnp.dtype(xf.dtype).itemsize
    out_itemsize = jnp.dtype(out_dtype).itemsize
    cost = pl.CostEstimate(
        flops=4 * rows * C * H,                     # two (rows,C,H) matmuls
        transcendentals=0,
        bytes_accessed=(rows * C * (in_itemsize + out_itemsize)
                        + 2 * C * H * in_itemsize
                        + (H + C) * 4),
    )

    def _invariant(shape):
        # Grid-invariant operand: single-buffer it (no point double-buffering).
        return pl.BlockSpec(shape, lambda i: (0, 0), pipeline_mode=pl.Buffered(1))

    out = pl.pallas_call(
        _ffn_kernel,
        out_shape=jax.ShapeDtypeStruct((rows, C), out_dtype),
        grid=grid,
        in_specs=[
            pl.BlockSpec((block_rows, C), lambda i: (i, 0)),   # activation row tile
            _invariant((C, H)),                                # W1 (stays in VMEM)
            _invariant((1, H)),                                # b1
            _invariant((H, C)),                                # W2 (stays in VMEM)
            _invariant((1, C)),                                # b2
        ],
        out_specs=pl.BlockSpec((block_rows, C), lambda i: (i, 0)),
        compiler_params=pltpu.CompilerParams(
            dimension_semantics=("parallel",),                 # megacore-shardable
            vmem_limit_bytes=48 * 1024 * 1024,
        ),
        cost_estimate=cost,
    )(xf, w1, b1, w2, b2)

    return out.reshape(B, T, C)


# ------------------------------ reference -------------------------------------

def reference(x, w1, b1, w2, b2):
    h = jnp.maximum(x @ w1 + b1, 0.0)
    return h @ w2 + b2


# --------------------------------- main ----------------------------------------

if __name__ == "__main__":
    # Shapes consistent with the module: n_embd = 384, hidden = 4 * n_embd = 1536.
    n_embd = 384
    hidden = 4 * n_embd

    key = jax.random.PRNGKey(0)
    kx, kw1, kb1, kw2, kb2 = jax.random.split(key, 5)

    # PyTorch nn.Linear-style uniform(-1/sqrt(fan_in), 1/sqrt(fan_in)) init,
    # stored pre-transposed as (in, out).
    s1 = 1.0 / (n_embd ** 0.5)
    s2 = 1.0 / (hidden ** 0.5)
    w1 = jax.random.uniform(kw1, (n_embd, hidden), jnp.float32, -s1, s1)
    b1 = jax.random.uniform(kb1, (hidden,), jnp.float32, -s1, s1)
    w2 = jax.random.uniform(kw2, (hidden, n_embd), jnp.float32, -s2, s2)
    b2 = jax.random.uniform(kb2, (n_embd,), jnp.float32, -s2, s2)

    # --- Case 1: B*T divisible by the row tile -------------------------------
    B, T = 2, 128
    x = jax.random.normal(kx, (B, T, n_embd), dtype=jnp.float32)
    ref = reference(x, w1, b1, w2, b2)

    # f32 path: exact-semantics check.
    out_f32 = feed_forward(x, w1, b1, w2, b2, compute_dtype=None)
    out_f32 = jax.block_until_ready(out_f32)
    assert out_f32.shape == (B, T, n_embd)
    assert jnp.allclose(out_f32, ref, atol=1e-3, rtol=1e-3), "f32 kernel mismatch vs reference"

    # Default (bf16 compute, f32 accumulation): looser tolerance.
    out_bf16 = feed_forward(x, w1, b1, w2, b2)
    out_bf16 = jax.block_until_ready(out_bf16)
    assert jnp.allclose(out_bf16, ref, atol=5e-2, rtol=5e-2), "bf16 kernel mismatch vs reference"

    # --- Case 2: B*T NOT divisible by the row tile (exercises masked partial
    #             last block instead of host-side pad/slice) -------------------
    B2, T2 = 2, 100
    x2 = jax.random.normal(jax.random.PRNGKey(1), (B2, T2, n_embd), dtype=jnp.float32)
    ref2 = reference(x2, w1, b1, w2, b2)
    out2 = feed_forward(x2, w1, b1, w2, b2, compute_dtype=None)
    out2 = jax.block_until_ready(out2)
    assert out2.shape == (B2, T2, n_embd)
    assert jnp.allclose(out2, ref2, atol=1e-3, rtol=1e-3), "ragged-rows kernel mismatch vs reference"

    print("KERNEL_OK")
</pallas_src>

<mosaic_0001>
module attributes {stable_mosaic.version = 11 : i64} {
  func.func @_ffn_kernel(%arg0: i32, %arg1: memref<128x384xf32, #tpu.memory_space<vmem>>, %arg2: memref<384x1536xf32, #tpu.memory_space<vmem>>, %arg3: memref<1x1536xf32, #tpu.memory_space<vmem>>, %arg4: memref<1536x384xf32, #tpu.memory_space<vmem>>, %arg5: memref<1x384xf32, #tpu.memory_space<vmem>>, %arg6: memref<128x384xf32, #tpu.memory_space<vmem>>) attributes {dimension_semantics = [#tpu.dimension_semantics<parallel>], iteration_bounds = array<i64: 2>, scalar_prefetch = 0 : i64, scratch_operands = 0 : i64, tpu.core_type = #tpu.core_type<tc>, window_params = [{transform_indices = @transform_0, window_bounds = array<i64: 128, 384>}, {pipeline_mode = #tpu.pipeline_mode<synchronous>, transform_indices = @transform_1, window_bounds = array<i64: 384, 1536>}, {pipeline_mode = #tpu.pipeline_mode<synchronous>, transform_indices = @transform_2, window_bounds = array<i64: 1, 1536>}, {pipeline_mode = #tpu.pipeline_mode<synchronous>, transform_indices = @transform_3, window_bounds = array<i64: 1536, 384>}, {pipeline_mode = #tpu.pipeline_mode<synchronous>, transform_indices = @transform_4, window_bounds = array<i64: 1, 384>}, {transform_indices = @transform_5, window_bounds = array<i64: 128, 384>}]} {
    %c0 = arith.constant 0 : index
    %c0_0 = arith.constant 0 : index
    %0 = vector.load %arg1[%c0, %c0_0] : memref<128x384xf32, #tpu.memory_space<vmem>>, vector<128x384xf32>
    %c0_1 = arith.constant 0 : index
    %c0_2 = arith.constant 0 : index
    %1 = vector.load %arg2[%c0_1, %c0_2] : memref<384x1536xf32, #tpu.memory_space<vmem>>, vector<384x1536xf32>
    %cst = arith.constant dense<0.000000e+00> : vector<128x1536xf32>
    %2 = tpu.matmul %0, %1, %cst {dimension_numbers = #tpu.dot_dimension_numbers<[1], [0], [0], [1], [0, 0, 1, 1], [], []>} : vector<128x384xf32>, vector<384x1536xf32>, vector<128x1536xf32> -> vector<128x1536xf32>
    %c0_3 = arith.constant 0 : index
    %c0_4 = arith.constant 0 : index
    %3 = vector.load %arg3[%c0_3, %c0_4] : memref<1x1536xf32, #tpu.memory_space<vmem>>, vector<1x1536xf32>
    %4 = vector.broadcast %3 : vector<1x1536xf32> to vector<128x1536xf32>
    %5 = arith.addf %2, %4 : vector<128x1536xf32>
    %cst_5 = arith.constant 0.000000e+00 : f32
    %6 = vector.broadcast %cst_5 : f32 to vector<128x1536xf32>
    %7 = arith.maximumf %5, %6 : vector<128x1536xf32>
    %c0_6 = arith.constant 0 : index
    %c0_7 = arith.constant 0 : index
    %8 = vector.load %arg4[%c0_6, %c0_7] : memref<1536x384xf32, #tpu.memory_space<vmem>>, vector<1536x384xf32>
    %cst_8 = arith.constant dense<0.000000e+00> : vector<128x384xf32>
    %9 = tpu.matmul %7, %8, %cst_8 {dimension_numbers = #tpu.dot_dimension_numbers<[1], [0], [0], [1], [0, 0, 1, 1], [], []>} : vector<128x1536xf32>, vector<1536x384xf32>, vector<128x384xf32> -> vector<128x384xf32>
    %c0_9 = arith.constant 0 : index
    %c0_10 = arith.constant 0 : index
    %10 = vector.load %arg5[%c0_9, %c0_10] : memref<1x384xf32, #tpu.memory_space<vmem>>, vector<1x384xf32>
    %11 = vector.broadcast %10 : vector<1x384xf32> to vector<128x384xf32>
    %12 = arith.addf %9, %11 : vector<128x384xf32>
    %c0_11 = arith.constant 0 : index
    %c0_12 = arith.constant 0 : index
    %13 = vector.load %arg6[%c0_11, %c0_12] : memref<128x384xf32, #tpu.memory_space<vmem>>, vector<128x384xf32>
    tpu.vector_store %arg6[%c0_11, %c0_12], %12 {strides = array<i32>} : memref<128x384xf32, #tpu.memory_space<vmem>>, vector<128x384xf32>,
    return
  }
  func.func @transform_0(%arg0: i32) -> (i32, i32) {
    %c0_i32 = arith.constant 0 : i32
    %c0_i32_0 = arith.constant 0 : i32
    return %arg0, %c0_i32 : i32, i32
  }
  func.func @transform_1(%arg0: i32) -> (i32, i32) {
    %c0_i32 = arith.constant 0 : i32
    %c0_i32_0 = arith.constant 0 : i32
    %c0_i32_1 = arith.constant 0 : i32
    return %c0_i32, %c0_i32_0 : i32, i32
  }
  func.func @transform_2(%arg0: i32) -> (i32, i32) {
    %c0_i32 = arith.constant 0 : i32
    %c0_i32_0 = arith.constant 0 : i32
    %c0_i32_1 = arith.constant 0 : i32
    return %c0_i32, %c0_i32_0 : i32, i32
  }
  func.func @transform_3(%arg0: i32) -> (i32, i32) {
    %c0_i32 = arith.constant 0 : i32
    %c0_i32_0 = arith.constant 0 : i32
    %c0_i32_1 = arith.constant 0 : i32
    return %c0_i32, %c0_i32_0 : i32, i32
  }
  func.func @transform_4(%arg0: i32) -> (i32, i32) {
    %c0_i32 = arith.constant 0 : i32
    %c0_i32_0 = arith.constant 0 : i32
    %c0_i32_1 = arith.constant 0 : i32
    return %c0_i32, %c0_i32_0 : i32, i32
  }
  func.func @transform_5(%arg0: i32) -> (i32, i32) {
    %c0_i32 = arith.constant 0 : i32
    %c0_i32_0 = arith.constant 0 : i32
    return %arg0, %c0_i32 : i32, i32
  }
}

</mosaic_0001>

<llo_original>
// kernel: tpu_custom_call.1
$region0: #{tpu_custom_call.1}
  #allocation0 [shape = 'u32[]', space=smem, size = 0x4, offset = 0x4, fixed_abs, tag = 'smem constant byte address 0x4 - core index']
  #allocation1 [shape = 'u32[144,128]{1,0:T(1,128)}', space=vmem, size = 0x12000, scoped, tag = 'internal scratch']
  %s0 = inlined_call_operand.hbm [shape: f32[256,384], index: 0, kind: input, shape index: {}]
  %s1 = inlined_call_operand.hbm [shape: f32[384,1536], index: 1, kind: input, shape index: {}]
  %s2 = inlined_call_operand.hbm [shape: f32[1,1536], index: 2, kind: input, shape index: {}]
  %s3 = inlined_call_operand.hbm [shape: f32[1536,384], index: 3, kind: input, shape index: {}]
  %s4 = inlined_call_operand.hbm [shape: f32[1,384], index: 4, kind: input, shape index: {}]
  %s5 = inlined_call_operand.hbm [shape: f32[256,384], index: 5, kind: output, shape index: {}]
  %s6 = sld [smem:[#allocation0]]
  $region73: #{tpu_custom_call.1} parent=0
    _
  %s8 = ssub.s32 1, %s6
  %s9 = scalar_select 0, %s8, %s6
  $region1: #{tpu_custom_call.1} parent=0
    #allocation2 [shape = 'u8[393216]{0}', space=vmem, size = 0x60000, scoped, tag = 'input window, operand 0']
    #allocation3 [shape = 's32[2]{0}', space=sflag, size = 0x8, scoped, tag = 'scoped memory for tpu_custom_call.1']
    #allocation4 [shape = 's32[2]{0}', space=sflag, size = 0x8, scoped, tag = 'scoped memory for tpu_custom_call.1']
    #allocation5 [shape = 'u8[2359296]{0}', space=vmem, size = 0x240000, scoped, tag = 'input window, operand 1, single buffered']
    #allocation6 [shape = 's32[1]{0}', space=sflag, size = 0x4, scoped, tag = 'scoped memory for tpu_custom_call.1']
    #allocation7 [shape = 'u8[6144]{0}', space=vmem, size = 0x1800, scoped, tag = 'input window, operand 2, single buffered']
    #allocation8 [shape = 'u8[2359296]{0}', space=vmem, size = 0x240000, scoped, tag = 'input window, operand 3, single buffered']
    #allocation9 [shape = 's32[1]{0}', space=sflag, size = 0x4, scoped, tag = 'scoped memory for tpu_custom_call.1']
    #allocation10 [shape = 'u8[1536]{0}', space=vmem, size = 0x800, scoped, tag = 'input window, operand 4, single buffered']
    #allocation11 [shape = 'u8[393216]{0}', space=vmem, size = 0x60000, scoped, tag = 'output window, operand 0']
    %10 = vsyncpa [#allocation3], 0
    %s11 = scalar_lea.sflag [#allocation3], 1
    %12 = vsyncpa %s11, 0
    %13 = vsyncpa [#allocation6], 0
    %14 = vsyncpa [#allocation9], 0
    %15 = vsyncpa [#allocation4], 0
    %s16 = scalar_lea.sflag [#allocation4], 1
    %17 = vsyncpa %s16, 0
    loop: start=0, step=1, limit=4
    $region2: #{tpu_custom_call.1} parent=1 // loop_pre_header
      _
    $region3: #{tpu_custom_call.1} parent=1 // loop_header
      %s19 = sphi 0, %s23
      %p20 = scmp.ge.s32.totalorder %s19, 4
      %s29 = sphi 0, %s31
      %s32 = sphi 0, %s29
      %s33 = sphi 0, %s32
      %s49 = sphi 0, %s33
      %s53 = sphi 0, %s53
      %s55 = sphi 0, %s53
      %s56 = sphi 0, %s55
      %s70 = sphi 0, %s56
      %s74 = sphi 0, %s74
      %s76 = sphi 0, %s74
      %s77 = sphi 0, %s76
      %s91 = sphi 0, %s77
      %s95 = sphi 0, %s95
      %s97 = sphi 0, %s95
      %s98 = sphi 0, %s97
      %s112 = sphi 0, %s98
      %s116 = sphi 0, %s116
      %s118 = sphi 0, %s116
      %s119 = sphi 0, %s118
      %s133 = sphi 0, %s119
      %s139 = sphi 0, %s141
      %s142 = sphi 0, %s139
      %s143 = sphi 0, %s142
      %s159 = sphi 0, %s143
    $region4: #{tpu_custom_call.1} parent=1 // loop_header_branch
      %22 = sbr.rel (%p20) target = $region8
    $region5: #{tpu_custom_call.1} parent=1 // loop_body
      %s24 = ssub.s32 %s19, 1
      %s25 = ssub.s32 %s19, 2
      %s26 = sadd.s32 %s19, 1
      %s27 = ssub.s32 %s19, %s26
      %p28 = scmp.eq.s32.totalorder %s27, 0
      %s30 = sadd.s32 %s29, 1
      %s31 = scalar_select %p28, %s29, %s30
      %p34 = pneg %p28
      %p35 = scmp.eq.s32.totalorder %s19, 1
      %p36 = por %p34, %p35
      %p37 = scmp.ne.s32.totalorder %s29, %s32
      %p38 = scmp.eq.s32.totalorder %s19, 0
      %p39 = por %p37, %p38
      %p40 = scmp.ne.s32.totalorder %s29, %s32
      %p41 = scmp.eq.s32.totalorder %s24, 1
      %p42 = por %p40, %p41
      %p43 = scmp.ne.s32.totalorder %s32, %s33
      %p44 = scmp.eq.s32.totalorder %s24, 0
      %p45 = por %p43, %p44
      %p46 = scmp.ne.s32.totalorder %s32, %s33
      %p47 = scmp.eq.s32.totalorder %s25, 1
      %p48 = por %p46, %p47
      %p50 = scmp.ne.s32.totalorder %s33, %s49
      %p51 = scmp.eq.s32.totalorder %s25, 0
      %p52 = por %p50, %p51
      %s54 = sadd.s32 %s53, 1
      %p57 = scmp.eq.s32.totalorder %s19, 1
      %p58 = scmp.ne.s32.totalorder %s53, %s55
      %p59 = scmp.eq.s32.totalorder %s19, 0
      %p60 = por %p58, %p59
      %p61 = scmp.ne.s32.totalorder %s53, %s55
      %p62 = scmp.eq.s32.totalorder %s24, 1
      %p63 = por %p61, %p62
      %p64 = scmp.ne.s32.totalorder %s55, %s56
      %p65 = scmp.eq.s32.totalorder %s24, 0
      %p66 = por %p64, %p65
      %p67 = scmp.ne.s32.totalorder %s55, %s56
      %p68 = scmp.eq.s32.totalorder %s25, 1
      %p69 = por %p67, %p68
      %p71 = scmp.ne.s32.totalorder %s56, %s70
      %p72 = scmp.eq.s32.totalorder %s25, 0
      %p73 = por %p71, %p72
      %s75 = sadd.s32 %s74, 1
      %p78 = scmp.eq.s32.totalorder %s19, 1
      %p79 = scmp.ne.s32.totalorder %s74, %s76
      %p80 = scmp.eq.s32.totalorder %s19, 0
      %p81 = por %p79, %p80
      %p82 = scmp.ne.s32.totalorder %s74, %s76
      %p83 = scmp.eq.s32.totalorder %s24, 1
      %p84 = por %p82, %p83
      %p85 = scmp.ne.s32.totalorder %s76, %s77
      %p86 = scmp.eq.s32.totalorder %s24, 0
      %p87 = por %p85, %p86
      %p88 = scmp.ne.s32.totalorder %s76, %s77
      %p89 = scmp.eq.s32.totalorder %s25, 1
      %p90 = por %p88, %p89
      %p92 = scmp.ne.s32.totalorder %s77, %s91
      %p93 = scmp.eq.s32.totalorder %s25, 0
      %p94 = por %p92, %p93
      %s96 = sadd.s32 %s95, 1
      %p99 = scmp.eq.s32.totalorder %s19, 1
      %p100 = scmp.ne.s32.totalorder %s95, %s97
      %p101 = scmp.eq.s32.totalorder %s19, 0
      %p102 = por %p100, %p101
      %p103 = scmp.ne.s32.totalorder %s95, %s97
      %p104 = scmp.eq.s32.totalorder %s24, 1
      %p105 = por %p103, %p104
      %p106 = scmp.ne.s32.totalorder %s97, %s98
      %p107 = scmp.eq.s32.totalorder %s24, 0
      %p108 = por %p106, %p107
      %p109 = scmp.ne.s32.totalorder %s97, %s98
      %p110 = scmp.eq.s32.totalorder %s25, 1
      %p111 = por %p109, %p110
      %p113 = scmp.ne.s32.totalorder %s98, %s112
      %p114 = scmp.eq.s32.totalorder %s25, 0
      %p115 = por %p113, %p114
      %s117 = sadd.s32 %s116, 1
      %p120 = scmp.eq.s32.totalorder %s19, 1
      %p121 = scmp.ne.s32.totalorder %s116, %s118
      %p122 = scmp.eq.s32.totalorder %s19, 0
      %p123 = por %p121, %p122
      %p124 = scmp.ne.s32.totalorder %s116, %s118
      %p125 = scmp.eq.s32.totalorder %s24, 1
      %p126 = por %p124, %p125
      %p127 = scmp.ne.s32.totalorder %s118, %s119
      %p128 = scmp.eq.s32.totalorder %s24, 0
      %p129 = por %p127, %p128
      %p130 = scmp.ne.s32.totalorder %s118, %s119
      %p131 = scmp.eq.s32.totalorder %s25, 1
      %p132 = por %p130, %p131
      %p134 = scmp.ne.s32.totalorder %s119, %s133
      %p135 = scmp.eq.s32.totalorder %s25, 0
      %p136 = por %p134, %p135
      %s137 = ssub.s32 %s19, %s26
      %p138 = scmp.eq.s32.totalorder %s137, 0
      %s140 = sadd.s32 %s139, 1
      %s141 = scalar_select %p138, %s139, %s140
      %p144 = pneg %p138
      %p145 = scmp.eq.s32.totalorder %s19, 1
      %p146 = por %p144, %p145
      %p147 = scmp.ne.s32.totalorder %s139, %s142
      %p148 = scmp.eq.s32.totalorder %s19, 0
      %p149 = por %p147, %p148
      %p150 = scmp.ne.s32.totalorder %s139, %s142
      %p151 = scmp.eq.s32.totalorder %s24, 1
      %p152 = por %p150, %p151
      %p153 = scmp.ne.s32.totalorder %s142, %s143
      %p154 = scmp.eq.s32.totalorder %s24, 0
      %p155 = por %p153, %p154
      %p156 = scmp.ne.s32.totalorder %s142, %s143
      %p157 = scmp.eq.s32.totalorder %s25, 1
      %p158 = por %p156, %p157
      %p160 = scmp.ne.s32.totalorder %s143, %s159
      %p161 = scmp.eq.s32.totalorder %s25, 0
      %p162 = por %p160, %p161
      %p163 = scmp.le.s32.totalorder 1, %s19
      %p164 = scmp.lt.s32.totalorder %s19, 3
      %p165 = pnand %p163, %p164
      %p166 = pneg %p165
      // Predicated region
      $region9: #{tpu_custom_call.1} parent=5 // pred_check
        _
      $region10: #{tpu_custom_call.1} parent=5 // pred_check_branch
        %168 = sbr.rel (%p165) target = $region12
      $region11: #{tpu_custom_call.1} parent=5 // pred_region
        %s169 = ssub.s32 %s19, 1
        // Predicated region
        $region13: #{tpu_custom_call.1} parent=11 // pred_check
          %p170 = pneg %p66
        $region14: #{tpu_custom_call.1} parent=11 // pred_check_branch
          %172 = sbr.rel (%p170) target = $region16
        $region15: #{tpu_custom_call.1} parent=11 // pred_region
          %s174 = ssub.s32 73728, 73728
          %175 = vsyncadd [#allocation6], %s174
          %s176 = sshll.u32 [#allocation5], 4
          %s177 = int_to_ptr.vmem [resolvable:$true] %s176
          %182 = dma.hbm_to_vmem [thread:$0]  %s1, 73728, %s177, [#allocation6], 1536, 1536, 96
        $region16: #{tpu_custom_call.1} parent=11 // pred_fallthru
          _
        // Predicated region
        $region17: #{tpu_custom_call.1} parent=11 // pred_check
          %p183 = pneg %p87
        $region18: #{tpu_custom_call.1} parent=11 // pred_check_branch
          %185 = sbr.rel (%p183) target = $region20
        $region19: #{tpu_custom_call.1} parent=11 // pred_region
          %s187 = ssub.s32 192, 192
          %188 = vsyncadd [#allocation6], %s187
          %s190 = sshll.u32 [#allocation7], 4
          %s191 = int_to_ptr.vmem [resolvable:$true] %s190
          %193 = dma.hbm_to_vmem [thread:$0]  %s2, 192, %s191, [#allocation6]
        $region20: #{tpu_custom_call.1} parent=11 // pred_fallthru
          _
        // Predicated region
        $region21: #{tpu_custom_call.1} parent=11 // pred_check
          %p194 = pneg %p108
        $region22: #{tpu_custom_call.1} parent=11 // pred_check_branch
          %196 = sbr.rel (%p194) target = $region24
        $region23: #{tpu_custom_call.1} parent=11 // pred_region
          %s198 = ssub.s32 73728, 73728
          %199 = vsyncadd [#allocation9], %s198
          %s200 = sshll.u32 [#allocation8], 4
          %s201 = int_to_ptr.vmem [resolvable:$true] %s200
          %206 = dma.hbm_to_vmem [thread:$0]  %s3, 73728, %s201, [#allocation9], 384, 384, 24
        $region24: #{tpu_custom_call.1} parent=11 // pred_fallthru
          _
        // Predicated region
        $region25: #{tpu_custom_call.1} parent=11 // pred_check
          %p207 = pneg %p129
        $region26: #{tpu_custom_call.1} parent=11 // pred_check_branch
          %209 = sbr.rel (%p207) target = $region28
        $region27: #{tpu_custom_call.1} parent=11 // pred_region
          %s211 = ssub.s32 48, 48
          %212 = vsyncadd [#allocation9], %s211
          %s214 = sshll.u32 [#allocation10], 4
          %s215 = int_to_ptr.vmem [resolvable:$true] %s214
          %217 = dma.hbm_to_vmem [thread:$0]  %s4, 48, %s215, [#allocation9]
        $region28: #{tpu_custom_call.1} parent=11 // pred_fallthru
          _
      $region12: #{tpu_custom_call.1} parent=5 // pred_fallthru
        _
      %p218 = scmp.lt.s32.totalorder %s19, 2
      // Predicated region
      $region29: #{tpu_custom_call.1} parent=5 // pred_check
        %p219 = pneg %p218
      $region30: #{tpu_custom_call.1} parent=5 // pred_check_branch
        %221 = sbr.rel (%p219) target = $region32
      $region31: #{tpu_custom_call.1} parent=5 // pred_region
        // Predicated region
        $region33: #{tpu_custom_call.1} parent=31 // pred_check
          %p222 = pneg %p39
        $region34: #{tpu_custom_call.1} parent=31 // pred_check_branch
          %224 = sbr.rel (%p222) target = $region36
        $region35: #{tpu_custom_call.1} parent=31 // pred_region
          %s225 = sand.u32 %s29, 1
          %s226 = scalar_lea.sflag [#allocation3], %s225
          %s227 = sand.u32 %s29, 1
          %s228 = smul.addr %s227, 384
          %s229 = scalar_lea.vmem [#allocation2], %s228
          %s230 = smul.u32 16, %s19
          %s232 = ssub.s32 6144, 6144
          %233 = vsyncadd %s226, %s232
          %s234 = smul.addr %s230, 3
          %s235 = smul.addr %s234, 128
          %s236 = scalar_lea.hbm %s0, %s235
          %s237 = sshll.u32 %s229, 4
          %s238 = int_to_ptr.vmem [resolvable:$true] %s237
          %243 = dma.hbm_to_vmem [thread:$0]  %s236, 6144, %s238, %s226, 384, 384, 24
        $region36: #{tpu_custom_call.1} parent=31 // pred_fallthru
          _
      $region32: #{tpu_custom_call.1} parent=5 // pred_fallthru
        _
      %p244 = scmp.le.s32.totalorder 1, %s19
      %p245 = scmp.lt.s32.totalorder %s19, 3
      %p246 = pnand %p244, %p245
      %p247 = pneg %p246
      // Predicated region
      $region37: #{tpu_custom_call.1} parent=5 // pred_check
        _
      $region38: #{tpu_custom_call.1} parent=5 // pred_check_branch
        %249 = sbr.rel (%p246) target = $region40
      $region39: #{tpu_custom_call.1} parent=5 // pred_region
        %s250 = ssub.s32 %s19, 1
        %s251 = sand.u32 %s32, 1
        %s252 = scalar_lea.sflag [#allocation3], %s251
        %s253 = sand.u32 %s32, 1
        %s254 = smul.addr %s253, 384
        %s255 = scalar_lea.vmem [#allocation2], %s254
        // Predicated region
        $region41: #{tpu_custom_call.1} parent=39 // pred_check
          %p256 = pneg %p45
        $region42: #{tpu_custom_call.1} parent=39 // pred_check_branch
          %258 = sbr.rel (%p256) target = $region44
        $region43: #{tpu_custom_call.1} parent=39 // pred_region
          %259 = dma.done %s252, 6144
        $region44: #{tpu_custom_call.1} parent=39 // pred_fallthru
          _
        // Predicated region
        $region45: #{tpu_custom_call.1} parent=39 // pred_check
          %p260 = pneg %p66
        $region46: #{tpu_custom_call.1} parent=39 // pred_check_branch
          %262 = sbr.rel (%p260) target = $region48
        $region47: #{tpu_custom_call.1} parent=39 // pred_region
          %263 = dma.done [#allocation6], 73728
        $region48: #{tpu_custom_call.1} parent=39 // pred_fallthru
          _
        // Predicated region
        $region49: #{tpu_custom_call.1} parent=39 // pred_check
          %p264 = pneg %p87
        $region50: #{tpu_custom_call.1} parent=39 // pred_check_branch
          %266 = sbr.rel (%p264) target = $region52
        $region51: #{tpu_custom_call.1} parent=39 // pred_region
          %267 = dma.done [#allocation6], 192
        $region52: #{tpu_custom_call.1} parent=39 // pred_fallthru
          _
        // Predicated region
        $region53: #{tpu_custom_call.1} parent=39 // pred_check
          %p268 = pneg %p108
        $region54: #{tpu_custom_call.1} parent=39 // pred_check_branch
          %270 = sbr.rel (%p268) target = $region56
        $region55: #{tpu_custom_call.1} parent=39 // pred_region
          %271 = dma.done [#allocation9], 73728
        $region56: #{tpu_custom_call.1} parent=39 // pred_fallthru
          _
        // Predicated region
        $region57: #{tpu_custom_call.1} parent=39 // pred_check
          %p272 = pneg %p129
        $region58: #{tpu_custom_call.1} parent=39 // pred_check_branch
          %274 = sbr.rel (%p272) target = $region60
        $region59: #{tpu_custom_call.1} parent=39 // pred_region
          %275 = dma.done [#allocation9], 48
        $region60: #{tpu_custom_call.1} parent=39 // pred_fallthru
          _
        %s276 = sand.u32 %s32, 1
        %s277 = scalar_lea.sflag [#allocation3], %s276
        %s278 = sand.u32 %s32, 1
        %s279 = smul.addr %s278, 384
        %s280 = scalar_lea.vmem [#allocation2], %s279
        %p281 = pneg %p45
        %p282 = pneg %p42
        %p283 = pneg %p66
        %p284 = pneg %p63
        %p285 = pneg %p87
        %p286 = pneg %p84
        %p287 = pneg %p108
        %p288 = pneg %p105
        %p289 = pneg %p129
        %p290 = pneg %p126
        %p291 = pneg %p155
        %p292 = pneg %p152
        %s293 = sand.u32 %s142, 1
        %s294 = scalar_lea.sflag [#allocation4], %s293
        %s295 = sand.u32 %s142, 1
        %s296 = smul.addr %s295, 384
        %s297 = scalar_lea.vmem [#allocation11], %s296
        %s298 = smul.u32 16, %s24
        %s299 = smul.u32 16, %s24
        %v300 = vld [vmem:[%s255] sm:$0xff]
        %v301 = vld [vmem:[%s255 + $0x8] sm:$0xff]
        %v302 = vld [vmem:[%s255 + $0x10] sm:$0xff]
        %v303 = vld [vmem:[%s255 + $0x18] sm:$0xff]
        %v304 = vld [vmem:[%s255 + $0x20] sm:$0xff]
        %v305 = vld [vmem:[%s255 + $0x28] sm:$0xff]
        %v306 = vld [vmem:[%s255 + $0x30] sm:$0xff]
        %v307 = vld [vmem:[%s255 + $0x38] sm:$0xff]
        %v308 = vld [vmem:[%s255 + $0x40] sm:$0xff]
        %v309 = vld [vmem:[%s255 + $0x48] sm:$0xff]
        %v310 = vld [vmem:[%s255 + $0x50] sm:$0xff]
        %v311 = vld [vmem:[%s255 + $0x58] sm:$0xff]
        %v312 = vld [vmem:[%s255 + $0x60] sm:$0xff]
        %v313 = vld [vmem:[%s255 + $0x68] sm:$0xff]
        %v314 = vld [vmem:[%s255 + $0x70] sm:$0xff]
        %v315 = vld [vmem:[%s255 + $0x78] sm:$0xff]
        %v316 = vld [vmem:[%s255 + $0x80] sm:$0xff]
        %v317 = vld [vmem:[%s255 + $0x88] sm:$0xff]
        %v318 = vld [vmem:[%s255 + $0x90] sm:$0xff]
        %v319 = vld [vmem:[%s255 + $0x98] sm:$0xff]
        %v320 = vld [vmem:[%s255 + $0xa0] sm:$0xff]
        %v321 = vld [vmem:[%s255 + $0xa8] sm:$0xff]
        %v322 = vld [vmem:[%s255 + $0xb0] sm:$0xff]
        %v323 = vld [vmem:[%s255 + $0xb8] sm:$0xff]
        %v324 = vld [vmem:[%s255 + $0xc0] sm:$0xff]
        %v325 = vld [vmem:[%s255 + $0xc8] sm:$0xff]
        %v326 = vld [vmem:[%s255 + $0xd0] sm:$0xff]
        %v327 = vld [vmem:[%s255 + $0xd8] sm:$0xff]
        %v328 = vld [vmem:[%s255 + $0xe0] sm:$0xff]
        %v329 = vld [vmem:[%s255 + $0xe8] sm:$0xff]
        %v330 = vld [vmem:[%s255 + $0xf0] sm:$0xff]
        %v331 = vld [vmem:[%s255 + $0xf8] sm:$0xff]
        %v332 = vld [vmem:[%s255 + $0x100] sm:$0xff]
        %v333 = vld [vmem:[%s255 + $0x108] sm:$0xff]
        %v334 = vld [vmem:[%s255 + $0x110] sm:$0xff]
        %v335 = vld [vmem:[%s255 + $0x118] sm:$0xff]
        %v336 = vld [vmem:[%s255 + $0x120] sm:$0xff]
        %v337 = vld [vmem:[%s255 + $0x128] sm:$0xff]
        %v338 = vld [vmem:[%s255 + $0x130] sm:$0xff]
        %v339 = vld [vmem:[%s255 + $0x138] sm:$0xff]
        %v340 = vld [vmem:[%s255 + $0x140] sm:$0xff]
        %v341 = vld [vmem:[%s255 + $0x148] sm:$0xff]
        %v342 = vld [vmem:[%s255 + $0x150] sm:$0xff]
        %v343 = vld [vmem:[%s255 + $0x158] sm:$0xff]
        %v344 = vld [vmem:[%s255 + $0x160] sm:$0xff]
        %v345 = vld [vmem:[%s255 + $0x168] sm:$0xff]
        %v346 = vld [vmem:[%s255 + $0x170] sm:$0xff]
        %v347 = vld [vmem:[%s255 + $0x178] sm:$0xff]
        %v348 = vld [vmem:[#allocation5] sm:$0xff]
        %v349 = vld [vmem:[#allocation5 + $0x8] sm:$0xff]
        %v350 = vld [vmem:[#allocation5 + $0x10] sm:$0xff]
        %v351 = vld [vmem:[#allocation5 + $0x18] sm:$0xff]
        %v352 = vld [vmem:[#allocation5 + $0x20] sm:$0xff]
        %v353 = vld [vmem:[#allocation5 + $0x28] sm:$0xff]
        %v354 = vld [vmem:[#allocation5 + $0x30] sm:$0xff]
        %v355 = vld [vmem:[#allocation5 + $0x38] sm:$0xff]
        %v356 = vld [vmem:[#allocation5 + $0x40] sm:$0xff]
        %v357 = vld [vmem:[#allocation5 + $0x48] sm:$0xff]
        %v358 = vld [vmem:[#allocation5 + $0x50] sm:$0xff]
        %v359 = vld [vmem:[#allocation5 + $0x58] sm:$0xff]
        %v360 = vld [vmem:[#allocation5 + $0x60] sm:$0xff]
        %v361 = vld [vmem:[#allocation5 + $0x68] sm:$0xff]
        %v362 = vld [vmem:[#allocation5 + $0x70] sm:$0xff]
        %v363 = vld [vmem:[#allocation5 + $0x78] sm:$0xff]
        %v364 = vld [vmem:[#allocation5 + $0x80] sm:$0xff]
        %v365 = vld [vmem:[#allocation5 + $0x88] sm:$0xff]
        %v366 = vld [vmem:[#allocation5 + $0x90] sm:$0xff]
        %v367 = vld [vmem:[#allocation5 + $0x98] sm:$0xff]
        %v368 = vld [vmem:[#allocation5 + $0xa0] sm:$0xff]
        %v369 = vld [vmem:[#allocation5 + $0xa8] sm:$0xff]
        %v370 = vld [vmem:[#allocation5 + $0xb0] sm:$0xff]
        %v371 = vld [vmem:[#allocation5 + $0xb8] sm:$0xff]
        %v372 = vld [vmem:[#allocation5 + $0xc0] sm:$0xff]
        %v373 = vld [vmem:[#allocation5 + $0xc8] sm:$0xff]
        %v374 = vld [vmem:[#allocation5 + $0xd0] sm:$0xff]
        %v375 = vld [vmem:[#allocation5 + $0xd8] sm:$0xff]
        %v376 = vld [vmem:[#allocation5 + $0xe0] sm:$0xff]
        %v377 = vld [vmem:[#allocation5 + $0xe8] sm:$0xff]
        %v378 = vld [vmem:[#allocation5 + $0xf0] sm:$0xff]
        %v379 = vld [vmem:[#allocation5 + $0xf8] sm:$0xff]
        %v380 = vld [vmem:[#allocation5 + $0x100] sm:$0xff]
        %v381 = vld [vmem:[#allocation5 + $0x108] sm:$0xff]
        %v382 = vld [vmem:[#allocation5 + $0x110] sm:$0xff]
        %v383 = vld [vmem:[#allocation5 + $0x118] sm:$0xff]
        %v384 = vld [vmem:[#allocation5 + $0x120] sm:$0xff]
        %v385 = vld [vmem:[#allocation5 + $0x128] sm:$0xff]
        %v386 = vld [vmem:[#allocation5 + $0x130] sm:$0xff]
        %v387 = vld [vmem:[#allocation5 + $0x138] sm:$0xff]
        %v388 = vld [vmem:[#allocation5 + $0x140] sm:$0xff]
        %v389 = vld [vmem:[#allocation5 + $0x148] sm:$0xff]
        %v390 = vld [vmem:[#allocation5 + $0x150] sm:$0xff]
        %v391 = vld [vmem:[#allocation5 + $0x158] sm:$0xff]
        %v392 = vld [vmem:[#allocation5 + $0x160] sm:$0xff]
        %v393 = vld [vmem:[#allocation5 + $0x168] sm:$0xff]
        %v394 = vld [vmem:[#allocation5 + $0x170] sm:$0xff]
        %v395 = vld [vmem:[#allocation5 + $0x178] sm:$0xff]
        %v396 = vld [vmem:[#allocation5 + $0x180] sm:$0xff]
        %v397 = vld [vmem:[#allocation5 + $0x188] sm:$0xff]
        %v398 = vld [vmem:[#allocation5 + $0x190] sm:$0xff]
        %v399 = vld [vmem:[#allocation5 + $0x198] sm:$0xff]
        %v400 = vld [vmem:[#allocation5 + $0x1a0] sm:$0xff]
        %v401 = vld [vmem:[#allocation5 + $0x1a8] sm:$0xff]
        %v402 = vld [vmem:[#allocation5 + $0x1b0] sm:$0xff]
        %v403 = vld [vmem:[#allocation5 + $0x1b8] sm:$0xff]
        %v404 = vld [vmem:[#allocation5 + $0x1c0] sm:$0xff]
        %v405 = vld [vmem:[#allocation5 + $0x1c8] sm:$0xff]
        %v406 = vld [vmem:[#allocation5 + $0x1d0] sm:$0xff]
        %v407 = vld [vmem:[#allocation5 + $0x1d8] sm:$0xff]
        %v408 = vld [vmem:[#allocation5 + $0x1e0] sm:$0xff]
        %v409 = vld [vmem:[#allocation5 + $0x1e8] sm:$0xff]
        %v410 = vld [vmem:[#allocation5 + $0x1f0] sm:$0xff]
        %v411 = vld [vmem:[#allocation5 + $0x1f8] sm:$0xff]
        %v412 = vld [vmem:[#allocation5 + $0x200] sm:$0xff]
        %v413 = vld [vmem:[#allocation5 + $0x208] sm:$0xff]
        %v414 = vld [vmem:[#allocation5 + $0x210] sm:$0xff]
        %v415 = vld [vmem:[#allocation5 + $0x218] sm:$0xff]
        %v416 = vld [vmem:[#allocation5 + $0x220] sm:$0xff]
        %v417 = vld [vmem:[#allocation5 + $0x228] sm:$0xff]
        %v418 = vld [vmem:[#allocation5 + $0x230] sm:$0xff]
        %v419 = vld [vmem:[#allocation5 + $0x238] sm:$0xff]
        %v420 = vld [vmem:[#allocation5 + $0x240] sm:$0xff]
        %v421 = vld [vmem:[#allocation5 + $0x248] sm:$0xff]
        %v422 = vld [vmem:[#allocation5 + $0x250] sm:$0xff]
        %v423 = vld [vmem:[#allocation5 + $0x258] sm:$0xff]
        %v424 = vld [vmem:[#allocation5 + $0x260] sm:$0xff]
        %v425 = vld [vmem:[#allocation5 + $0x268] sm:$0xff]
        %v426 = vld [vmem:[#allocation5 + $0x270] sm:$0xff]
        %v427 = vld [vmem:[#allocation5 + $0x278] sm:$0xff]
        %v428 = vld [vmem:[#allocation5 + $0x280] sm:$0xff]
        %v429 = vld [vmem:[#allocation5 + $0x288] sm:$0xff]
        %v430 = vld [vmem:[#allocation5 + $0x290] sm:$0xff]
        %v431 = vld [vmem:[#allocation5 + $0x298] sm:$0xff]
        %v432 = vld [vmem:[#allocation5 + $0x2a0] sm:$0xff]
        %v433 = vld [vmem:[#allocation5 + $0x2a8] sm:$0xff]
        %v434 = vld [vmem:[#allocation5 + $0x2b0] sm:$0xff]
        %v435 = vld [vmem:[#allocation5 + $0x2b8] sm:$0xff]
        %v436 = vld [vmem:[#allocation5 + $0x2c0] sm:$0xff]
        %v437 = vld [vmem:[#allocation5 + $0x2c8] sm:$0xff]
        %v438 = vld [vmem:[#allocation5 + $0x2d0] sm:$0xff]
        %v439 = vld [vmem:[#allocation5 + $0x2d8] sm:$0xff]
        %v440 = vld [vmem:[#allocation5 + $0x2e0] sm:$0xff]
        %v441 = vld [vmem:[#allocation5 + $0x2e8] sm:$0xff]
        %v442 = vld [vmem:[#allocation5 + $0x2f0] sm:$0xff]
        %v443 = vld [vmem:[#allocation5 + $0x2f8] sm:$0xff]
        %v444 = vld [vmem:[#allocation5 + $0x300] sm:$0xff]
        %v445 = vld [vmem:[#allocation5 + $0x308] sm:$0xff]
        %v446 = vld [vmem:[#allocation5 + $0x310] sm:$0xff]
        %v447 = vld [vmem:[#allocation5 + $0x318] sm:$0xff]
        %v448 = vld [vmem:[#allocation5 + $0x320] sm:$0xff]
        %v449 = vld [vmem:[#allocation5 + $0x328] sm:$0xff]
        %v450 = vld [vmem:[#allocation5 + $0x330] sm:$0xff]
        %v451 = vld [vmem:[#allocation5 + $0x338] sm:$0xff]
        %v452 = vld [vmem:[#allocation5 + $0x340] sm:$0xff]
        %v453 = vld [vmem:[#allocation5 + $0x348] sm:$0xff]
        %v454 = vld [vmem:[#allocation5 + $0x350] sm:$0xff]
        %v455 = vld [vmem:[#allocation5 + $0x358] sm:$0xff]
        %v456 = vld [vmem:[#allocation5 + $0x360] sm:$0xff]
        %v457 = vld [vmem:[#allocation5 + $0x368] sm:$0xff]
        %v458 = vld [vmem:[#allocation5 + $0x370] sm:$0xff]
        %v459 = vld [vmem:[#allocation5 + $0x378] sm:$0xff]
        %v460 = vld [vmem:[#allocation5 + $0x380] sm:$0xff]
        %v461 = vld [vmem:[#allocation5 + $0x388] sm:$0xff]
        %v462 = vld [vmem:[#allocation5 + $0x390] sm:$0xff]
        %v463 = vld [vmem:[#allocation5 + $0x398] sm:$0xff]
        %v464 = vld [vmem:[#allocation5 + $0x3a0] sm:$0xff]
        %v465 = vld [vmem:[#allocation5 + $0x3a8] sm:$0xff]
        %v466 = vld [vmem:[#allocation5 + $0x3b0] sm:$0xff]
        %v467 = vld [vmem:[#allocation5 + $0x3b8] sm:$0xff]
        %v468 = vld [vmem:[#allocation5 + $0x3c0] sm:$0xff]
        %v469 = vld [vmem:[#allocation5 + $0x3c8] sm:$0xff]
        %v470 = vld [vmem:[#allocation5 + $0x3d0] sm:$0xff]
        %v471 = vld [vmem:[#allocation5 + $0x3d8] sm:$0xff]
        %v472 = vld [vmem:[#allocation5 + $0x3e0] sm:$0xff]
        %v473 = vld [vmem:[#allocation5 + $0x3e8] sm:$0xff]
        %v474 = vld [vmem:[#allocation5 + $0x3f0] sm:$0xff]
        %v475 = vld [vmem:[#allocation5 + $0x3f8] sm:$0xff]
        %v476 = vld [vmem:[#allocation5 + $0x400] sm:$0xff]
        %v477 = vld [vmem:[#allocation5 + $0x408] sm:$0xff]
        %v478 = vld [vmem:[#allocation5 + $0x410] sm:$0xff]
        %v479 = vld [vmem:[#allocation5 + $0x418] sm:$0xff]
        %v480 = vld [vmem:[#allocation5 + $0x420] sm:$0xff]
        %v481 = vld [vmem:[#allocation5 + $0x428] sm:$0xff]
        %v482 = vld [vmem:[#allocation5 + $0x430] sm:$0xff]
        %v483 = vld [vmem:[#allocation5 + $0x438] sm:$0xff]
        %v484 = vld [vmem:[#allocation5 + $0x440] sm:$0xff]
        %v485 = vld [vmem:[#allocation5 + $0x448] sm:$0xff]
        %v486 = vld [vmem:[#allocation5 + $0x450] sm:$0xff]
        %v487 = vld [vmem:[#allocation5 + $0x458] sm:$0xff]
        %v488 = vld [vmem:[#allocation5 + $0x460] sm:$0xff]
        %v489 = vld [vmem:[#allocation5 + $0x468] sm:$0xff]
        %v490 = vld [vmem:[#allocation5 + $0x470] sm:$0xff]
        %v491 = vld [vmem:[#allocation5 + $0x478] sm:$0xff]
        %v492 = vld [vmem:[#allocation5 + $0x480] sm:$0xff]
        %v493 = vld [vmem:[#allocation5 + $0x488] sm:$0xff]
        %v494 = vld [vmem:[#allocation5 + $0x490] sm:$0xff]
        %v495 = vld [vmem:[#allocation5 + $0x498] sm:$0xff]
        %v496 = vld [vmem:[#allocation5 + $0x4a0] sm:$0xff]
        %v497 = vld [vmem:[#allocation5 + $0x4a8] sm:$0xff]
        %v498 = vld [vmem:[#allocation5 + $0x4b0] sm:$0xff]
        %v499 = vld [vmem:[#allocation5 + $0x4b8] sm:$0xff]
        %v500 = vld [vmem:[#allocation5 + $0x4c0] sm:$0xff]
        %v501 = vld [vmem:[#allocation5 + $0x4c8] sm:$0xff]
        %v502 = vld [vmem:[#allocation5 + $0x4d0] sm:$0xff]
        %v503 = vld [vmem:[#allocation5 + $0x4d8] sm:$0xff]
        %v504 = vld [vmem:[#allocation5 + $0x4e0] sm:$0xff]
        %v505 = vld [vmem:[#allocation5 + $0x4e8] sm:$0xff]
        %v506 = vld [vmem:[#allocation5 + $0x4f0] sm:$0xff]
        %v507 = vld [vmem:[#allocation5 + $0x4f8] sm:$0xff]
        %v508 = vld [vmem:[#allocation5 + $0x500] sm:$0xff]
        %v509 = vld [vmem:[#allocation5 + $0x508] sm:$0xff]
        %v510 = vld [vmem:[#allocation5 + $0x510] sm:$0xff]
        %v511 = vld [vmem:[#allocation5 + $0x518] sm:$0xff]
        %v512 = vld [vmem:[#allocation5 + $0x520] sm:$0xff]
        %v513 = vld [vmem:[#allocation5 + $0x528] sm:$0xff]
        %v514 = vld [vmem:[#allocation5 + $0x530] sm:$0xff]
        %v515 = vld [vmem:[#allocation5 + $0x538] sm:$0xff]
        %v516 = vld [vmem:[#allocation5 + $0x540] sm:$0xff]
        %v517 = vld [vmem:[#allocation5 + $0x548] sm:$0xff]
        %v518 = vld [vmem:[#allocation5 + $0x550] sm:$0xff]
        %v519 = vld [vmem:[#allocation5 + $0x558] sm:$0xff]
        %v520 = vld [vmem:[#allocation5 + $0x560] sm:$0xff]
        %v521 = vld [vmem:[#allocation5 + $0x568] sm:$0xff]
        %v522 = vld [vmem:[#allocation5 + $0x570] sm:$0xff]
        %v523 = vld [vmem:[#allocation5 + $0x578] sm:$0xff]
        %v524 = vld [vmem:[#allocation5 + $0x580] sm:$0xff]
        %v525 = vld [vmem:[#allocation5 + $0x588] sm:$0xff]
        %v526 = vld [vmem:[#allocation5 + $0x590] sm:$0xff]
        %v527 = vld [vmem:[#allocation5 + $0x598] sm:$0xff]
        %v528 = vld [vmem:[#allocation5 + $0x5a0] sm:$0xff]
        %v529 = vld [vmem:[#allocation5 + $0x5a8] sm:$0xff]
        %v530 = vld [vmem:[#allocation5 + $0x5b0] sm:$0xff]
        %v531 = vld [vmem:[#allocation5 + $0x5b8] sm:$0xff]
        %v532 = vld [vmem:[#allocation5 + $0x5c0] sm:$0xff]
        %v533 = vld [vmem:[#allocation5 + $0x5c8] sm:$0xff]
        %v534 = vld [vmem:[#allocation5 + $0x5d0] sm:$0xff]
        %v535 = vld [vmem:[#allocation5 + $0x5d8] sm:$0xff]
        %v536 = vld [vmem:[#allocation5 + $0x5e0] sm:$0xff]
        %v537 = vld [vmem:[#allocation5 + $0x5e8] sm:$0xff]
        %v538 = vld [vmem:[#allocation5 + $0x5f0] sm:$0xff]
        %v539 = vld [vmem:[#allocation5 + $0x5f8] sm:$0xff]
        %v540 = vld [vmem:[#allocation5 + $0x600] sm:$0xff]
        %v541 = vld [vmem:[#allocation5 + $0x608] sm:$0xff]
        %v542 = vld [vmem:[#allocation5 + $0x610] sm:$0xff]
        %v543 = vld [vmem:[#allocation5 + $0x618] sm:$0xff]
        %v544 = vld [vmem:[#allocation5 + $0x620] sm:$0xff]
        %v545 = vld [vmem:[#allocation5 + $0x628] sm:$0xff]
        %v546 = vld [vmem:[#allocation5 + $0x630] sm:$0xff]
        %v547 = vld [vmem:[#allocation5 + $0x638] sm:$0xff]
        %v548 = vld [vmem:[#allocation5 + $0x640] sm:$0xff]
        %v549 = vld [vmem:[#allocation5 + $0x648] sm:$0xff]
        %v550 = vld [vmem:[#allocation5 + $0x650] sm:$0xff]
        %v551 = vld [vmem:[#allocation5 + $0x658] sm:$0xff]
        %v552 = vld [vmem:[#allocation5 + $0x660] sm:$0xff]
        %v553 = vld [vmem:[#allocation5 + $0x668] sm:$0xff]
        %v554 = vld [vmem:[#allocation5 + $0x670] sm:$0xff]
        %v555 = vld [vmem:[#allocation5 + $0x678] sm:$0xff]
        %v556 = vld [vmem:[#allocation5 + $0x680] sm:$0xff]
        %v557 = vld [vmem:[#allocation5 + $0x688] sm:$0xff]
        %v558 = vld [vmem:[#allocation5 + $0x690] sm:$0xff]
        %v559 = vld [vmem:[#allocation5 + $0x698] sm:$0xff]
        %v560 = vld [vmem:[#allocation5 + $0x6a0] sm:$0xff]
        %v561 = vld [vmem:[#allocation5 + $0x6a8] sm:$0xff]
        %v562 = vld [vmem:[#allocation5 + $0x6b0] sm:$0xff]
        %v563 = vld [vmem:[#allocation5 + $0x6b8] sm:$0xff]
        %v564 = vld [vmem:[#allocation5 + $0x6c0] sm:$0xff]
        %v565 = vld [vmem:[#allocation5 + $0x6c8] sm:$0xff]
        %v566 = vld [vmem:[#allocation5 + $0x6d0] sm:$0xff]
        %v567 = vld [vmem:[#allocation5 + $0x6d8] sm:$0xff]
        %v568 = vld [vmem:[#allocation5 + $0x6e0] sm:$0xff]
        %v569 = vld [vmem:[#allocation5 + $0x6e8] sm:$0xff]
        %v570 = vld [vmem:[#allocation5 + $0x6f0] sm:$0xff]
        %v571 = vld [vmem:[#allocation5 + $0x6f8] sm:$0xff]
        %v572 = vld [vmem:[#allocation5 + $0x700] sm:$0xff]
        %v573 = vld [vmem:[#allocation5 + $0x708] sm:$0xff]
        %v574 = vld [vmem:[#allocation5 + $0x710] sm:$0xff]
        %v575 = vld [vmem:[#allocation5 + $0x718] sm:$0xff]
        %v576 = vld [vmem:[#allocation5 + $0x720] sm:$0xff]
        %v577 = vld [vmem:[#allocation5 + $0x728] sm:$0xff]
        %v578 = vld [vmem:[#allocation5 + $0x730] sm:$0xff]
        %v579 = vld [vmem:[#allocation5 + $0x738] sm:$0xff]
        %v580 = vld [vmem:[#allocation5 + $0x740] sm:$0xff]
        %v581 = vld [vmem:[#allocation5 + $0x748] sm:$0xff]
        %v582 = vld [vmem:[#allocation5 + $0x750] sm:$0xff]
        %v583 = vld [vmem:[#allocation5 + $0x758] sm:$0xff]
        %v584 = vld [vmem:[#allocation5 + $0x760] sm:$0xff]
        %v585 = vld [vmem:[#allocation5 + $0x768] sm:$0xff]
        %v586 = vld [vmem:[#allocation5 + $0x770] sm:$0xff]
        %v587 = vld [vmem:[#allocation5 + $0x778] sm:$0xff]
        %v588 = vld [vmem:[#allocation5 + $0x780] sm:$0xff]
        %v589 = vld [vmem:[#allocation5 + $0x788] sm:$0xff]
        %v590 = vld [vmem:[#allocation5 + $0x790] sm:$0xff]
        %v591 = vld [vmem:[#allocation5 + $0x798] sm:$0xff]
        %v592 = vld [vmem:[#allocation5 + $0x7a0] sm:$0xff]
        %v593 = vld [vmem:[#allocation5 + $0x7a8] sm:$0xff]
        %v594 = vld [vmem:[#allocation5 + $0x7b0] sm:$0xff]
        %v595 = vld [vmem:[#allocation5 + $0x7b8] sm:$0xff]
        %v596 = vld [vmem:[#allocation5 + $0x7c0] sm:$0xff]
        %v597 = vld [vmem:[#allocation5 + $0x7c8] sm:$0xff]
        %v598 = vld [vmem:[#allocation5 + $0x7d0] sm:$0xff]
        %v599 = vld [vmem:[#allocation5 + $0x7d8] sm:$0xff]
        %v600 = vld [vmem:[#allocation5 + $0x7e0] sm:$0xff]
        %v601 = vld [vmem:[#allocation5 + $0x7e8] sm:$0xff]
        %v602 = vld [vmem:[#allocation5 + $0x7f0] sm:$0xff]
        %v603 = vld [vmem:[#allocation5 + $0x7f8] sm:$0xff]
        %v604 = vld [vmem:[#allocation5 + $0x800] sm:$0xff]
        %v605 = vld [vmem:[#allocation5 + $0x808] sm:$0xff]
        %v606 = vld [vmem:[#allocation5 + $0x810] sm:$0xff]
        %v607 = vld [vmem:[#allocation5 + $0x818] sm:$0xff]
        %v608 = vld [vmem:[#allocation5 + $0x820] sm:$0xff]
        %v609 = vld [vmem:[#allocation5 + $0x828] sm:$0xff]
        %v610 = vld [vmem:[#allocation5 + $0x830] sm:$0xff]
        %v611 = vld [vmem:[#allocation5 + $0x838] sm:$0xff]
        %v612 = vld [vmem:[#allocation5 + $0x840] sm:$0xff]
        %v613 = vld [vmem:[#allocation5 + $0x848] sm:$0xff]
        %v614 = vld [vmem:[#allocation5 + $0x850] sm:$0xff]
        %v615 = vld [vmem:[#allocation5 + $0x858] sm:$0xff]
        %v616 = vld [vmem:[#allocation5 + $0x860] sm:$0xff]
        %v617 = vld [vmem:[#allocation5 + $0x868] sm:$0xff]
        %v618 = vld [vmem:[#allocation5 + $0x870] sm:$0xff]
        %v619 = vld [vmem:[#allocation5 + $0x878] sm:$0xff]
        %v620 = vld [vmem:[#allocation5 + $0x880] sm:$0xff]
        %v621 = vld [vmem:[#allocation5 + $0x888] sm:$0xff]
        %v622 = vld [vmem:[#allocation5 + $0x890] sm:$0xff]
        %v623 = vld [vmem:[#allocation5 + $0x898] sm:$0xff]
        %v624 = vld [vmem:[#allocation5 + $0x8a0] sm:$0xff]
        %v625 = vld [vmem:[#allocation5 + $0x8a8] sm:$0xff]
        %v626 = vld [vmem:[#allocation5 + $0x8b0] sm:$0xff]
        %v627 = vld [vmem:[#allocation5 + $0x8b8] sm:$0xff]
        %v628 = vld [vmem:[#allocation5 + $0x8c0] sm:$0xff]
        %v629 = vld [vmem:[#allocation5 + $0x8c8] sm:$0xff]
        %v630 = vld [vmem:[#allocation5 + $0x8d0] sm:$0xff]
        %v631 = vld [vmem:[#allocation5 + $0x8d8] sm:$0xff]
        %v632 = vld [vmem:[#allocation5 + $0x8e0] sm:$0xff]
        %v633 = vld [vmem:[#allocation5 + $0x8e8] sm:$0xff]
        %v634 = vld [vmem:[#allocation5 + $0x8f0] sm:$0xff]
        %v635 = vld [vmem:[#allocation5 + $0x8f8] sm:$0xff]
        %v636 = vld [vmem:[#allocation5 + $0x900] sm:$0xff]
        %v637 = vld [vmem:[#allocation5 + $0x908] sm:$0xff]
        %v638 = vld [vmem:[#allocation5 + $0x910] sm:$0xff]
        %v639 = vld [vmem:[#allocation5 + $0x918] sm:$0xff]
        %v640 = vld [vmem:[#allocation5 + $0x920] sm:$0xff]
        %v641 = vld [vmem:[#allocation5 + $0x928] sm:$0xff]
        %v642 = vld [vmem:[#allocation5 + $0x930] sm:$0xff]
        %v643 = vld [vmem:[#allocation5 + $0x938] sm:$0xff]
        %v644 = vld [vmem:[#allocation5 + $0x940] sm:$0xff]
        %v645 = vld [vmem:[#allocation5 + $0x948] sm:$0xff]
        %v646 = vld [vmem:[#allocation5 + $0x950] sm:$0xff]
        %v647 = vld [vmem:[#allocation5 + $0x958] sm:$0xff]
        %v648 = vld [vmem:[#allocation5 + $0x960] sm:$0xff]
        %v649 = vld [vmem:[#allocation5 + $0x968] sm:$0xff]
        %v650 = vld [vmem:[#allocation5 + $0x970] sm:$0xff]
        %v651 = vld [vmem:[#allocation5 + $0x978] sm:$0xff]
        %v652 = vld [vmem:[#allocation5 + $0x980] sm:$0xff]
        %v653 = vld [vmem:[#allocation5 + $0x988] sm:$0xff]
        %v654 = vld [vmem:[#allocation5 + $0x990] sm:$0xff]
        %v655 = vld [vmem:[#allocation5 + $0x998] sm:$0xff]
        %v656 = vld [vmem:[#allocation5 + $0x9a0] sm:$0xff]
        %v657 = vld [vmem:[#allocation5 + $0x9a8] sm:$0xff]
        %v658 = vld [vmem:[#allocation5 + $0x9b0] sm:$0xff]
        %v659 = vld [vmem:[#allocation5 + $0x9b8] sm:$0xff]
        %v660 = vld [vmem:[#allocation5 + $0x9c0] sm:$0xff]
        %v661 = vld [vmem:[#allocation5 + $0x9c8] sm:$0xff]
        %v662 = vld [vmem:[#allocation5 + $0x9d0] sm:$0xff]
        %v663 = vld [vmem:[#allocation5 + $0x9d8] sm:$0xff]
        %v664 = vld [vmem:[#allocation5 + $0x9e0] sm:$0xff]
        %v665 = vld [vmem:[#allocation5 + $0x9e8] sm:$0xff]
        %v666 = vld [vmem:[#allocation5 + $0x9f0] sm:$0xff]
        %v667 = vld [vmem:[#allocation5 + $0x9f8] sm:$0xff]
        %v668 = vld [vmem:[#allocation5 + $0xa00] sm:$0xff]
        %v669 = vld [vmem:[#allocation5 + $0xa08] sm:$0xff]
        %v670 = vld [vmem:[#allocation5 + $0xa10] sm:$0xff]
        %v671 = vld [vmem:[#allocation5 + $0xa18] sm:$0xff]
        %v672 = vld [vmem:[#allocation5 + $0xa20] sm:$0xff]
        %v673 = vld [vmem:[#allocation5 + $0xa28] sm:$0xff]
        %v674 = vld [vmem:[#allocation5 + $0xa30] sm:$0xff]
        %v675 = vld [vmem:[#allocation5 + $0xa38] sm:$0xff]
        %v676 = vld [vmem:[#allocation5 + $0xa40] sm:$0xff]
        %v677 = vld [vmem:[#allocation5 + $0xa48] sm:$0xff]
        %v678 = vld [vmem:[#allocation5 + $0xa50] sm:$0xff]
        %v679 = vld [vmem:[#allocation5 + $0xa58] sm:$0xff]
        %v680 = vld [vmem:[#allocation5 + $0xa60] sm:$0xff]
        %v681 = vld [vmem:[#allocation5 + $0xa68] sm:$0xff]
        %v682 = vld [vmem:[#allocation5 + $0xa70] sm:$0xff]
        %v683 = vld [vmem:[#allocation5 + $0xa78] sm:$0xff]
        %v684 = vld [vmem:[#allocation5 + $0xa80] sm:$0xff]
        %v685 = vld [vmem:[#allocation5 + $0xa88] sm:$0xff]
        %v686 = vld [vmem:[#allocation5 + $0xa90] sm:$0xff]
        %v687 = vld [vmem:[#allocation5 + $0xa98] sm:$0xff]
        %v688 = vld [vmem:[#allocation5 + $0xaa0] sm:$0xff]
        %v689 = vld [vmem:[#allocation5 + $0xaa8] sm:$0xff]
        %v690 = vld [vmem:[#allocation5 + $0xab0] sm:$0xff]
        %v691 = vld [vmem:[#allocation5 + $0xab8] sm:$0xff]
        %v692 = vld [vmem:[#allocation5 + $0xac0] sm:$0xff]
        %v693 = vld [vmem:[#allocation5 + $0xac8] sm:$0xff]
        %v694 = vld [vmem:[#allocation5 + $0xad0] sm:$0xff]
        %v695 = vld [vmem:[#allocation5 + $0xad8] sm:$0xff]
        %v696 = vld [vmem:[#allocation5 + $0xae0] sm:$0xff]
        %v697 = vld [vmem:[#allocation5 + $0xae8] sm:$0xff]
        %v698 = vld [vmem:[#allocation5 + $0xaf0] sm:$0xff]
        %v699 = vld [vmem:[#allocation5 + $0xaf8] sm:$0xff]
        %v700 = vld [vmem:[#allocation5 + $0xb00] sm:$0xff]
        %v701 = vld [vmem:[#allocation5 + $0xb08] sm:$0xff]
        %v702 = vld [vmem:[#allocation5 + $0xb10] sm:$0xff]
        %v703 = vld [vmem:[#allocation5 + $0xb18] sm:$0xff]
        %v704 = vld [vmem:[#allocation5 + $0xb20] sm:$0xff]
        %v705 = vld [vmem:[#allocation5 + $0xb28] sm:$0xff]
        %v706 = vld [vmem:[#allocation5 + $0xb30] sm:$0xff]
        %v707 = vld [vmem:[#allocation5 + $0xb38] sm:$0xff]
        %v708 = vld [vmem:[#allocation5 + $0xb40] sm:$0xff]
        %v709 = vld [vmem:[#allocation5 + $0xb48] sm:$0xff]
        %v710 = vld [vmem:[#allocation5 + $0xb50] sm:$0xff]
        %v711 = vld [vmem:[#allocation5 + $0xb58] sm:$0xff]
        %v712 = vld [vmem:[#allocation5 + $0xb60] sm:$0xff]
        %v713 = vld [vmem:[#allocation5 + $0xb68] sm:$0xff]
        %v714 = vld [vmem:[#allocation5 + $0xb70] sm:$0xff]
        %v715 = vld [vmem:[#allocation5 + $0xb78] sm:$0xff]
        %v716 = vld [vmem:[#allocation5 + $0xb80] sm:$0xff]
        %v717 = vld [vmem:[#allocation5 + $0xb88] sm:$0xff]
        %v718 = vld [vmem:[#allocation5 + $0xb90] sm:$0xff]
        %v719 = vld [vmem:[#allocation5 + $0xb98] sm:$0xff]
        %v720 = vld [vmem:[#allocation5 + $0xba0] sm:$0xff]
        %v721 = vld [vmem:[#allocation5 + $0xba8] sm:$0xff]
        %v722 = vld [vmem:[#allocation5 + $0xbb0] sm:$0xff]
        %v723 = vld [vmem:[#allocation5 + $0xbb8] sm:$0xff]
        %v724 = vld [vmem:[#allocation5 + $0xbc0] sm:$0xff]
        %v725 = vld [vmem:[#allocation5 + $0xbc8] sm:$0xff]
        %v726 = vld [vmem:[#allocation5 + $0xbd0] sm:$0xff]
        %v727 = vld [vmem:[#allocation5 + $0xbd8] sm:$0xff]
        %v728 = vld [vmem:[#allocation5 + $0xbe0] sm:$0xff]
        %v729 = vld [vmem:[#allocation5 + $0xbe8] sm:$0xff]
        %v730 = vld [vmem:[#allocation5 + $0xbf0] sm:$0xff]
        %v731 = vld [vmem:[#allocation5 + $0xbf8] sm:$0xff]
        %v732 = vld [vmem:[#allocation5 + $0xc00] sm:$0xff]
        %v733 = vld [vmem:[#allocation5 + $0xc08] sm:$0xff]
        %v734 = vld [vmem:[#allocation5 + $0xc10] sm:$0xff]
        %v735 = vld [vmem:[#allocation5 + $0xc18] sm:$0xff]
        %v736 = vld [vmem:[#allocation5 + $0xc20] sm:$0xff]
        %v737 = vld [vmem:[#allocation5 + $0xc28] sm:$0xff]
        %v738 = vld [vmem:[#allocation5 + $0xc30] sm:$0xff]
        %v739 = vld [vmem:[#allocation5 + $0xc38] sm:$0xff]
        %v740 = vld [vmem:[#allocation5 + $0xc40] sm:$0xff]
        %v741 = vld [vmem:[#allocation5 + $0xc48] sm:$0xff]
        %v742 = vld [vmem:[#allocation5 + $0xc50] sm:$0xff]
        %v743 = vld [vmem:[#allocation5 + $0xc58] sm:$0xff]
        %v744 = vld [vmem:[#allocation5 + $0xc60] sm:$0xff]
        %v745 = vld [vmem:[#allocation5 + $0xc68] sm:$0xff]
        %v746 = vld [vmem:[#allocation5 + $0xc70] sm:$0xff]
        %v747 = vld [vmem:[#allocation5 + $0xc78] sm:$0xff]
        %v748 = vld [vmem:[#allocation5 + $0xc80] sm:$0xff]
        %v749 = vld [vmem:[#allocation5 + $0xc88] sm:$0xff]
        %v750 = vld [vmem:[#allocation5 + $0xc90] sm:$0xff]
        %v751 = vld [vmem:[#allocation5 + $0xc98] sm:$0xff]
        %v752 = vld [vmem:[#allocation5 + $0xca0] sm:$0xff]
        %v753 = vld [vmem:[#allocation5 + $0xca8] sm:$0xff]
        %v754 = vld [vmem:[#allocation5 + $0xcb0] sm:$0xff]
        %v755 = vld [vmem:[#allocation5 + $0xcb8] sm:$0xff]
        %v756 = vld [vmem:[#allocation5 + $0xcc0] sm:$0xff]
        %v757 = vld [vmem:[#allocation5 + $0xcc8] sm:$0xff]
        %v758 = vld [vmem:[#allocation5 + $0xcd0] sm:$0xff]
        %v759 = vld [vmem:[#allocation5 + $0xcd8] sm:$0xff]
        %v760 = vld [vmem:[#allocation5 + $0xce0] sm:$0xff]
        %v761 = vld [vmem:[#allocation5 + $0xce8] sm:$0xff]
        %v762 = vld [vmem:[#allocation5 + $0xcf0] sm:$0xff]
        %v763 = vld [vmem:[#allocation5 + $0xcf8] sm:$0xff]
        %v764 = vld [vmem:[#allocation5 + $0xd00] sm:$0xff]
        %v765 = vld [vmem:[#allocation5 + $0xd08] sm:$0xff]
        %v766 = vld [vmem:[#allocation5 + $0xd10] sm:$0xff]
        %v767 = vld [vmem:[#allocation5 + $0xd18] sm:$0xff]
        %v768 = vld [vmem:[#allocation5 + $0xd20] sm:$0xff]
        %v769 = vld [vmem:[#allocation5 + $0xd28] sm:$0xff]
        %v770 = vld [vmem:[#allocation5 + $0xd30] sm:$0xff]
        %v771 = vld [vmem:[#allocation5 + $0xd38] sm:$0xff]
        %v772 = vld [vmem:[#allocation5 + $0xd40] sm:$0xff]
        %v773 = vld [vmem:[#allocation5 + $0xd48] sm:$0xff]
        %v774 = vld [vmem:[#allocation5 + $0xd50] sm:$0xff]
        %v775 = vld [vmem:[#allocation5 + $0xd58] sm:$0xff]
        %v776 = vld [vmem:[#allocation5 + $0xd60] sm:$0xff]
        %v777 = vld [vmem:[#allocation5 + $0xd68] sm:$0xff]
        %v778 = vld [vmem:[#allocation5 + $0xd70] sm:$0xff]
        %v779 = vld [vmem:[#allocation5 + $0xd78] sm:$0xff]
        %v780 = vld [vmem:[#allocation5 + $0xd80] sm:$0xff]
        %v781 = vld [vmem:[#allocation5 + $0xd88] sm:$0xff]
        %v782 = vld [vmem:[#allocation5 + $0xd90] sm:$0xff]
        %v783 = vld [vmem:[#allocation5 + $0xd98] sm:$0xff]
        %v784 = vld [vmem:[#allocation5 + $0xda0] sm:$0xff]
        %v785 = vld [vmem:[#allocation5 + $0xda8] sm:$0xff]
        %v786 = vld [vmem:[#allocation5 + $0xdb0] sm:$0xff]
        %v787 = vld [vmem:[#allocation5 + $0xdb8] sm:$0xff]
        %v788 = vld [vmem:[#allocation5 + $0xdc0] sm:$0xff]
        %v789 = vld [vmem:[#allocation5 + $0xdc8] sm:$0xff]
        %v790 = vld [vmem:[#allocation5 + $0xdd0] sm:$0xff]
        %v791 = vld [vmem:[#allocation5 + $0xdd8] sm:$0xff]
        %v792 = vld [vmem:[#allocation5 + $0xde0] sm:$0xff]
        %v793 = vld [vmem:[#allocation5 + $0xde8] sm:$0xff]
        %v794 = vld [vmem:[#allocation5 + $0xdf0] sm:$0xff]
        %v795 = vld [vmem:[#allocation5 + $0xdf8] sm:$0xff]
        %v796 = vld [vmem:[#allocation5 + $0xe00] sm:$0xff]
        %v797 = vld [vmem:[#allocation5 + $0xe08] sm:$0xff]
        %v798 = vld [vmem:[#allocation5 + $0xe10] sm:$0xff]
        %v799 = vld [vmem:[#allocation5 + $0xe18] sm:$0xff]
        %v800 = vld [vmem:[#allocation5 + $0xe20] sm:$0xff]
        %v801 = vld [vmem:[#allocation5 + $0xe28] sm:$0xff]
        %v802 = vld [vmem:[#allocation5 + $0xe30] sm:$0xff]
        %v803 = vld [vmem:[#allocation5 + $0xe38] sm:$0xff]
        %v804 = vld [vmem:[#allocation5 + $0xe40] sm:$0xff]
        %v805 = vld [vmem:[#allocation5 + $0xe48] sm:$0xff]
        %v806 = vld [vmem:[#allocation5 + $0xe50] sm:$0xff]
        %v807 = vld [vmem:[#allocation5 + $0xe58] sm:$0xff]
        %v808 = vld [vmem:[#allocation5 + $0xe60] sm:$0xff]
        %v809 = vld [vmem:[#allocation5 + $0xe68] sm:$0xff]
        %v810 = vld [vmem:[#allocation5 + $0xe70] sm:$0xff]
        %v811 = vld [vmem:[#allocation5 + $0xe78] sm:$0xff]
        %v812 = vld [vmem:[#allocation5 + $0xe80] sm:$0xff]
        %v813 = vld [vmem:[#allocation5 + $0xe88] sm:$0xff]
        %v814 = vld [vmem:[#allocation5 + $0xe90] sm:$0xff]
        %v815 = vld [vmem:[#allocation5 + $0xe98] sm:$0xff]
        %v816 = vld [vmem:[#allocation5 + $0xea0] sm:$0xff]
        %v817 = vld [vmem:[#allocation5 + $0xea8] sm:$0xff]
        %v818 = vld [vmem:[#allocation5 + $0xeb0] sm:$0xff]
        %v819 = vld [vmem:[#allocation5 + $0xeb8] sm:$0xff]
        %v820 = vld [vmem:[#allocation5 + $0xec0] sm:$0xff]
        %v821 = vld [vmem:[#allocation5 + $0xec8] sm:$0xff]
        %v822 = vld [vmem:[#allocation5 + $0xed0] sm:$0xff]
        %v823 = vld [vmem:[#allocation5 + $0xed8] sm:$0xff]
        %v824 = vld [vmem:[#allocation5 + $0xee0] sm:$0xff]
        %v825 = vld [vmem:[#allocation5 + $0xee8] sm:$0xff]
        %v826 = vld [vmem:[#allocation5 + $0xef0] sm:$0xff]
        %v827 = vld [vmem:[#allocation5 + $0xef8] sm:$0xff]
        %v828 = vld [vmem:[#allocation5 + $0xf00] sm:$0xff]
        %v829 = vld [vmem:[#allocation5 + $0xf08] sm:$0xff]
        %v830 = vld [vmem:[#allocation5 + $0xf10] sm:$0xff]
        %v831 = vld [vmem:[#allocation5 + $0xf18] sm:$0xff]
        %v832 = vld [vmem:[#allocation5 + $0xf20] sm:$0xff]
        %v833 = vld [vmem:[#allocation5 + $0xf28] sm:$0xff]
        %v834 = vld [vmem:[#allocation5 + $0xf30] sm:$0xff]
        %v835 = vld [vmem:[#allocation5 + $0xf38] sm:$0xff]
        %v836 = vld [vmem:[#allocation5 + $0xf40] sm:$0xff]
        %v837 = vld [vmem:[#allocation5 + $0xf48] sm:$0xff]
        %v838 = vld [vmem:[#allocation5 + $0xf50] sm:$0xff]
        %v839 = vld [vmem:[#allocation5 + $0xf58] sm:$0xff]
        %v840 = vld [vmem:[#allocation5 + $0xf60] sm:$0xff]
        %v841 = vld [vmem:[#allocation5 + $0xf68] sm:$0xff]
        %v842 = vld [vmem:[#allocation5 + $0xf70] sm:$0xff]
        %v843 = vld [vmem:[#allocation5 + $0xf78] sm:$0xff]
        %v844 = vld [vmem:[#allocation5 + $0xf80] sm:$0xff]
        %v845 = vld [vmem:[#allocation5 + $0xf88] sm:$0xff]
        %v846 = vld [vmem:[#allocation5 + $0xf90] sm:$0xff]
        %v847 = vld [vmem:[#allocation5 + $0xf98] sm:$0xff]
        %v848 = vld [vmem:[#allocation5 + $0xfa0] sm:$0xff]
        %v849 = vld [vmem:[#allocation5 + $0xfa8] sm:$0xff]
        %v850 = vld [vmem:[#allocation5 + $0xfb0] sm:$0xff]
        %v851 = vld [vmem:[#allocation5 + $0xfb8] sm:$0xff]
        %v852 = vld [vmem:[#allocation5 + $0xfc0] sm:$0xff]
        %v853 = vld [vmem:[#allocation5 + $0xfc8] sm:$0xff]
        %v854 = vld [vmem:[#allocation5 + $0xfd0] sm:$0xff]
        %v855 = vld [vmem:[#allocation5 + $0xfd8] sm:$0xff]
        %v856 = vld [vmem:[#allocation5 + $0xfe0] sm:$0xff]
        %v857 = vld [vmem:[#allocation5 + $0xfe8] sm:$0xff]
        %v858 = vld [vmem:[#allocation5 + $0xff0] sm:$0xff]
        %v859 = vld [vmem:[#allocation5 + $0xff8] sm:$0xff]
        %v860 = vld [vmem:[#allocation5 + $0x1000] sm:$0xff]
        %v861 = vld [vmem:[#allocation5 + $0x1008] sm:$0xff]
        %v862 = vld [vmem:[#allocation5 + $0x1010] sm:$0xff]
        %v863 = vld [vmem:[#allocation5 + $0x1018] sm:$0xff]
        %v864 = vld [vmem:[#allocation5 + $0x1020] sm:$0xff]
        %v865 = vld [vmem:[#allocation5 + $0x1028] sm:$0xff]
        %v866 = vld [vmem:[#allocation5 + $0x1030] sm:$0xff]
        %v867 = vld [vmem:[#allocation5 + $0x1038] sm:$0xff]
        %v868 = vld [vmem:[#allocation5 + $0x1040] sm:$0xff]
        %v869 = vld [vmem:[#allocation5 + $0x1048] sm:$0xff]
        %v870 = vld [vmem:[#allocation5 + $0x1050] sm:$0xff]
        %v871 = vld [vmem:[#allocation5 + $0x1058] sm:$0xff]
        %v872 = vld [vmem:[#allocation5 + $0x1060] sm:$0xff]
        %v873 = vld [vmem:[#allocation5 + $0x1068] sm:$0xff]
        %v874 = vld [vmem:[#allocation5 + $0x1070] sm:$0xff]
        %v875 = vld [vmem:[#allocation5 + $0x1078] sm:$0xff]
        %v876 = vld [vmem:[#allocation5 + $0x1080] sm:$0xff]
        %v877 = vld [vmem:[#allocation5 + $0x1088] sm:$0xff]
        %v878 = vld [vmem:[#allocation5 + $0x1090] sm:$0xff]
        %v879 = vld [vmem:[#allocation5 + $0x1098] sm:$0xff]
        %v880 = vld [vmem:[#allocation5 + $0x10a0] sm:$0xff]
        %v881 = vld [vmem:[#allocation5 + $0x10a8] sm:$0xff]
        %v882 = vld [vmem:[#allocation5 + $0x10b0] sm:$0xff]
        %v883 = vld [vmem:[#allocation5 + $0x10b8] sm:$0xff]
        %v884 = vld [vmem:[#allocation5 + $0x10c0] sm:$0xff]
        %v885 = vld [vmem:[#allocation5 + $0x10c8] sm:$0xff]
        %v886 = vld [vmem:[#allocation5 + $0x10d0] sm:$0xff]
        %v887 = vld [vmem:[#allocation5 + $0x10d8] sm:$0xff]
        %v888 = vld [vmem:[#allocation5 + $0x10e0] sm:$0xff]
        %v889 = vld [vmem:[#allocation5 + $0x10e8] sm:$0xff]
        %v890 = vld [vmem:[#allocation5 + $0x10f0] sm:$0xff]
        %v891 = vld [vmem:[#allocation5 + $0x10f8] sm:$0xff]
        %v892 = vld [vmem:[#allocation5 + $0x1100] sm:$0xff]
        %v893 = vld [vmem:[#allocation5 + $0x1108] sm:$0xff]
        %v894 = vld [vmem:[#allocation5 + $0x1110] sm:$0xff]
        %v895 = vld [vmem:[#allocation5 + $0x1118] sm:$0xff]
        %v896 = vld [vmem:[#allocation5 + $0x1120] sm:$0xff]
        %v897 = vld [vmem:[#allocation5 + $0x1128] sm:$0xff]
        %v898 = vld [vmem:[#allocation5 + $0x1130] sm:$0xff]
        %v899 = vld [vmem:[#allocation5 + $0x1138] sm:$0xff]
        %v900 = vld [vmem:[#allocation5 + $0x1140] sm:$0xff]
        %v901 = vld [vmem:[#allocation5 + $0x1148] sm:$0xff]
        %v902 = vld [vmem:[#allocation5 + $0x1150] sm:$0xff]
        %v903 = vld [vmem:[#allocation5 + $0x1158] sm:$0xff]
        %v904 = vld [vmem:[#allocation5 + $0x1160] sm:$0xff]
        %v905 = vld [vmem:[#allocation5 + $0x1168] sm:$0xff]
        %v906 = vld [vmem:[#allocation5 + $0x1170] sm:$0xff]
        %v907 = vld [vmem:[#allocation5 + $0x1178] sm:$0xff]
        %v908 = vld [vmem:[#allocation5 + $0x1180] sm:$0xff]
        %v909 = vld [vmem:[#allocation5 + $0x1188] sm:$0xff]
        %v910 = vld [vmem:[#allocation5 + $0x1190] sm:$0xff]
        %v911 = vld [vmem:[#allocation5 + $0x1198] sm:$0xff]
        %v912 = vld [vmem:[#allocation5 + $0x11a0] sm:$0xff]
        %v913 = vld [vmem:[#allocation5 + $0x11a8] sm:$0xff]
        %v914 = vld [vmem:[#allocation5 + $0x11b0] sm:$0xff]
        %v915 = vld [vmem:[#allocation5 + $0x11b8] sm:$0xff]
        %v916 = vld [vmem:[#allocation5 + $0x11c0] sm:$0xff]
        %v917 = vld [vmem:[#allocation5 + $0x11c8] sm:$0xff]
        %v918 = vld [vmem:[#allocation5 + $0x11d0] sm:$0xff]
        %v919 = vld [vmem:[#allocation5 + $0x11d8] sm:$0xff]
        %v920 = vld [vmem:[#allocation5 + $0x11e0] sm:$0xff]
        %v921 = vld [vmem:[#allocation5 + $0x11e8] sm:$0xff]
        %v922 = vld [vmem:[#allocation5 + $0x11f0] sm:$0xff]
        %v923 = vld [vmem:[#allocation5 + $0x11f8] sm:$0xff]
        %v924 = vld [vmem:[#allocation7] sm:$0xff]
        %v925 = vld [vmem:[#allocation7 + $0x8] sm:$0xf]
        %v928 = vlaneseq
        %v929 = vshrl.u32 %v928, 7
        %v930 = vsub.s32 0, %v929
        %v931 = vrot.slane %v924, %v930
        %v932 = vlaneseq
        %v933 = vshrl.u32 %v932, 7
        %v934 = vsub.s32 1, %v933
        %v935 = vrot.slane %v924, %v934
        %v936 = vlaneseq
        %v937 = vshrl.u32 %v936, 7
        %v938 = vsub.s32 2, %v937
        %v939 = vrot.slane %v924, %v938
        %v940 = vlaneseq
        %v941 = vshrl.u32 %v940, 7
        %v942 = vsub.s32 3, %v941
        %v943 = vrot.slane %v924, %v942
        %v944 = vlaneseq
        %v945 = vshrl.u32 %v944, 7
        %v946 = vsub.s32 4, %v945
        %v947 = vrot.slane %v924, %v946
        %v948 = vlaneseq
        %v949 = vshrl.u32 %v948, 7
        %v950 = vsub.s32 5, %v949
        %v951 = vrot.slane %v924, %v950
        %v952 = vlaneseq
        %v953 = vshrl.u32 %v952, 7
        %v954 = vsub.s32 6, %v953
        %v955 = vrot.slane %v924, %v954
        %v956 = vlaneseq
        %v957 = vshrl.u32 %v956, 7
        %v958 = vsub.s32 7, %v957
        %v959 = vrot.slane %v924, %v958
        %v960 = vlaneseq
        %v961 = vshrl.u32 %v960, 7
        %v962 = vsub.s32 0, %v961
        %v963 = vrot.slane %v925, %v962
        %v964 = vlaneseq
        %v965 = vshrl.u32 %v964, 7
        %v966 = vsub.s32 1, %v965
        %v967 = vrot.slane %v925, %v966
        %v968 = vlaneseq
        %v969 = vshrl.u32 %v968, 7
        %v970 = vsub.s32 2, %v969
        %v971 = vrot.slane %v925, %v970
        %v972 = vlaneseq
        %v973 = vshrl.u32 %v972, 7
        %v974 = vsub.s32 3, %v973
        %v975 = vrot.slane %v925, %v974
        %988 = vmatprep.subr.mxu0 %v349
        %989 = vmatpush1.msra.mxu0 %v348
        %990 = vmatprep.subr.mxu0 %v361
        %991 = vmatpush1.msra.mxu0 %v360
        %992 = vmatprep.subr.mxu0 %v373
        %993 = vmatpush1.msra.mxu0 %v372
        %994 = vmatprep.subr.mxu0 %v385
        %995 = vmatpush1.msra.mxu0 %v384
        %996 = vmatprep.subr.mxu0 %v397
        %997 = vmatpush1.msra.mxu0 %v396
        %998 = vmatprep.subr.mxu0 %v409
        %999 = vmatpush1.msra.mxu0 %v408
        %1000 = vmatprep.subr.mxu0 %v421
        %1001 = vmatpush1.msra.mxu0 %v420
        %1002 = vmatprep.subr.mxu0 %v433
        %1003 = vmatpush1.msra.mxu0 %v432
        %1004 = vmatprep.subr.mxu0 %v445
        %1005 = vmatpush1.msra.mxu0 %v444
        %1006 = vmatprep.subr.mxu0 %v457
        %1007 = vmatpush1.msra.mxu0 %v456
        %1008 = vmatprep.subr.mxu0 %v469
        %1009 = vmatpush1.msra.mxu0 %v468
        %1010 = vmatprep.subr.mxu0 %v481
        %1011 = vmatpush1.msra.mxu0 %v480
        %1012 = vmatprep.subr.mxu0 %v493
        %1013 = vmatpush1.msra.mxu0 %v492
        %1014 = vmatprep.subr.mxu0 %v505
        %1015 = vmatpush1.msra.mxu0 %v504
        %1016 = vmatprep.subr.mxu0 %v517
        %1017 = vmatpush1.msra.mxu0 %v516
        %1018 = vmatprep.subr.mxu0 %v529
        %1019 = vmatpush1.msra.mxu0 %v528
        %1020 = vmatprep.subr.mxu0 %v541
        %1021 = vmatpush1.msra.mxu0 %v540
        %1022 = vmatprep.subr.mxu0 %v553
        %1023 = vmatpush1.msra.mxu0 %v552
        %1024 = vmatprep.subr.mxu0 %v565
        %1025 = vmatpush1.msra.mxu0 %v564
        %1026 = vmatprep.subr.mxu0 %v577
        %1027 = vmatpush1.msra.mxu0 %v576
        %1028 = vmatprep.subr.mxu0 %v589
        %1029 = vmatpush1.msra.mxu0 %v588
        %1030 = vmatprep.subr.mxu0 %v601
        %1031 = vmatpush1.msra.mxu0 %v600
        %1032 = vmatprep.subr.mxu0 %v613
        %1033 = vmatpush1.msra.mxu0 %v612
        %1034 = vmatprep.subr.mxu0 %v625
        %1035 = vmatpush1.msra.mxu0 %v624
        %1036 = vmatprep.subr.mxu0 %v637
        %1037 = vmatpush1.msra.mxu0 %v636
        %1038 = vmatprep.subr.mxu0 %v649
        %1039 = vmatpush1.msra.mxu0 %v648
        %1040 = vmatprep.subr.mxu0 %v661
        %1041 = vmatpush1.msra.mxu0 %v660
        %1042 = vmatprep.subr.mxu0 %v673
        %1043 = vmatpush1.msra.mxu0 %v672
        %1044 = vmatprep.subr.mxu0 %v685
        %1045 = vmatpush1.msra.mxu0 %v684
        %1046 = vmatprep.subr.mxu0 %v697
        %1047 = vmatpush1.msra.mxu0 %v696
        %1048 = vmatprep.subr.mxu0 %v709
        %1049 = vmatpush1.msra.mxu0 %v708
        %1050 = vmatprep.subr.mxu0 %v721
        %1051 = vmatpush1.msra.mxu0 %v720
        %1052 = vmatprep.mubr.f32.mxu0 %v301
        %1053 = vmatmul.mubr.f32.gmra.mrb[0].mxu0 %v300
        %v1054 = vpop.f32.mrb[0].mxu0
        %v1055 = vadd.f32 %v931, %v1054
        %v1056 = vpop.f32.mrb[0].mxu0
        %v1057 = vadd.f32 %v935, %v1056
        %1058 = vmatprep.mubr.f32.mxu0 %v304
        %1059 = vmatmul.mubr.f32.gmra.mrb[0].mxu0 %v303
        %v1060 = vpop.f32.mrb[0].mxu0
        %v1061 = vadd.f32 %v931, %v1060
        %v1062 = vpop.f32.mrb[0].mxu0
        %v1063 = vadd.f32 %v935, %v1062
        %1064 = vmatprep.mubr.f32.mxu0 %v307
        %1065 = vmatmul.mubr.f32.gmra.mrb[0].mxu0 %v306
        %v1066 = vpop.f32.mrb[0].mxu0
        %v1067 = vadd.f32 %v931, %v1066
        %v1068 = vpop.f32.mrb[0].mxu0
        %v1069 = vadd.f32 %v935, %v1068
        %1070 = vmatprep.mubr.f32.mxu0 %v310
        %1071 = vmatmul.mubr.f32.gmra.mrb[0].mxu0 %v309
        %v1072 = vpop.f32.mrb[0].mxu0
        %v1073 = vadd.f32 %v931, %v1072
        %v1074 = vpop.f32.mrb[0].mxu0
        %v1075 = vadd.f32 %v935, %v1074
        %1076 = vmatprep.mubr.f32.mxu0 %v313
        %1077 = vmatmul.mubr.f32.gmra.mrb[0].mxu0 %v312
        %v1078 = vpop.f32.mrb[0].mxu0
        %v1079 = vadd.f32 %v931, %v1078
        %v1080 = vpop.f32.mrb[0].mxu0
        %v1081 = vadd.f32 %v935, %v1080
        %1082 = vmatprep.mubr.f32.mxu0 %v316
        %1083 = vmatmul.mubr.f32.gmra.mrb[0].mxu0 %v315
        %v1084 = vpop.f32.mrb[0].mxu0
        %v1085 = vadd.f32 %v931, %v1084
        %v1086 = vpop.f32.mrb[0].mxu0
        %v1087 = vadd.f32 %v935, %v1086
        %1088 = vmatprep.mubr.f32.mxu0 %v319
        %1089 = vmatmul.mubr.f32.gmra.mrb[0].mxu0 %v318
        %v1090 = vpop.f32.mrb[0].mxu0
        %v1091 = vadd.f32 %v931, %v1090
        %v1092 = vpop.f32.mrb[0].mxu0
        %v1093 = vadd.f32 %v935, %v1092
        %1094 = vmatprep.mubr.f32.mxu0 %v322
        %1095 = vmatmul.mubr.f32.gmra.mrb[0].mxu0 %v321
        %v1096 = vpop.f32.mrb[0].mxu0
        %v1097 = vadd.f32 %v931, %v1096
        %v1098 = vpop.f32.mrb[0].mxu0
        %v1099 = vadd.f32 %v935, %v1098
        %1100 = vmatprep.mubr.f32.mxu0 %v325
        %1101 = vmatmul.mubr.f32.gmra.mrb[0].mxu0 %v324
        %v1102 = vpop.f32.mrb[0].mxu0
        %v1103 = vadd.f32 %v931, %v1102
        %v1104 = vpop.f32.mrb[0].mxu0
        %v1105 = vadd.f32 %v935, %v1104
        %1106 = vmatprep.mubr.f32.mxu0 %v328
        %1107 = vmatmul.mubr.f32.gmra.mrb[0].mxu0 %v327
        %v1108 = vpop.f32.mrb[0].mxu0
        %v1109 = vadd.f32 %v931, %v1108
        %v1110 = vpop.f32.mrb[0].mxu0
        %v1111 = vadd.f32 %v935, %v1110
        %1112 = vmatprep.mubr.f32.mxu0 %v331
        %1113 = vmatmul.mubr.f32.gmra.mrb[0].mxu0 %v330
        %v1114 = vpop.f32.mrb[0].mxu0
        %v1115 = vadd.f32 %v931, %v1114
        %v1116 = vpop.f32.mrb[0].mxu0
        %v1117 = vadd.f32 %v935, %v1116
        %1118 = vmatprep.mubr.f32.mxu0 %v334
        %1119 = vmatmul.mubr.f32.gmra.mrb[0].mxu0 %v333
        %v1120 = vpop.f32.mrb[0].mxu0
        %v1121 = vadd.f32 %v931, %v1120
        %v1122 = vpop.f32.mrb[0].mxu0
        %v1123 = vadd.f32 %v935, %v1122
        %1124 = vmatprep.mubr.f32.mxu0 %v337
        %1125 = vmatmul.mubr.f32.gmra.mrb[0].mxu0 %v336
        %v1126 = vpop.f32.mrb[0].mxu0
        %v1127 = vadd.f32 %v931, %v1126
        %v1128 = vpop.f32.mrb[0].mxu0
        %v1129 = vadd.f32 %v935, %v1128
        %1130 = vmatprep.mubr.f32.mxu0 %v340
        %1131 = vmatmul.mubr.f32.gmra.mrb[0].mxu0 %v339
        %v1132 = vpop.f32.mrb[0].mxu0
        %v1133 = vadd.f32 %v931, %v1132
        %v1134 = vpop.f32.mrb[0].mxu0
        %v1135 = vadd.f32 %v935, %v1134
        %1136 = vmatprep.mubr.f32.mxu0 %v343
        %1137 = vmatmul.mubr.f32.gmra.mrb[0].mxu0 %v342
        %v1138 = vpop.f32.mrb[0].mxu0
        %v1139 = vadd.f32 %v931, %v1138
        %v1140 = vpop.f32.mrb[0].mxu0
        %v1141 = vadd.f32 %v935, %v1140
        %1142 = vmatprep.mubr.f32.mxu0 %v346
        %1143 = vmatmul.mubr.f32.gmra.mrb[0].mxu0 %v345
        %v1144 = vpop.f32.mrb[0].mxu0
        %v1145 = vadd.f32 %v931, %v1144
        %v1146 = vpop.f32.mrb[0].mxu0
        %v1147 = vadd.f32 %v935, %v1146
        %1148 = vdwg.mxu0
        %1149 = vmatprep.subr.mxu0 %v733
        %1150 = vmatpush1.msra.mxu0 %v732
        %1151 = vmatprep.subr.mxu0 %v745
        %1152 = vmatpush1.msra.mxu0 %v744
        %1153 = vmatprep.subr.mxu0 %v757
        %1154 = vmatpush1.msra.mxu0 %v756
        %1155 = vmatprep.subr.mxu0 %v769
        %1156 = vmatpush1.msra.mxu0 %v768
        %1157 = vmatprep.subr.mxu0 %v781
        %1158 = vmatpush1.msra.mxu0 %v780
        %1159 = vmatprep.subr.mxu0 %v793
        %1160 = vmatpush1.msra.mxu0 %v792
        %1161 = vmatprep.subr.mxu0 %v805
        %1162 = vmatpush1.msra.mxu0 %v804
        %1163 = vmatprep.subr.mxu0 %v817
        %1164 = vmatpush1.msra.mxu0 %v816
        %1165 = vmatprep.subr.mxu0 %v829
        %1166 = vmatpush1.msra.mxu0 %v828
        %1167 = vmatprep.subr.mxu0 %v841
        %1168 = vmatpush1.msra.mxu0 %v840
        %1169 = vmatprep.subr.mxu0 %v853
        %1170 = vmatpush1.msra.mxu0 %v852
        %1171 = vmatprep.subr.mxu0 %v865
        %1172 = vmatpush1.msra.mxu0 %v864
        %1173 = vmatprep.subr.mxu0 %v877
        %1174 = vmatpush1.msra.mxu0 %v876
        %1175 = vmatprep.subr.mxu0 %v889
        %1176 = vmatpush1.msra.mxu0 %v888
        %1177 = vmatprep.subr.mxu0 %v901
        %1178 = vmatpush1.msra.mxu0 %v900
        %1179 = vmatprep.subr.mxu0 %v913
        %1180 = vmatpush1.msra.mxu0 %v912
        %1181 = vmatprep.subr.mxu0 0.0
        %1182 = vmatpush1.msra.mxu0 0.0
        %1183 = vmatprep.subr.mxu0 0.0
        %1184 = vmatpush1.msra.mxu0 0.0
        %1185 = vmatprep.subr.mxu0 0.0
        %1186 = vmatpush1.msra.mxu0 0.0
        %1187 = vmatprep.subr.mxu0 0.0
        %1188 = vmatpush1.msra.mxu0 0.0
        %1189 = vmatprep.subr.mxu0 0.0
        %1190 = vmatpush1.msra.mxu0 0.0
        %1191 = vmatprep.subr.mxu0 0.0
        %1192 = vmatpush1.msra.mxu0 0.0
        %1193 = vmatprep.subr.mxu0 0.0
        %1194 = vmatpush1.msra.mxu0 0.0
        %1195 = vmatprep.subr.mxu0 0.0
        %1196 = vmatpush1.msra.mxu0 0.0
        %1197 = vmatprep.subr.mxu0 0.0
        %1198 = vmatpush1.msra.mxu0 0.0
        %1199 = vmatprep.subr.mxu0 0.0
        %1200 = vmatpush1.msra.mxu0 0.0
        %1201 = vmatprep.subr.mxu0 0.0
        %1202 = vmatpush1.msra.mxu0 0.0
        %1203 = vmatprep.subr.mxu0 0.0
        %1204 = vmatpush1.msra.mxu0 0.0
        %1205 = vmatprep.subr.mxu0 0.0
        %1206 = vmatpush1.msra.mxu0 0.0
        %1207 = vmatprep.subr.mxu0 0.0
        %1208 = vmatpush1.msra.mxu0 0.0
        %1209 = vmatprep.subr.mxu0 0.0
        %1210 = vmatpush1.msra.mxu0 0.0
        %1211 = vmatprep.subr.mxu0 0.0
        %1212 = vmatpush1.msra.mxu0 0.0
        %1213 = vmatprep.mubr.f32.mxu0 0.0
        %1214 = vmatmul.mubr.f32.gmra.mrb[0].mxu0 %v302
        %v1215 = vpop.f32.mrb[0].mxu0
        %v1216 = vadd.f32 %v1055, %v1215
        %v1217 = vpop.f32.mrb[0].mxu0
        %v1218 = vadd.f32 %v1057, %v1217
        %1219 = vmatprep.mubr.f32.mxu0 0.0
        %1220 = vmatmul.mubr.f32.gmra.mrb[0].mxu0 %v305
        %v1221 = vpop.f32.mrb[0].mxu0
        %v1222 = vadd.f32 %v1061, %v1221
        %v1223 = vpop.f32.mrb[0].mxu0
        %v1224 = vadd.f32 %v1063, %v1223
        %1225 = vmatprep.mubr.f32.mxu0 0.0
        %1226 = vmatmul.mubr.f32.gmra.mrb[0].mxu0 %v308
        %v1227 = vpop.f32.mrb[0].mxu0
        %v1228 = vadd.f32 %v1067, %v1227
        %v1229 = vpop.f32.mrb[0].mxu0
        %v1230 = vadd.f32 %v1069, %v1229
        %1231 = vmatprep.mubr.f32.mxu0 0.0
        %1232 = vmatmul.mubr.f32.gmra.mrb[0].mxu0 %v311
        %v1233 = vpop.f32.mrb[0].mxu0
        %v1234 = vadd.f32 %v1073, %v1233
        %v1235 = vpop.f32.mrb[0].mxu0
        %v1236 = vadd.f32 %v1075, %v1235
        %1237 = vmatprep.mubr.f32.mxu0 0.0
        %1238 = vmatmul.mubr.f32.gmra.mrb[0].mxu0 %v314
        %v1239 = vpop.f32.mrb[0].mxu0
        %v1240 = vadd.f32 %v1079, %v1239
        %v1241 = vpop.f32.mrb[0].mxu0
        %v1242 = vadd.f32 %v1081, %v1241
        %1243 = vmatprep.mubr.f32.mxu0 0.0
        %1244 = vmatmul.mubr.f32.gmra.mrb[0].mxu0 %v317
        %v1245 = vpop.f32.mrb[0].mxu0
        %v1246 = vadd.f32 %v1085, %v1245
        %v1247 = vpop.f32.mrb[0].mxu0
        %v1248 = vadd.f32 %v1087, %v1247
        %1249 = vmatprep.mubr.f32.mxu0 0.0
        %1250 = vmatmul.mubr.f32.gmra.mrb[0].mxu0 %v320
        %v1251 = vpop.f32.mrb[0].mxu0
        %v1252 = vadd.f32 %v1091, %v1251
        %v1253 = vpop.f32.mrb[0].mxu0
        %v1254 = vadd.f32 %v1093, %v1253
        %1255 = vmatprep.mubr.f32.mxu0 0.0
        %1256 = vmatmul.mubr.f32.gmra.mrb[0].mxu0 %v323
        %v1257 = vpop.f32.mrb[0].mxu0
        %v1258 = vadd.f32 %v1097, %v1257
        %v1259 = vpop.f32.mrb[0].mxu0
        %v1260 = vadd.f32 %v1099, %v1259
        %1261 = vmatprep.mubr.f32.mxu0 0.0
        %1262 = vmatmul.mubr.f32.gmra.mrb[0].mxu0 %v326
        %v1263 = vpop.f32.mrb[0].mxu0
        %v1264 = vadd.f32 %v1103, %v1263
        %v1265 = vpop.f32.mrb[0].mxu0
        %v1266 = vadd.f32 %v1105, %v1265
        %1267 = vmatprep.mubr.f32.mxu0 0.0
        %1268 = vmatmul.mubr.f32.gmra.mrb[0].mxu0 %v329
        %v1269 = vpop.f32.mrb[0].mxu0
        %v1270 = vadd.f32 %v1109, %v1269
        %v1271 = vpop.f32.mrb[0].mxu0
        %v1272 = vadd.f32 %v1111, %v1271
        %1273 = vmatprep.mubr.f32.mxu0 0.0
        %1274 = vmatmul.mubr.f32.gmra.mrb[0].mxu0 %v332
        %v1275 = vpop.f32.mrb[0].mxu0
        %v1276 = vadd.f32 %v1115, %v1275
        %v1277 = vpop.f32.mrb[0].mxu0
        %v1278 = vadd.f32 %v1117, %v1277
        %1279 = vmatprep.mubr.f32.mxu0 0.0
        %1280 = vmatmul.mubr.f32.gmra.mrb[0].mxu0 %v335
        %v1281 = vpop.f32.mrb[0].mxu0
        %v1282 = vadd.f32 %v1121, %v1281
        %v1283 = vpop.f32.mrb[0].mxu0
        %v1284 = vadd.f32 %v1123, %v1283
        %1285 = vmatprep.mubr.f32.mxu0 0.0
        %1286 = vmatmul.mubr.f32.gmra.mrb[0].mxu0 %v338
        %v1287 = vpop.f32.mrb[0].mxu0
        %v1288 = vadd.f32 %v1127, %v1287
        %v1289 = vpop.f32.mrb[0].mxu0
        %v1290 = vadd.f32 %v1129, %v1289
        %1291 = vmatprep.mubr.f32.mxu0 0.0
        %1292 = vmatmul.mubr.f32.gmra.mrb[0].mxu0 %v341
        %v1293 = vpop.f32.mrb[0].mxu0
        %v1294 = vadd.f32 %v1133, %v1293
        %v1295 = vpop.f32.mrb[0].mxu0
        %v1296 = vadd.f32 %v1135, %v1295
        %1297 = vmatprep.mubr.f32.mxu0 0.0
        %1298 = vmatmul.mubr.f32.gmra.mrb[0].mxu0 %v344
        %v1299 = vpop.f32.mrb[0].mxu0
        %v1300 = vadd.f32 %v1139, %v1299
        %v1301 = vpop.f32.mrb[0].mxu0
        %v1302 = vadd.f32 %v1141, %v1301
        %1303 = vmatprep.mubr.f32.mxu0 0.0
        %1304 = vmatmul.mubr.f32.gmra.mrb[0].mxu0 %v347
        %v1305 = vpop.f32.mrb[0].mxu0
        %v1306 = vadd.f32 %v1145, %v1305
        %v1307 = vpop.f32.mrb[0].mxu0
        %v1308 = vadd.f32 %v1147, %v1307
        %1309 = vdwg.mxu0
        %1310 = vmatprep.subr.mxu0 %v351
        %1311 = vmatpush1.msra.mxu0 %v350
        %1312 = vmatprep.subr.mxu0 %v363
        %1313 = vmatpush1.msra.mxu0 %v362
        %1314 = vmatprep.subr.mxu0 %v375
        %1315 = vmatpush1.msra.mxu0 %v374
        %1316 = vmatprep.subr.mxu0 %v387
        %1317 = vmatpush1.msra.mxu0 %v386
        %1318 = vmatprep.subr.mxu0 %v399
        %1319 = vmatpush1.msra.mxu0 %v398
        %1320 = vmatprep.subr.mxu0 %v411
        %1321 = vmatpush1.msra.mxu0 %v410
        %1322 = vmatprep.subr.mxu0 %v423
        %1323 = vmatpush1.msra.mxu0 %v422
        %1324 = vmatprep.subr.mxu0 %v435
        %1325 = vmatpush1.msra.mxu0 %v434
        %1326 = vmatprep.subr.mxu0 %v447
        %1327 = vmatpush1.msra.mxu0 %v446
        %1328 = vmatprep.subr.mxu0 %v459
        %1329 = vmatpush1.msra.mxu0 %v458
        %1330 = vmatprep.subr.mxu0 %v471
        %1331 = vmatpush1.msra.mxu0 %v470
        %1332 = vmatprep.subr.mxu0 %v483
        %1333 = vmatpush1.msra.mxu0 %v482
        %1334 = vmatprep.subr.mxu0 %v495
        %1335 = vmatpush1.msra.mxu0 %v494
        %1336 = vmatprep.subr.mxu0 %v507
        %1337 = vmatpush1.msra.mxu0 %v506
        %1338 = vmatprep.subr.mxu0 %v519
        %1339 = vmatpush1.msra.mxu0 %v518
        %1340 = vmatprep.subr.mxu0 %v531
        %1341 = vmatpush1.msra.mxu0 %v530
        %1342 = vmatprep.subr.mxu0 %v543
        %1343 = vmatpush1.msra.mxu0 %v542
        %1344 = vmatprep.subr.mxu0 %v555
        %1345 = vmatpush1.msra.mxu0 %v554
        %1346 = vmatprep.subr.mxu0 %v567
        %1347 = vmatpush1.msra.mxu0 %v566
        %1348 = vmatprep.subr.mxu0 %v579
        %1349 = vmatpush1.msra.mxu0 %v578
        %1350 = vmatprep.subr.mxu0 %v591
        %1351 = vmatpush1.msra.mxu0 %v590
        %1352 = vmatprep.subr.mxu0 %v603
        %1353 = vmatpush1.msra.mxu0 %v602
        %1354 = vmatprep.subr.mxu0 %v615
        %1355 = vmatpush1.msra.mxu0 %v614
        %1356 = vmatprep.subr.mxu0 %v627
        %1357 = vmatpush1.msra.mxu0 %v626
        %1358 = vmatprep.subr.mxu0 %v639
        %1359 = vmatpush1.msra.mxu0 %v638
        %1360 = vmatprep.subr.mxu0 %v651
        %1361 = vmatpush1.msra.mxu0 %v650
        %1362 = vmatprep.subr.mxu0 %v663
        %1363 = vmatpush1.msra.mxu0 %v662
        %1364 = vmatprep.subr.mxu0 %v675
        %1365 = vmatpush1.msra.mxu0 %v674
        %1366 = vmatprep.subr.mxu0 %v687
        %1367 = vmatpush1.msra.mxu0 %v686
        %1368 = vmatprep.subr.mxu0 %v699
        %1369 = vmatpush1.msra.mxu0 %v698
        %1370 = vmatprep.subr.mxu0 %v711
        %1371 = vmatpush1.msra.mxu0 %v710
        %1372 = vmatprep.subr.mxu0 %v723
        %1373 = vmatpush1.msra.mxu0 %v722
        %1374 = vmatprep.mubr.f32.mxu0 %v301
        %1375 = vmatmul.mubr.f32.gmra.mrb[0].mxu0 %v300
        %v1376 = vpop.f32.mrb[0].mxu0
        %v1377 = vadd.f32 %v939, %v1376
        %v1378 = vpop.f32.mrb[0].mxu0
        %v1379 = vadd.f32 %v943, %v1378
        %1380 = vmatprep.mubr.f32.mxu0 %v304
        %1381 = vmatmul.mubr.f32.gmra.mrb[0].mxu0 %v303
        %v1382 = vpop.f32.mrb[0].mxu0
        %v1383 = vadd.f32 %v939, %v1382
        %v1384 = vpop.f32.mrb[0].mxu0
        %v1385 = vadd.f32 %v943, %v1384
        %1386 = vmatprep.mubr.f32.mxu0 %v307
        %1387 = vmatmul.mubr.f32.gmra.mrb[0].mxu0 %v306
        %v1388 = vpop.f32.mrb[0].mxu0
        %v1389 = vadd.f32 %v939, %v1388
        %v1390 = vpop.f32.mrb[0].mxu0
        %v1391 = vadd.f32 %v943, %v1390
        %1392 = vmatprep.mubr.f32.mxu0 %v310
        %1393 = vmatmul.mubr.f32.gmra.mrb[0].mxu0 %v309
        %v1394 = vpop.f32.mrb[0].mxu0
        %v1395 = vadd.f32 %v939, %v1394
        %v1396 = vpop.f32.mrb[0].mxu0
        %v1397 = vadd.f32 %v943, %v1396
        %1398 = vmatprep.mubr.f32.mxu0 %v313
        %1399 = vmatmul.mubr.f32.gmra.mrb[0].mxu0 %v312
        %v1400 = vpop.f32.mrb[0].mxu0
        %v1401 = vadd.f32 %v939, %v1400
        %v1402 = vpop.f32.mrb[0].mxu0
        %v1403 = vadd.f32 %v943, %v1402
        %1404 = vmatprep.mubr.f32.mxu0 %v316
        %1405 = vmatmul.mubr.f32.gmra.mrb[0].mxu0 %v315
        %v1406 = vpop.f32.mrb[0].mxu0
        %v1407 = vadd.f32 %v939, %v1406
        %v1408 = vpop.f32.mrb[0].mxu0
        %v1409 = vadd.f32 %v943, %v1408
        %1410 = vmatprep.mubr.f32.mxu0 %v319
        %1411 = vmatmul.mubr.f32.gmra.mrb[0].mxu0 %v318
        %v1412 = vpop.f32.mrb[0].mxu0
        %v1413 = vadd.f32 %v939, %v1412
        %v1414 = vpop.f32.mrb[0].mxu0
        %v1415 = vadd.f32 %v943, %v1414
        %1416 = vmatprep.mubr.f32.mxu0 %v322
        %1417 = vmatmul.mubr.f32.gmra.mrb[0].mxu0 %v321
        %v1418 = vpop.f32.mrb[0].mxu0
        %v1419 = vadd.f32 %v939, %v1418
        %v1420 = vpop.f32.mrb[0].mxu0
        %v1421 = vadd.f32 %v943, %v1420
        %1422 = vmatprep.mubr.f32.mxu0 %v325
        %1423 = vmatmul.mubr.f32.gmra.mrb[0].mxu0 %v324
        %v1424 = vpop.f32.mrb[0].mxu0
        %v1425 = vadd.f32 %v939, %v1424
        %v1426 = vpop.f32.mrb[0].mxu0
        %v1427 = vadd.f32 %v943, %v1426
        %1428 = vmatprep.mubr.f32.mxu0 %v328
        %1429 = vmatmul.mubr.f32.gmra.mrb[0].mxu0 %v327
        %v1430 = vpop.f32.mrb[0].mxu0
        %v1431 = vadd.f32 %v939, %v1430
        %v1432 = vpop.f32.mrb[0].mxu0
        %v1433 = vadd.f32 %v943, %v1432
        %1434 = vmatprep.mubr.f32.mxu0 %v331
        %1435 = vmatmul.mubr.f32.gmra.mrb[0].mxu0 %v330
        %v1436 = vpop.f32.mrb[0].mxu0
        %v1437 = vadd.f32 %v939, %v1436
        %v1438 = vpop.f32.mrb[0].mxu0
        %v1439 = vadd.f32 %v943, %v1438
        %1440 = vmatprep.mubr.f32.mxu0 %v334
        %1441 = vmatmul.mubr.f32.gmra.mrb[0].mxu0 %v333
        %v1442 = vpop.f32.mrb[0].mxu0
        %v1443 = vadd.f32 %v939, %v1442
        %v1444 = vpop.f32.mrb[0].mxu0
        %v1445 = vadd.f32 %v943, %v1444
        %1446 = vmatprep.mubr.f32.mxu0 %v337
        %1447 = vmatmul.mubr.f32.gmra.mrb[0].mxu0 %v336
        %v1448 = vpop.f32.mrb[0].mxu0
        %v1449 = vadd.f32 %v939, %v1448
        %v1450 = vpop.f32.mrb[0].mxu0
        %v1451 = vadd.f32 %v943, %v1450
        %1452 = vmatprep.mubr.f32.mxu0 %v340
        %1453 = vmatmul.mubr.f32.gmra.mrb[0].mxu0 %v339
        %v1454 = vpop.f32.mrb[0].mxu0
        %v1455 = vadd.f32 %v939, %v1454
        %v1456 = vpop.f32.mrb[0].mxu0
        %v1457 = vadd.f32 %v943, %v1456
        %1458 = vmatprep.mubr.f32.mxu0 %v343
        %1459 = vmatmul.mubr.f32.gmra.mrb[0].mxu0 %v342
        %v1460 = vpop.f32.mrb[0].mxu0
        %v1461 = vadd.f32 %v939, %v1460
        %v1462 = vpop.f32.mrb[0].mxu0
        %v1463 = vadd.f32 %v943, %v1462
        %1464 = vmatprep.mubr.f32.mxu0 %v346
        %1465 = vmatmul.mubr.f32.gmra.mrb[0].mxu0 %v345
        %v1466 = vpop.f32.mrb[0].mxu0
        %v1467 = vadd.f32 %v939, %v1466
        %v1468 = vpop.f32.mrb[0].mxu0
        %v1469 = vadd.f32 %v943, %v1468
        %1470 = vdwg.mxu0
        %1471 = vmatprep.subr.mxu0 %v735
        %1472 = vmatpush1.msra.mxu0 %v734
        %1473 = vmatprep.subr.mxu0 %v747
        %1474 = vmatpush1.msra.mxu0 %v746
        %1475 = vmatprep.subr.mxu0 %v759
        %1476 = vmatpush1.msra.mxu0 %v758
        %1477 = vmatprep.subr.mxu0 %v771
        %1478 = vmatpush1.msra.mxu0 %v770
        %1479 = vmatprep.subr.mxu0 %v783
        %1480 = vmatpush1.msra.mxu0 %v782
        %1481 = vmatprep.subr.mxu0 %v795
        %1482 = vmatpush1.msra.mxu0 %v794
        %1483 = vmatprep.subr.mxu0 %v807
        %1484 = vmatpush1.msra.mxu0 %v806
        %1485 = vmatprep.subr.mxu0 %v819
        %1486 = vmatpush1.msra.mxu0 %v818
        %1487 = vmatprep.subr.mxu0 %v831
        %1488 = vmatpush1.msra.mxu0 %v830
        %1489 = vmatprep.subr.mxu0 %v843
        %1490 = vmatpush1.msra.mxu0 %v842
        %1491 = vmatprep.subr.mxu0 %v855
        %1492 = vmatpush1.msra.mxu0 %v854
        %1493 = vmatprep.subr.mxu0 %v867
        %1494 = vmatpush1.msra.mxu0 %v866
        %1495 = vmatprep.subr.mxu0 %v879
        %1496 = vmatpush1.msra.mxu0 %v878
        %1497 = vmatprep.subr.mxu0 %v891
        %1498 = vmatpush1.msra.mxu0 %v890
        %1499 = vmatprep.subr.mxu0 %v903
        %1500 = vmatpush1.msra.mxu0 %v902
        %1501 = vmatprep.subr.mxu0 %v915
        %1502 = vmatpush1.msra.mxu0 %v914
        %1503 = vmatprep.subr.mxu0 0.0
        %1504 = vmatpush1.msra.mxu0 0.0
        %1505 = vmatprep.subr.mxu0 0.0
        %1506 = vmatpush1.msra.mxu0 0.0
        %1507 = vmatprep.subr.mxu0 0.0
        %1508 = vmatpush1.msra.mxu0 0.0
        %1509 = vmatprep.subr.mxu0 0.0
        %1510 = vmatpush1.msra.mxu0 0.0
        %1511 = vmatprep.subr.mxu0 0.0
        %1512 = vmatpush1.msra.mxu0 0.0
        %1513 = vmatprep.subr.mxu0 0.0
        %1514 = vmatpush1.msra.mxu0 0.0
        %1515 = vmatprep.subr.mxu0 0.0
        %1516 = vmatpush1.msra.mxu0 0.0
        %1517 = vmatprep.subr.mxu0 0.0
        %1518 = vmatpush1.msra.mxu0 0.0
        %1519 = vmatprep.subr.mxu0 0.0
        %1520 = vmatpush1.msra.mxu0 0.0
        %1521 = vmatprep.subr.mxu0 0.0
        %1522 = vmatpush1.msra.mxu0 0.0
        %1523 = vmatprep.subr.mxu0 0.0
        %1524 = vmatpush1.msra.mxu0 0.0
        %1525 = vmatprep.subr.mxu0 0.0
        %1526 = vmatpush1.msra.mxu0 0.0
        %1527 = vmatprep.subr.mxu0 0.0
        %1528 = vmatpush1.msra.mxu0 0.0
        %1529 = vmatprep.subr.mxu0 0.0
        %1530 = vmatpush1.msra.mxu0 0.0
        %1531 = vmatprep.subr.mxu0 0.0
        %1532 = vmatpush1.msra.mxu0 0.0
        %1533 = vmatprep.subr.mxu0 0.0
        %1534 = vmatpush1.msra.mxu0 0.0
        %1535 = vmatprep.mubr.f32.mxu0 0.0
        %1536 = vmatmul.mubr.f32.gmra.mrb[0].mxu0 %v302
        %v1537 = vpop.f32.mrb[0].mxu0
        %v1538 = vadd.f32 %v1377, %v1537
        %v1539 = vpop.f32.mrb[0].mxu0
        %v1540 = vadd.f32 %v1379, %v1539
        %1541 = vmatprep.mubr.f32.mxu0 0.0
        %1542 = vmatmul.mubr.f32.gmra.mrb[0].mxu0 %v305
        %v1543 = vpop.f32.mrb[0].mxu0
        %v1544 = vadd.f32 %v1383, %v1543
        %v1545 = vpop.f32.mrb[0].mxu0
        %v1546 = vadd.f32 %v1385, %v1545
        %1547 = vmatprep.mubr.f32.mxu0 0.0
        %1548 = vmatmul.mubr.f32.gmra.mrb[0].mxu0 %v308
        %v1549 = vpop.f32.mrb[0].mxu0
        %v1550 = vadd.f32 %v1389, %v1549
        %v1551 = vpop.f32.mrb[0].mxu0
        %v1552 = vadd.f32 %v1391, %v1551
        %1553 = vmatprep.mubr.f32.mxu0 0.0
        %1554 = vmatmul.mubr.f32.gmra.mrb[0].mxu0 %v311
        %v1555 = vpop.f32.mrb[0].mxu0
        %v1556 = vadd.f32 %v1395, %v1555
        %v1557 = vpop.f32.mrb[0].mxu0
        %v1558 = vadd.f32 %v1397, %v1557
        %1559 = vmatprep.mubr.f32.mxu0 0.0
        %1560 = vmatmul.mubr.f32.gmra.mrb[0].mxu0 %v314
        %v1561 = vpop.f32.mrb[0].mxu0
        %v1562 = vadd.f32 %v1401, %v1561
        %v1563 = vpop.f32.mrb[0].mxu0
        %v1564 = vadd.f32 %v1403, %v1563
        %1565 = vmatprep.mubr.f32.mxu0 0.0
        %1566 = vmatmul.mubr.f32.gmra.mrb[0].mxu0 %v317
        %v1567 = vpop.f32.mrb[0].mxu0
        %v1568 = vadd.f32 %v1407, %v1567
        %v1569 = vpop.f32.mrb[0].mxu0
        %v1570 = vadd.f32 %v1409, %v1569
        %1571 = vmatprep.mubr.f32.mxu0 0.0
        %1572 = vmatmul.mubr.f32.gmra.mrb[0].mxu0 %v320
        %v1573 = vpop.f32.mrb[0].mxu0
        %v1574 = vadd.f32 %v1413, %v1573
        %v1575 = vpop.f32.mrb[0].mxu0
        %v1576 = vadd.f32 %v1415, %v1575
        %1577 = vmatprep.mubr.f32.mxu0 0.0
        %1578 = vmatmul.mubr.f32.gmra.mrb[0].mxu0 %v323
        %v1579 = vpop.f32.mrb[0].mxu0
        %v1580 = vadd.f32 %v1419, %v1579
        %v1581 = vpop.f32.mrb[0].mxu0
        %v1582 = vadd.f32 %v1421, %v1581
        %1583 = vmatprep.mubr.f32.mxu0 0.0
        %1584 = vmatmul.mubr.f32.gmra.mrb[0].mxu0 %v326
        %v1585 = vpop.f32.mrb[0].mxu0
        %v1586 = vadd.f32 %v1425, %v1585
        %v1587 = vpop.f32.mrb[0].mxu0
        %v1588 = vadd.f32 %v1427, %v1587
        %1589 = vmatprep.mubr.f32.mxu0 0.0
        %1590 = vmatmul.mubr.f32.gmra.mrb[0].mxu0 %v329
        %v1591 = vpop.f32.mrb[0].mxu0
        %v1592 = vadd.f32 %v1431, %v1591
        %v1593 = vpop.f32.mrb[0].mxu0
        %v1594 = vadd.f32 %v1433, %v1593
        %1595 = vmatprep.mubr.f32.mxu0 0.0
        %1596 = vmatmul.mubr.f32.gmra.mrb[0].mxu0 %v332
        %v1597 = vpop.f32.mrb[0].mxu0
        %v1598 = vadd.f32 %v1437, %v1597
        %v1599 = vpop.f32.mrb[0].mxu0
        %v1600 = vadd.f32 %v1439, %v1599
        %1601 = vmatprep.mubr.f32.mxu0 0.0
        %1602 = vmatmul.mubr.f32.gmra.mrb[0].mxu0 %v335
        %v1603 = vpop.f32.mrb[0].mxu0
        %v1604 = vadd.f32 %v1443, %v1603
        %v1605 = vpop.f32.mrb[0].mxu0
        %v1606 = vadd.f32 %v1445, %v1605
        %1607 = vmatprep.mubr.f32.mxu0 0.0
        %1608 = vmatmul.mubr.f32.gmra.mrb[0].mxu0 %v338
        %v1609 = vpop.f32.mrb[0].mxu0
        %v1610 = vadd.f32 %v1449, %v1609
        %v1611 = vpop.f32.mrb[0].mxu0
        %v1612 = vadd.f32 %v1451, %v1611
        %1613 = vmatprep.mubr.f32.mxu0 0.0
        %1614 = vmatmul.mubr.f32.gmra.mrb[0].mxu0 %v341
        %v1615 = vpop.f32.mrb[0].mxu0
        %v1616 = vadd.f32 %v1455, %v1615
        %v1617 = vpop.f32.mrb[0].mxu0
        %v1618 = vadd.f32 %v1457, %v1617
        %1619 = vmatprep.mubr.f32.mxu0 0.0
        %1620 = vmatmul.mubr.f32.gmra.mrb[0].mxu0 %v344
        %v1621 = vpop.f32.mrb[0].mxu0
        %v1622 = vadd.f32 %v1461, %v1621
        %v1623 = vpop.f32.mrb[0].mxu0
        %v1624 = vadd.f32 %v1463, %v1623
        %1625 = vmatprep.mubr.f32.mxu0 0.0
        %1626 = vmatmul.mubr.f32.gmra.mrb[0].mxu0 %v347
        %v1627 = vpop.f32.mrb[0].mxu0
        %v1628 = vadd.f32 %v1467, %v1627
        %v1629 = vpop.f32.mrb[0].mxu0
        %v1630 = vadd.f32 %v1469, %v1629
        %1631 = vdwg.mxu0
        %1632 = vmatprep.subr.mxu0 %v353
        %1633 = vmatpush1.msra.mxu0 %v352
        %1634 = vmatprep.subr.mxu0 %v365
        %1635 = vmatpush1.msra.mxu0 %v364
        %1636 = vmatprep.subr.mxu0 %v377
        %1637 = vmatpush1.msra.mxu0 %v376
        %1638 = vmatprep.subr.mxu0 %v389
        %1639 = vmatpush1.msra.mxu0 %v388
        %1640 = vmatprep.subr.mxu0 %v401
        %1641 = vmatpush1.msra.mxu0 %v400
        %1642 = vmatprep.subr.mxu0 %v413
        %1643 = vmatpush1.msra.mxu0 %v412
        %1644 = vmatprep.subr.mxu0 %v425
        %1645 = vmatpush1.msra.mxu0 %v424
        %1646 = vmatprep.subr.mxu0 %v437
        %1647 = vmatpush1.msra.mxu0 %v436
        %1648 = vmatprep.subr.mxu0 %v449
        %1649 = vmatpush1.msra.mxu0 %v448
        %1650 = vmatprep.subr.mxu0 %v461
        %1651 = vmatpush1.msra.mxu0 %v460
        %1652 = vmatprep.subr.mxu0 %v473
        %1653 = vmatpush1.msra.mxu0 %v472
        %1654 = vmatprep.subr.mxu0 %v485
        %1655 = vmatpush1.msra.mxu0 %v484
        %1656 = vmatprep.subr.mxu0 %v497
        %1657 = vmatpush1.msra.mxu0 %v496
        %1658 = vmatprep.subr.mxu0 %v509
        %1659 = vmatpush1.msra.mxu0 %v508
        %1660 = vmatprep.subr.mxu0 %v521
        %1661 = vmatpush1.msra.mxu0 %v520
        %1662 = vmatprep.subr.mxu0 %v533
        %1663 = vmatpush1.msra.mxu0 %v532
        %1664 = vmatprep.subr.mxu0 %v545
        %1665 = vmatpush1.msra.mxu0 %v544
        %1666 = vmatprep.subr.mxu0 %v557
        %1667 = vmatpush1.msra.mxu0 %v556
        %1668 = vmatprep.subr.mxu0 %v569
        %1669 = vmatpush1.msra.mxu0 %v568
        %1670 = vmatprep.subr.mxu0 %v581
        %1671 = vmatpush1.msra.mxu0 %v580
        %1672 = vmatprep.subr.mxu0 %v593
        %1673 = vmatpush1.msra.mxu0 %v592
        %1674 = vmatprep.subr.mxu0 %v605
        %1675 = vmatpush1.msra.mxu0 %v604
        %1676 = vmatprep.subr.mxu0 %v617
        %1677 = vmatpush1.msra.mxu0 %v616
        %1678 = vmatprep.subr.mxu0 %v629
        %1679 = vmatpush1.msra.mxu0 %v628
        %1680 = vmatprep.subr.mxu0 %v641
        %1681 = vmatpush1.msra.mxu0 %v640
        %1682 = vmatprep.subr.mxu0 %v653
        %1683 = vmatpush1.msra.mxu0 %v652
        %1684 = vmatprep.subr.mxu0 %v665
        %1685 = vmatpush1.msra.mxu0 %v664
        %1686 = vmatprep.subr.mxu0 %v677
        %1687 = vmatpush1.msra.mxu0 %v676
        %1688 = vmatprep.subr.mxu0 %v689
        %1689 = vmatpush1.msra.mxu0 %v688
        %1690 = vmatprep.subr.mxu0 %v701
        %1691 = vmatpush1.msra.mxu0 %v700
        %1692 = vmatprep.subr.mxu0 %v713
        %1693 = vmatpush1.msra.mxu0 %v712
        %1694 = vmatprep.subr.mxu0 %v725
        %1695 = vmatpush1.msra.mxu0 %v724
        %1696 = vmatprep.mubr.f32.mxu0 %v301
        %1697 = vmatmul.mubr.f32.gmra.mrb[0].mxu0 %v300
        %v1698 = vpop.f32.mrb[0].mxu0
        %v1699 = vadd.f32 %v947, %v1698
        %v1700 = vpop.f32.mrb[0].mxu0
        %v1701 = vadd.f32 %v951, %v1700
        %1702 = vmatprep.mubr.f32.mxu0 %v304
        %1703 = vmatmul.mubr.f32.gmra.mrb[0].mxu0 %v303
        %v1704 = vpop.f32.mrb[0].mxu0
        %v1705 = vadd.f32 %v947, %v1704
        %v1706 = vpop.f32.mrb[0].mxu0
        %v1707 = vadd.f32 %v951, %v1706
        %1708 = vmatprep.mubr.f32.mxu0 %v307
        %1709 = vmatmul.mubr.f32.gmra.mrb[0].mxu0 %v306
        %v1710 = vpop.f32.mrb[0].mxu0
        %v1711 = vadd.f32 %v947, %v1710
        %v1712 = vpop.f32.mrb[0].mxu0
        %v1713 = vadd.f32 %v951, %v1712
        %1714 = vmatprep.mubr.f32.mxu0 %v310
        %1715 = vmatmul.mubr.f32.gmra.mrb[0].mxu0 %v309
        %v1716 = vpop.f32.mrb[0].mxu0
        %v1717 = vadd.f32 %v947, %v1716
        %v1718 = vpop.f32.mrb[0].mxu0
        %v1719 = vadd.f32 %v951, %v1718
        %1720 = vmatprep.mubr.f32.mxu0 %v313
        %1721 = vmatmul.mubr.f32.gmra.mrb[0].mxu0 %v312
        %v1722 = vpop.f32.mrb[0].mxu0
        %v1723 = vadd.f32 %v947, %v1722
        %v1724 = vpop.f32.mrb[0].mxu0
        %v1725 = vadd.f32 %v951, %v1724
        %1726 = vmatprep.mubr.f32.mxu0 %v316
        %1727 = vmatmul.mubr.f32.gmra.mrb[0].mxu0 %v315
        %v1728 = vpop.f32.mrb[0].mxu0
        %v1729 = vadd.f32 %v947, %v1728
        %v1730 = vpop.f32.mrb[0].mxu0
        %v1731 = vadd.f32 %v951, %v1730
        %1732 = vmatprep.mubr.f32.mxu0 %v319
        %1733 = vmatmul.mubr.f32.gmra.mrb[0].mxu0 %v318
        %v1734 = vpop.f32.mrb[0].mxu0
        %v1735 = vadd.f32 %v947, %v1734
        %v1736 = vpop.f32.mrb[0].mxu0
        %v1737 = vadd.f32 %v951, %v1736
        %1738 = vmatprep.mubr.f32.mxu0 %v322
        %1739 = vmatmul.mubr.f32.gmra.mrb[0].mxu0 %v321
        %v1740 = vpop.f32.mrb[0].mxu0
        %v1741 = vadd.f32 %v947, %v1740
        %v1742 = vpop.f32.mrb[0].mxu0
        %v1743 = vadd.f32 %v951, %v1742
        %1744 = vmatprep.mubr.f32.mxu0 %v325
        %1745 = vmatmul.mubr.f32.gmra.mrb[0].mxu0 %v324
        %v1746 = vpop.f32.mrb[0].mxu0
        %v1747 = vadd.f32 %v947, %v1746
        %v1748 = vpop.f32.mrb[0].mxu0
        %v1749 = vadd.f32 %v951, %v1748
        %1750 = vmatprep.mubr.f32.mxu0 %v328
        %1751 = vmatmul.mubr.f32.gmra.mrb[0].mxu0 %v327
        %v1752 = vpop.f32.mrb[0].mxu0
        %v1753 = vadd.f32 %v947, %v1752
        %v1754 = vpop.f32.mrb[0].mxu0
        %v1755 = vadd.f32 %v951, %v1754
        %1756 = vmatprep.mubr.f32.mxu0 %v331
        %1757 = vmatmul.mubr.f32.gmra.mrb[0].mxu0 %v330
        %v1758 = vpop.f32.mrb[0].mxu0
        %v1759 = vadd.f32 %v947, %v1758
        %v1760 = vpop.f32.mrb[0].mxu0
        %v1761 = vadd.f32 %v951, %v1760
        %1762 = vmatprep.mubr.f32.mxu0 %v334
        %1763 = vmatmul.mubr.f32.gmra.mrb[0].mxu0 %v333
        %v1764 = vpop.f32.mrb[0].mxu0
        %v1765 = vadd.f32 %v947, %v1764
        %v1766 = vpop.f32.mrb[0].mxu0
        %v1767 = vadd.f32 %v951, %v1766
        %1768 = vmatprep.mubr.f32.mxu0 %v337
        %1769 = vmatmul.mubr.f32.gmra.mrb[0].mxu0 %v336
        %v1770 = vpop.f32.mrb[0].mxu0
        %v1771 = vadd.f32 %v947, %v1770
        %v1772 = vpop.f32.mrb[0].mxu0
        %v1773 = vadd.f32 %v951, %v1772
        %1774 = vmatprep.mubr.f32.mxu0 %v340
        %1775 = vmatmul.mubr.f32.gmra.mrb[0].mxu0 %v339
        %v1776 = vpop.f32.mrb[0].mxu0
        %v1777 = vadd.f32 %v947, %v1776
        %v1778 = vpop.f32.mrb[0].mxu0
        %v1779 = vadd.f32 %v951, %v1778
        %1780 = vmatprep.mubr.f32.mxu0 %v343
        %1781 = vmatmul.mubr.f32.gmra.mrb[0].mxu0 %v342
        %v1782 = vpop.f32.mrb[0].mxu0
        %v1783 = vadd.f32 %v947, %v1782
        %v1784 = vpop.f32.mrb[0].mxu0
        %v1785 = vadd.f32 %v951, %v1784
        %1786 = vmatprep.mubr.f32.mxu0 %v346
        %1787 = vmatmul.mubr.f32.gmra.mrb[0].mxu0 %v345
        %v1788 = vpop.f32.mrb[0].mxu0
        %v1789 = vadd.f32 %v947, %v1788
        %v1790 = vpop.f32.mrb[0].mxu0
        %v1791 = vadd.f32 %v951, %v1790
        %1792 = vdwg.mxu0
        %1793 = vmatprep.subr.mxu0 %v737
        %1794 = vmatpush1.msra.mxu0 %v736
        %1795 = vmatprep.subr.mxu0 %v749
        %1796 = vmatpush1.msra.mxu0 %v748
        %1797 = vmatprep.subr.mxu0 %v761
        %1798 = vmatpush1.msra.mxu0 %v760
        %1799 = vmatprep.subr.mxu0 %v773
        %1800 = vmatpush1.msra.mxu0 %v772
        %1801 = vmatprep.subr.mxu0 %v785
        %1802 = vmatpush1.msra.mxu0 %v784
        %1803 = vmatprep.subr.mxu0 %v797
        %1804 = vmatpush1.msra.mxu0 %v796
        %1805 = vmatprep.subr.mxu0 %v809
        %1806 = vmatpush1.msra.mxu0 %v808
        %1807 = vmatprep.subr.mxu0 %v821
        %1808 = vmatpush1.msra.mxu0 %v820
        %1809 = vmatprep.subr.mxu0 %v833
        %1810 = vmatpush1.msra.mxu0 %v832
        %1811 = vmatprep.subr.mxu0 %v845
        %1812 = vmatpush1.msra.mxu0 %v844
        %1813 = vmatprep.subr.mxu0 %v857
        %1814 = vmatpush1.msra.mxu0 %v856
        %1815 = vmatprep.subr.mxu0 %v869
        %1816 = vmatpush1.msra.mxu0 %v868
        %1817 = vmatprep.subr.mxu0 %v881
        %1818 = vmatpush1.msra.mxu0 %v880
        %1819 = vmatprep.subr.mxu0 %v893
        %1820 = vmatpush1.msra.mxu0 %v892
        %1821 = vmatprep.subr.mxu0 %v905
        %1822 = vmatpush1.msra.mxu0 %v904
        %1823 = vmatprep.subr.mxu0 %v917
        %1824 = vmatpush1.msra.mxu0 %v916
        %1825 = vmatprep.subr.mxu0 0.0
        %1826 = vmatpush1.msra.mxu0 0.0
        %1827 = vmatprep.subr.mxu0 0.0
        %1828 = vmatpush1.msra.mxu0 0.0
        %1829 = vmatprep.subr.mxu0 0.0
        %1830 = vmatpush1.msra.mxu0 0.0
        %1831 = vmatprep.subr.mxu0 0.0
        %1832 = vmatpush1.msra.mxu0 0.0
        %1833 = vmatprep.subr.mxu0 0.0
        %1834 = vmatpush1.msra.mxu0 0.0
        %1835 = vmatprep.subr.mxu0 0.0
        %1836 = vmatpush1.msra.mxu0 0.0
        %1837 = vmatprep.subr.mxu0 0.0
        %1838 = vmatpush1.msra.mxu0 0.0
        %1839 = vmatprep.subr.mxu0 0.0
        %1840 = vmatpush1.msra.mxu0 0.0
        %1841 = vmatprep.subr.mxu0 0.0
        %1842 = vmatpush1.msra.mxu0 0.0
        %1843 = vmatprep.subr.mxu0 0.0
        %1844 = vmatpush1.msra.mxu0 0.0
        %1845 = vmatprep.subr.mxu0 0.0
        %1846 = vmatpush1.msra.mxu0 0.0
        %1847 = vmatprep.subr.mxu0 0.0
        %1848 = vmatpush1.msra.mxu0 0.0
        %1849 = vmatprep.subr.mxu0 0.0
        %1850 = vmatpush1.msra.mxu0 0.0
        %1851 = vmatprep.subr.mxu0 0.0
        %1852 = vmatpush1.msra.mxu0 0.0
        %1853 = vmatprep.subr.mxu0 0.0
        %1854 = vmatpush1.msra.mxu0 0.0
        %1855 = vmatprep.subr.mxu0 0.0
        %1856 = vmatpush1.msra.mxu0 0.0
        %1857 = vmatprep.mubr.f32.mxu0 0.0
        %1858 = vmatmul.mubr.f32.gmra.mrb[0].mxu0 %v302
        %v1859 = vpop.f32.mrb[0].mxu0
        %v1860 = vadd.f32 %v1699, %v1859
        %v1861 = vpop.f32.mrb[0].mxu0
        %v1862 = vadd.f32 %v1701, %v1861
        %1863 = vmatprep.mubr.f32.mxu0 0.0
        %1864 = vmatmul.mubr.f32.gmra.mrb[0].mxu0 %v305
        %v1865 = vpop.f32.mrb[0].mxu0
        %v1866 = vadd.f32 %v1705, %v1865
        %v1867 = vpop.f32.mrb[0].mxu0
        %v1868 = vadd.f32 %v1707, %v1867
        %1869 = vmatprep.mubr.f32.mxu0 0.0
        %1870 = vmatmul.mubr.f32.gmra.mrb[0].mxu0 %v308
        %v1871 = vpop.f32.mrb[0].mxu0
        %v1872 = vadd.f32 %v1711, %v1871
        %v1873 = vpop.f32.mrb[0].mxu0
        %v1874 = vadd.f32 %v1713, %v1873
        %1875 = vmatprep.mubr.f32.mxu0 0.0
        %1876 = vmatmul.mubr.f32.gmra.mrb[0].mxu0 %v311
        %v1877 = vpop.f32.mrb[0].mxu0
        %v1878 = vadd.f32 %v1717, %v1877
        %v1879 = vpop.f32.mrb[0].mxu0
        %v1880 = vadd.f32 %v1719, %v1879
        %1881 = vmatprep.mubr.f32.mxu0 0.0
        %1882 = vmatmul.mubr.f32.gmra.mrb[0].mxu0 %v314
        %v1883 = vpop.f32.mrb[0].mxu0
        %v1884 = vadd.f32 %v1723, %v1883
        %v1885 = vpop.f32.mrb[0].mxu0
        %v1886 = vadd.f32 %v1725, %v1885
        %1887 = vmatprep.mubr.f32.mxu0 0.0
        %1888 = vmatmul.mubr.f32.gmra.mrb[0].mxu0 %v317
        %v1889 = vpop.f32.mrb[0].mxu0
        %v1890 = vadd.f32 %v1729, %v1889
        %v1891 = vpop.f32.mrb[0].mxu0
        %v1892 = vadd.f32 %v1731, %v1891
        %1893 = vmatprep.mubr.f32.mxu0 0.0
        %1894 = vmatmul.mubr.f32.gmra.mrb[0].mxu0 %v320
        %v1895 = vpop.f32.mrb[0].mxu0
        %v1896 = vadd.f32 %v1735, %v1895
        %v1897 = vpop.f32.mrb[0].mxu0
        %v1898 = vadd.f32 %v1737, %v1897
        %1899 = vmatprep.mubr.f32.mxu0 0.0
        %1900 = vmatmul.mubr.f32.gmra.mrb[0].mxu0 %v323
        %v1901 = vpop.f32.mrb[0].mxu0
        %v1902 = vadd.f32 %v1741, %v1901
        %v1903 = vpop.f32.mrb[0].mxu0
        %v1904 = vadd.f32 %v1743, %v1903
        %1905 = vmatprep.mubr.f32.mxu0 0.0
        %1906 = vmatmul.mubr.f32.gmra.mrb[0].mxu0 %v326
        %v1907 = vpop.f32.mrb[0].mxu0
        %v1908 = vadd.f32 %v1747, %v1907
        %v1909 = vpop.f32.mrb[0].mxu0
        %v1910 = vadd.f32 %v1749, %v1909
        %1911 = vmatprep.mubr.f32.mxu0 0.0
        %1912 = vmatmul.mubr.f32.gmra.mrb[0].mxu0 %v329
        %v1913 = vpop.f32.mrb[0].mxu0
        %v1914 = vadd.f32 %v1753, %v1913
        %v1915 = vpop.f32.mrb[0].mxu0
        %v1916 = vadd.f32 %v1755, %v1915
        %1917 = vmatprep.mubr.f32.mxu0 0.0
        %1918 = vmatmul.mubr.f32.gmra.mrb[0].mxu0 %v332
        %v1919 = vpop.f32.mrb[0].mxu0
        %v1920 = vadd.f32 %v1759, %v1919
        %v1921 = vpop.f32.mrb[0].mxu0
        %v1922 = vadd.f32 %v1761, %v1921
        %1923 = vmatprep.mubr.f32.mxu0 0.0
        %1924 = vmatmul.mubr.f32.gmra.mrb[0].mxu0 %v335
        %v1925 = vpop.f32.mrb[0].mxu0
        %v1926 = vadd.f32 %v1765, %v1925
        %v1927 = vpop.f32.mrb[0].mxu0
        %v1928 = vadd.f32 %v1767, %v1927
        %1929 = vmatprep.mubr.f32.mxu0 0.0
        %1930 = vmatmul.mubr.f32.gmra.mrb[0].mxu0 %v338
        %v1931 = vpop.f32.mrb[0].mxu0
        %v1932 = vadd.f32 %v1771, %v1931
        %v1933 = vpop.f32.mrb[0].mxu0
        %v1934 = vadd.f32 %v1773, %v1933
        %1935 = vmatprep.mubr.f32.mxu0 0.0
        %1936 = vmatmul.mubr.f32.gmra.mrb[0].mxu0 %v341
        %v1937 = vpop.f32.mrb[0].mxu0
        %v1938 = vadd.f32 %v1777, %v1937
        %v1939 = vpop.f32.mrb[0].mxu0
        %v1940 = vadd.f32 %v1779, %v1939
        %1941 = vmatprep.mubr.f32.mxu0 0.0
        %1942 = vmatmul.mubr.f32.gmra.mrb[0].mxu0 %v344
        %v1943 = vpop.f32.mrb[0].mxu0
        %v1944 = vadd.f32 %v1783, %v1943
        %v1945 = vpop.f32.mrb[0].mxu0
        %v1946 = vadd.f32 %v1785, %v1945
        %1947 = vmatprep.mubr.f32.mxu0 0.0
        %1948 = vmatmul.mubr.f32.gmra.mrb[0].mxu0 %v347
        %v1949 = vpop.f32.mrb[0].mxu0
        %v1950 = vadd.f32 %v1789, %v1949
        %v1951 = vpop.f32.mrb[0].mxu0
        %v1952 = vadd.f32 %v1791, %v1951
        %1953 = vdwg.mxu0
        %1954 = vmatprep.subr.mxu0 %v355
        %1955 = vmatpush1.msra.mxu0 %v354
        %1956 = vmatprep.subr.mxu0 %v367
        %1957 = vmatpush1.msra.mxu0 %v366
        %1958 = vmatprep.subr.mxu0 %v379
        %1959 = vmatpush1.msra.mxu0 %v378
        %1960 = vmatprep.subr.mxu0 %v391
        %1961 = vmatpush1.msra.mxu0 %v390
        %1962 = vmatprep.subr.mxu0 %v403
        %1963 = vmatpush1.msra.mxu0 %v402
        %1964 = vmatprep.subr.mxu0 %v415
        %1965 = vmatpush1.msra.mxu0 %v414
        %1966 = vmatprep.subr.mxu0 %v427
        %1967 = vmatpush1.msra.mxu0 %v426
        %1968 = vmatprep.subr.mxu0 %v439
        %1969 = vmatpush1.msra.mxu0 %v438
        %1970 = vmatprep.subr.mxu0 %v451
        %1971 = vmatpush1.msra.mxu0 %v450
        %1972 = vmatprep.subr.mxu0 %v463
        %1973 = vmatpush1.msra.mxu0 %v462
        %1974 = vmatprep.subr.mxu0 %v475
        %1975 = vmatpush1.msra.mxu0 %v474
        %1976 = vmatprep.subr.mxu0 %v487
        %1977 = vmatpush1.msra.mxu0 %v486
        %1978 = vmatprep.subr.mxu0 %v499
        %1979 = vmatpush1.msra.mxu0 %v498
        %1980 = vmatprep.subr.mxu0 %v511
        %1981 = vmatpush1.msra.mxu0 %v510
        %1982 = vmatprep.subr.mxu0 %v523
        %1983 = vmatpush1.msra.mxu0 %v522
        %1984 = vmatprep.subr.mxu0 %v535
        %1985 = vmatpush1.msra.mxu0 %v534
        %1986 = vmatprep.subr.mxu0 %v547
        %1987 = vmatpush1.msra.mxu0 %v546
        %1988 = vmatprep.subr.mxu0 %v559
        %1989 = vmatpush1.msra.mxu0 %v558
        %1990 = vmatprep.subr.mxu0 %v571
        %1991 = vmatpush1.msra.mxu0 %v570
        %1992 = vmatprep.subr.mxu0 %v583
        %1993 = vmatpush1.msra.mxu0 %v582
        %1994 = vmatprep.subr.mxu0 %v595
        %1995 = vmatpush1.msra.mxu0 %v594
        %1996 = vmatprep.subr.mxu0 %v607
        %1997 = vmatpush1.msra.mxu0 %v606
        %1998 = vmatprep.subr.mxu0 %v619
        %1999 = vmatpush1.msra.mxu0 %v618
        %2000 = vmatprep.subr.mxu0 %v631
        %2001 = vmatpush1.msra.mxu0 %v630
        %2002 = vmatprep.subr.mxu0 %v643
        %2003 = vmatpush1.msra.mxu0 %v642
        %2004 = vmatprep.subr.mxu0 %v655
        %2005 = vmatpush1.msra.mxu0 %v654
        %2006 = vmatprep.subr.mxu0 %v667
        %2007 = vmatpush1.msra.mxu0 %v666
        %2008 = vmatprep.subr.mxu0 %v679
        %2009 = vmatpush1.msra.mxu0 %v678
        %2010 = vmatprep.subr.mxu0 %v691
        %2011 = vmatpush1.msra.mxu0 %v690
        %2012 = vmatprep.subr.mxu0 %v703
        %2013 = vmatpush1.msra.mxu0 %v702
        %2014 = vmatprep.subr.mxu0 %v715
        %2015 = vmatpush1.msra.mxu0 %v714
        %2016 = vmatprep.subr.mxu0 %v727
        %2017 = vmatpush1.msra.mxu0 %v726
        %2018 = vmatprep.mubr.f32.mxu0 %v301
        %2019 = vmatmul.mubr.f32.gmra.mrb[0].mxu0 %v300
        %v2020 = vpop.f32.mrb[0].mxu0
        %v2021 = vadd.f32 %v955, %v2020
        %v2022 = vpop.f32.mrb[0].mxu0
        %v2023 = vadd.f32 %v959, %v2022
        %2024 = vmatprep.mubr.f32.mxu0 %v304
        %2025 = vmatmul.mubr.f32.gmra.mrb[0].mxu0 %v303
        %v2026 = vpop.f32.mrb[0].mxu0
        %v2027 = vadd.f32 %v955, %v2026
        %v2028 = vpop.f32.mrb[0].mxu0
        %v2029 = vadd.f32 %v959, %v2028
        %2030 = vmatprep.mubr.f32.mxu0 %v307
        %2031 = vmatmul.mubr.f32.gmra.mrb[0].mxu0 %v306
        %v2032 = vpop.f32.mrb[0].mxu0
        %v2033 = vadd.f32 %v955, %v2032
        %v2034 = vpop.f32.mrb[0].mxu0
        %v2035 = vadd.f32 %v959, %v2034
        %2036 = vmatprep.mubr.f32.mxu0 %v310
        %2037 = vmatmul.mubr.f32.gmra.mrb[0].mxu0 %v309
        %v2038 = vpop.f32.mrb[0].mxu0
        %v2039 = vadd.f32 %v955, %v2038
        %v2040 = vpop.f32.mrb[0].mxu0
        %v2041 = vadd.f32 %v959, %v2040
        %2042 = vmatprep.mubr.f32.mxu0 %v313
        %2043 = vmatmul.mubr.f32.gmra.mrb[0].mxu0 %v312
        %v2044 = vpop.f32.mrb[0].mxu0
        %v2045 = vadd.f32 %v955, %v2044
        %v2046 = vpop.f32.mrb[0].mxu0
        %v2047 = vadd.f32 %v959, %v2046
        %2048 = vmatprep.mubr.f32.mxu0 %v316
        %2049 = vmatmul.mubr.f32.gmra.mrb[0].mxu0 %v315
        %v2050 = vpop.f32.mrb[0].mxu0
        %v2051 = vadd.f32 %v955, %v2050
        %v2052 = vpop.f32.mrb[0].mxu0
        %v2053 = vadd.f32 %v959, %v2052
        %2054 = vmatprep.mubr.f32.mxu0 %v319
        %2055 = vmatmul.mubr.f32.gmra.mrb[0].mxu0 %v318
        %v2056 = vpop.f32.mrb[0].mxu0
        %v2057 = vadd.f32 %v955, %v2056
        %v2058 = vpop.f32.mrb[0].mxu0
        %v2059 = vadd.f32 %v959, %v2058
        %2060 = vmatprep.mubr.f32.mxu0 %v322
        %2061 = vmatmul.mubr.f32.gmra.mrb[0].mxu0 %v321
        %v2062 = vpop.f32.mrb[0].mxu0
        %v2063 = vadd.f32 %v955, %v2062
        %v2064 = vpop.f32.mrb[0].mxu0
        %v2065 = vadd.f32 %v959, %v2064
        %2066 = vmatprep.mubr.f32.mxu0 %v325
        %2067 = vmatmul.mubr.f32.gmra.mrb[0].mxu0 %v324
        %v2068 = vpop.f32.mrb[0].mxu0
        %v2069 = vadd.f32 %v955, %v2068
        %v2070 = vpop.f32.mrb[0].mxu0
        %v2071 = vadd.f32 %v959, %v2070
        %2072 = vmatprep.mubr.f32.mxu0 %v328
        %2073 = vmatmul.mubr.f32.gmra.mrb[0].mxu0 %v327
        %v2074 = vpop.f32.mrb[0].mxu0
        %v2075 = vadd.f32 %v955, %v2074
        %v2076 = vpop.f32.mrb[0].mxu0
        %v2077 = vadd.f32 %v959, %v2076
        %2078 = vmatprep.mubr.f32.mxu0 %v331
        %2079 = vmatmul.mubr.f32.gmra.mrb[0].mxu0 %v330
        %v2080 = vpop.f32.mrb[0].mxu0
        %v2081 = vadd.f32 %v955, %v2080
        %v2082 = vpop.f32.mrb[0].mxu0
        %v2083 = vadd.f32 %v959, %v2082
        %2084 = vmatprep.mubr.f32.mxu0 %v334
        %2085 = vmatmul.mubr.f32.gmra.mrb[0].mxu0 %v333
        %v2086 = vpop.f32.mrb[0].mxu0
        %v2087 = vadd.f32 %v955, %v2086
        %v2088 = vpop.f32.mrb[0].mxu0
        %v2089 = vadd.f32 %v959, %v2088
        %2090 = vmatprep.mubr.f32.mxu0 %v337
        %2091 = vmatmul.mubr.f32.gmra.mrb[0].mxu0 %v336
        %v2092 = vpop.f32.mrb[0].mxu0
        %v2093 = vadd.f32 %v955, %v2092
        %v2094 = vpop.f32.mrb[0].mxu0
        %v2095 = vadd.f32 %v959, %v2094
        %2096 = vmatprep.mubr.f32.mxu0 %v340
        %2097 = vmatmul.mubr.f32.gmra.mrb[0].mxu0 %v339
        %v2098 = vpop.f32.mrb[0].mxu0
        %v2099 = vadd.f32 %v955, %v2098
        %v2100 = vpop.f32.mrb[0].mxu0
        %v2101 = vadd.f32 %v959, %v2100
        %2102 = vmatprep.mubr.f32.mxu0 %v343
        %2103 = vmatmul.mubr.f32.gmra.mrb[0].mxu0 %v342
        %v2104 = vpop.f32.mrb[0].mxu0
        %v2105 = vadd.f32 %v955, %v2104
        %v2106 = vpop.f32.mrb[0].mxu0
        %v2107 = vadd.f32 %v959, %v2106
        %2108 = vmatprep.mubr.f32.mxu0 %v346
        %2109 = vmatmul.mubr.f32.gmra.mrb[0].mxu0 %v345
        %v2110 = vpop.f32.mrb[0].mxu0
        %v2111 = vadd.f32 %v955, %v2110
        %v2112 = vpop.f32.mrb[0].mxu0
        %v2113 = vadd.f32 %v959, %v2112
        %2114 = vdwg.mxu0
        %2115 = vmatprep.subr.mxu0 %v739
        %2116 = vmatpush1.msra.mxu0 %v738
        %2117 = vmatprep.subr.mxu0 %v751
        %2118 = vmatpush1.msra.mxu0 %v750
        %2119 = vmatprep.subr.mxu0 %v763
        %2120 = vmatpush1.msra.mxu0 %v762
        %2121 = vmatprep.subr.mxu0 %v775
        %2122 = vmatpush1.msra.mxu0 %v774
        %2123 = vmatprep.subr.mxu0 %v787
        %2124 = vmatpush1.msra.mxu0 %v786
        %2125 = vmatprep.subr.mxu0 %v799
        %2126 = vmatpush1.msra.mxu0 %v798
        %2127 = vmatprep.subr.mxu0 %v811
        %2128 = vmatpush1.msra.mxu0 %v810
        %2129 = vmatprep.subr.mxu0 %v823
        %2130 = vmatpush1.msra.mxu0 %v822
        %2131 = vmatprep.subr.mxu0 %v835
        %2132 = vmatpush1.msra.mxu0 %v834
        %2133 = vmatprep.subr.mxu0 %v847
        %2134 = vmatpush1.msra.mxu0 %v846
        %2135 = vmatprep.subr.mxu0 %v859
        %2136 = vmatpush1.msra.mxu0 %v858
        %2137 = vmatprep.subr.mxu0 %v871
        %2138 = vmatpush1.msra.mxu0 %v870
        %2139 = vmatprep.subr.mxu0 %v883
        %2140 = vmatpush1.msra.mxu0 %v882
        %2141 = vmatprep.subr.mxu0 %v895
        %2142 = vmatpush1.msra.mxu0 %v894
        %2143 = vmatprep.subr.mxu0 %v907
        %2144 = vmatpush1.msra.mxu0 %v906
        %2145 = vmatprep.subr.mxu0 %v919
        %2146 = vmatpush1.msra.mxu0 %v918
        %2147 = vmatprep.subr.mxu0 0.0
        %2148 = vmatpush1.msra.mxu0 0.0
        %2149 = vmatprep.subr.mxu0 0.0
        %2150 = vmatpush1.msra.mxu0 0.0
        %2151 = vmatprep.subr.mxu0 0.0
        %2152 = vmatpush1.msra.mxu0 0.0
        %2153 = vmatprep.subr.mxu0 0.0
        %2154 = vmatpush1.msra.mxu0 0.0
        %2155 = vmatprep.subr.mxu0 0.0
        %2156 = vmatpush1.msra.mxu0 0.0
        %2157 = vmatprep.subr.mxu0 0.0
        %2158 = vmatpush1.msra.mxu0 0.0
        %2159 = vmatprep.subr.mxu0 0.0
        %2160 = vmatpush1.msra.mxu0 0.0
        %2161 = vmatprep.subr.mxu0 0.0
        %2162 = vmatpush1.msra.mxu0 0.0
        %2163 = vmatprep.subr.mxu0 0.0
        %2164 = vmatpush1.msra.mxu0 0.0
        %2165 = vmatprep.subr.mxu0 0.0
        %2166 = vmatpush1.msra.mxu0 0.0
        %2167 = vmatprep.subr.mxu0 0.0
        %2168 = vmatpush1.msra.mxu0 0.0
        %2169 = vmatprep.subr.mxu0 0.0
        %2170 = vmatpush1.msra.mxu0 0.0
        %2171 = vmatprep.subr.mxu0 0.0
        %2172 = vmatpush1.msra.mxu0 0.0
        %2173 = vmatprep.subr.mxu0 0.0
        %2174 = vmatpush1.msra.mxu0 0.0
        %2175 = vmatprep.subr.mxu0 0.0
        %2176 = vmatpush1.msra.mxu0 0.0
        %2177 = vmatprep.subr.mxu0 0.0
        %2178 = vmatpush1.msra.mxu0 0.0
        %2179 = vmatprep.mubr.f32.mxu0 0.0
        %2180 = vmatmul.mubr.f32.gmra.mrb[0].mxu0 %v302
        %v2181 = vpop.f32.mrb[0].mxu0
        %v2182 = vadd.f32 %v2021, %v2181
        %v2183 = vpop.f32.mrb[0].mxu0
        %v2184 = vadd.f32 %v2023, %v2183
        %2185 = vmatprep.mubr.f32.mxu0 0.0
        %2186 = vmatmul.mubr.f32.gmra.mrb[0].mxu0 %v305
        %v2187 = vpop.f32.mrb[0].mxu0
        %v2188 = vadd.f32 %v2027, %v2187
        %v2189 = vpop.f32.mrb[0].mxu0
        %v2190 = vadd.f32 %v2029, %v2189
        %2191 = vmatprep.mubr.f32.mxu0 0.0
        %2192 = vmatmul.mubr.f32.gmra.mrb[0].mxu0 %v308
        %v2193 = vpop.f32.mrb[0].mxu0
        %v2194 = vadd.f32 %v2033, %v2193
        %v2195 = vpop.f32.mrb[0].mxu0
        %v2196 = vadd.f32 %v2035, %v2195
        %2197 = vmatprep.mubr.f32.mxu0 0.0
        %2198 = vmatmul.mubr.f32.gmra.mrb[0].mxu0 %v311
        %v2199 = vpop.f32.mrb[0].mxu0
        %v2200 = vadd.f32 %v2039, %v2199
        %v2201 = vpop.f32.mrb[0].mxu0
        %v2202 = vadd.f32 %v2041, %v2201
        %2203 = vmatprep.mubr.f32.mxu0 0.0
        %2204 = vmatmul.mubr.f32.gmra.mrb[0].mxu0 %v314
        %v2205 = vpop.f32.mrb[0].mxu0
        %v2206 = vadd.f32 %v2045, %v2205
        %v2207 = vpop.f32.mrb[0].mxu0
        %v2208 = vadd.f32 %v2047, %v2207
        %2209 = vmatprep.mubr.f32.mxu0 0.0
        %2210 = vmatmul.mubr.f32.gmra.mrb[0].mxu0 %v317
        %v2211 = vpop.f32.mrb[0].mxu0
        %v2212 = vadd.f32 %v2051, %v2211
        %v2213 = vpop.f32.mrb[0].mxu0
        %v2214 = vadd.f32 %v2053, %v2213
        %2215 = vmatprep.mubr.f32.mxu0 0.0
        %2216 = vmatmul.mubr.f32.gmra.mrb[0].mxu0 %v320
        %v2217 = vpop.f32.mrb[0].mxu0
        %v2218 = vadd.f32 %v2057, %v2217
        %v2219 = vpop.f32.mrb[0].mxu0
        %v2220 = vadd.f32 %v2059, %v2219
        %2221 = vmatprep.mubr.f32.mxu0 0.0
        %2222 = vmatmul.mubr.f32.gmra.mrb[0].mxu0 %v323
        %v2223 = vpop.f32.mrb[0].mxu0
        %v2224 = vadd.f32 %v2063, %v2223
        %v2225 = vpop.f32.mrb[0].mxu0
        %v2226 = vadd.f32 %v2065, %v2225
        %2227 = vmatprep.mubr.f32.mxu0 0.0
        %2228 = vmatmul.mubr.f32.gmra.mrb[0].mxu0 %v326
        %v2229 = vpop.f32.mrb[0].mxu0
        %v2230 = vadd.f32 %v2069, %v2229
        %v2231 = vpop.f32.mrb[0].mxu0
        %v2232 = vadd.f32 %v2071, %v2231
        %2233 = vmatprep.mubr.f32.mxu0 0.0
        %2234 = vmatmul.mubr.f32.gmra.mrb[0].mxu0 %v329
        %v2235 = vpop.f32.mrb[0].mxu0
        %v2236 = vadd.f32 %v2075, %v2235
        %v2237 = vpop.f32.mrb[0].mxu0
        %v2238 = vadd.f32 %v2077, %v2237
        %2239 = vmatprep.mubr.f32.mxu0 0.0
        %2240 = vmatmul.mubr.f32.gmra.mrb[0].mxu0 %v332
        %v2241 = vpop.f32.mrb[0].mxu0
        %v2242 = vadd.f32 %v2081, %v2241
        %v2243 = vpop.f32.mrb[0].mxu0
        %v2244 = vadd.f32 %v2083, %v2243
        %2245 = vmatprep.mubr.f32.mxu0 0.0
        %2246 = vmatmul.mubr.f32.gmra.mrb[0].mxu0 %v335
        %v2247 = vpop.f32.mrb[0].mxu0
        %v2248 = vadd.f32 %v2087, %v2247
        %v2249 = vpop.f32.mrb[0].mxu0
        %v2250 = vadd.f32 %v2089, %v2249
        %2251 = vmatprep.mubr.f32.mxu0 0.0
        %2252 = vmatmul.mubr.f32.gmra.mrb[0].mxu0 %v338
        %v2253 = vpop.f32.mrb[0].mxu0
        %v2254 = vadd.f32 %v2093, %v2253
        %v2255 = vpop.f32.mrb[0].mxu0
        %v2256 = vadd.f32 %v2095, %v2255
        %2257 = vmatprep.mubr.f32.mxu0 0.0
        %2258 = vmatmul.mubr.f32.gmra.mrb[0].mxu0 %v341
        %v2259 = vpop.f32.mrb[0].mxu0
        %v2260 = vadd.f32 %v2099, %v2259
        %v2261 = vpop.f32.mrb[0].mxu0
        %v2262 = vadd.f32 %v2101, %v2261
        %2263 = vmatprep.mubr.f32.mxu0 0.0
        %2264 = vmatmul.mubr.f32.gmra.mrb[0].mxu0 %v344
        %v2265 = vpop.f32.mrb[0].mxu0
        %v2266 = vadd.f32 %v2105, %v2265
        %v2267 = vpop.f32.mrb[0].mxu0
        %v2268 = vadd.f32 %v2107, %v2267
        %2269 = vmatprep.mubr.f32.mxu0 0.0
        %2270 = vmatmul.mubr.f32.gmra.mrb[0].mxu0 %v347
        %v2271 = vpop.f32.mrb[0].mxu0
        %v2272 = vadd.f32 %v2111, %v2271
        %v2273 = vpop.f32.mrb[0].mxu0
        %v2274 = vadd.f32 %v2113, %v2273
        %2275 = vdwg.mxu0
        %2276 = vmatprep.subr.mxu0 %v357
        %2277 = vmatpush1.msra.mxu0 %v356
        %2278 = vmatprep.subr.mxu0 %v369
        %2279 = vmatpush1.msra.mxu0 %v368
        %2280 = vmatprep.subr.mxu0 %v381
        %2281 = vmatpush1.msra.mxu0 %v380
        %2282 = vmatprep.subr.mxu0 %v393
        %2283 = vmatpush1.msra.mxu0 %v392
        %2284 = vmatprep.subr.mxu0 %v405
        %2285 = vmatpush1.msra.mxu0 %v404
        %2286 = vmatprep.subr.mxu0 %v417
        %2287 = vmatpush1.msra.mxu0 %v416
        %2288 = vmatprep.subr.mxu0 %v429
        %2289 = vmatpush1.msra.mxu0 %v428
        %2290 = vmatprep.subr.mxu0 %v441
        %2291 = vmatpush1.msra.mxu0 %v440
        %2292 = vmatprep.subr.mxu0 %v453
        %2293 = vmatpush1.msra.mxu0 %v452
        %2294 = vmatprep.subr.mxu0 %v465
        %2295 = vmatpush1.msra.mxu0 %v464
        %2296 = vmatprep.subr.mxu0 %v477
        %2297 = vmatpush1.msra.mxu0 %v476
        %2298 = vmatprep.subr.mxu0 %v489
        %2299 = vmatpush1.msra.mxu0 %v488
        %2300 = vmatprep.subr.mxu0 %v501
        %2301 = vmatpush1.msra.mxu0 %v500
        %2302 = vmatprep.subr.mxu0 %v513
        %2303 = vmatpush1.msra.mxu0 %v512
        %2304 = vmatprep.subr.mxu0 %v525
        %2305 = vmatpush1.msra.mxu0 %v524
        %2306 = vmatprep.subr.mxu0 %v537
        %2307 = vmatpush1.msra.mxu0 %v536
        %2308 = vmatprep.subr.mxu0 %v549
        %2309 = vmatpush1.msra.mxu0 %v548
        %2310 = vmatprep.subr.mxu0 %v561
        %2311 = vmatpush1.msra.mxu0 %v560
        %2312 = vmatprep.subr.mxu0 %v573
        %2313 = vmatpush1.msra.mxu0 %v572
        %2314 = vmatprep.subr.mxu0 %v585
        %2315 = vmatpush1.msra.mxu0 %v584
        %2316 = vmatprep.subr.mxu0 %v597
        %2317 = vmatpush1.msra.mxu0 %v596
        %2318 = vmatprep.subr.mxu0 %v609
        %2319 = vmatpush1.msra.mxu0 %v608
        %2320 = vmatprep.subr.mxu0 %v621
        %2321 = vmatpush1.msra.mxu0 %v620
        %2322 = vmatprep.subr.mxu0 %v633
        %2323 = vmatpush1.msra.mxu0 %v632
        %2324 = vmatprep.subr.mxu0 %v645
        %2325 = vmatpush1.msra.mxu0 %v644
        %2326 = vmatprep.subr.mxu0 %v657
        %2327 = vmatpush1.msra.mxu0 %v656
        %2328 = vmatprep.subr.mxu0 %v669
        %2329 = vmatpush1.msra.mxu0 %v668
        %2330 = vmatprep.subr.mxu0 %v681
        %2331 = vmatpush1.msra.mxu0 %v680
        %2332 = vmatprep.subr.mxu0 %v693
        %2333 = vmatpush1.msra.mxu0 %v692
        %2334 = vmatprep.subr.mxu0 %v705
        %2335 = vmatpush1.msra.mxu0 %v704
        %2336 = vmatprep.subr.mxu0 %v717
        %2337 = vmatpush1.msra.mxu0 %v716
        %2338 = vmatprep.subr.mxu0 %v729
        %2339 = vmatpush1.msra.mxu0 %v728
        %2340 = vmatprep.mubr.f32.mxu0 %v301
        %2341 = vmatmul.mubr.f32.gmra.mrb[0].mxu0 %v300
        %v2342 = vpop.f32.mrb[0].mxu0
        %v2343 = vadd.f32 %v963, %v2342
        %v2344 = vpop.f32.mrb[0].mxu0
        %v2345 = vadd.f32 %v967, %v2344
        %2346 = vmatprep.mubr.f32.mxu0 %v304
        %2347 = vmatmul.mubr.f32.gmra.mrb[0].mxu0 %v303
        %v2348 = vpop.f32.mrb[0].mxu0
        %v2349 = vadd.f32 %v963, %v2348
        %v2350 = vpop.f32.mrb[0].mxu0
        %v2351 = vadd.f32 %v967, %v2350
        %2352 = vmatprep.mubr.f32.mxu0 %v307
        %2353 = vmatmul.mubr.f32.gmra.mrb[0].mxu0 %v306
        %v2354 = vpop.f32.mrb[0].mxu0
        %v2355 = vadd.f32 %v963, %v2354
        %v2356 = vpop.f32.mrb[0].mxu0
        %v2357 = vadd.f32 %v967, %v2356
        %2358 = vmatprep.mubr.f32.mxu0 %v310
        %2359 = vmatmul.mubr.f32.gmra.mrb[0].mxu0 %v309
        %v2360 = vpop.f32.mrb[0].mxu0
        %v2361 = vadd.f32 %v963, %v2360
        %v2362 = vpop.f32.mrb[0].mxu0
        %v2363 = vadd.f32 %v967, %v2362
        %2364 = vmatprep.mubr.f32.mxu0 %v313
        %2365 = vmatmul.mubr.f32.gmra.mrb[0].mxu0 %v312
        %v2366 = vpop.f32.mrb[0].mxu0
        %v2367 = vadd.f32 %v963, %v2366
        %v2368 = vpop.f32.mrb[0].mxu0
        %v2369 = vadd.f32 %v967, %v2368
        %2370 = vmatprep.mubr.f32.mxu0 %v316
        %2371 = vmatmul.mubr.f32.gmra.mrb[0].mxu0 %v315
        %v2372 = vpop.f32.mrb[0].mxu0
        %v2373 = vadd.f32 %v963, %v2372
        %v2374 = vpop.f32.mrb[0].mxu0
        %v2375 = vadd.f32 %v967, %v2374
        %2376 = vmatprep.mubr.f32.mxu0 %v319
        %2377 = vmatmul.mubr.f32.gmra.mrb[0].mxu0 %v318
        %v2378 = vpop.f32.mrb[0].mxu0
        %v2379 = vadd.f32 %v963, %v2378
        %v2380 = vpop.f32.mrb[0].mxu0
        %v2381 = vadd.f32 %v967, %v2380
        %2382 = vmatprep.mubr.f32.mxu0 %v322
        %2383 = vmatmul.mubr.f32.gmra.mrb[0].mxu0 %v321
        %v2384 = vpop.f32.mrb[0].mxu0
        %v2385 = vadd.f32 %v963, %v2384
        %v2386 = vpop.f32.mrb[0].mxu0
        %v2387 = vadd.f32 %v967, %v2386
        %2388 = vmatprep.mubr.f32.mxu0 %v325
        %2389 = vmatmul.mubr.f32.gmra.mrb[0].mxu0 %v324
        %v2390 = vpop.f32.mrb[0].mxu0
        %v2391 = vadd.f32 %v963, %v2390
        %v2392 = vpop.f32.mrb[0].mxu0
        %v2393 = vadd.f32 %v967, %v2392
        %2394 = vmatprep.mubr.f32.mxu0 %v328
        %2395 = vmatmul.mubr.f32.gmra.mrb[0].mxu0 %v327
        %v2396 = vpop.f32.mrb[0].mxu0
        %v2397 = vadd.f32 %v963, %v2396
        %v2398 = vpop.f32.mrb[0].mxu0
        %v2399 = vadd.f32 %v967, %v2398
        %2400 = vmatprep.mubr.f32.mxu0 %v331
        %2401 = vmatmul.mubr.f32.gmra.mrb[0].mxu0 %v330
        %v2402 = vpop.f32.mrb[0].mxu0
        %v2403 = vadd.f32 %v963, %v2402
        %v2404 = vpop.f32.mrb[0].mxu0
        %v2405 = vadd.f32 %v967, %v2404
        %2406 = vmatprep.mubr.f32.mxu0 %v334
        %2407 = vmatmul.mubr.f32.gmra.mrb[0].mxu0 %v333
        %v2408 = vpop.f32.mrb[0].mxu0
        %v2409 = vadd.f32 %v963, %v2408
        %v2410 = vpop.f32.mrb[0].mxu0
        %v2411 = vadd.f32 %v967, %v2410
        %2412 = vmatprep.mubr.f32.mxu0 %v337
        %2413 = vmatmul.mubr.f32.gmra.mrb[0].mxu0 %v336
        %v2414 = vpop.f32.mrb[0].mxu0
        %v2415 = vadd.f32 %v963, %v2414
        %v2416 = vpop.f32.mrb[0].mxu0
        %v2417 = vadd.f32 %v967, %v2416
        %2418 = vmatprep.mubr.f32.mxu0 %v340
        %2419 = vmatmul.mubr.f32.gmra.mrb[0].mxu0 %v339
        %v2420 = vpop.f32.mrb[0].mxu0
        %v2421 = vadd.f32 %v963, %v2420
        %v2422 = vpop.f32.mrb[0].mxu0
        %v2423 = vadd.f32 %v967, %v2422
        %2424 = vmatprep.mubr.f32.mxu0 %v343
        %2425 = vmatmul.mubr.f32.gmra.mrb[0].mxu0 %v342
        %v2426 = vpop.f32.mrb[0].mxu0
        %v2427 = vadd.f32 %v963, %v2426
        %v2428 = vpop.f32.mrb[0].mxu0
        %v2429 = vadd.f32 %v967, %v2428
        %2430 = vmatprep.mubr.f32.mxu0 %v346
        %2431 = vmatmul.mubr.f32.gmra.mrb[0].mxu0 %v345
        %v2432 = vpop.f32.mrb[0].mxu0
        %v2433 = vadd.f32 %v963, %v2432
        %v2434 = vpop.f32.mrb[0].mxu0
        %v2435 = vadd.f32 %v967, %v2434
        %2436 = vdwg.mxu0
        %2437 = vmatprep.subr.mxu0 %v741
        %2438 = vmatpush1.msra.mxu0 %v740
        %2439 = vmatprep.subr.mxu0 %v753
        %2440 = vmatpush1.msra.mxu0 %v752
        %2441 = vmatprep.subr.mxu0 %v765
        %2442 = vmatpush1.msra.mxu0 %v764
        %2443 = vmatprep.subr.mxu0 %v777
        %2444 = vmatpush1.msra.mxu0 %v776
        %2445 = vmatprep.subr.mxu0 %v789
        %2446 = vmatpush1.msra.mxu0 %v788
        %2447 = vmatprep.subr.mxu0 %v801
        %2448 = vmatpush1.msra.mxu0 %v800
        %2449 = vmatprep.subr.mxu0 %v813
        %2450 = vmatpush1.msra.mxu0 %v812
        %2451 = vmatprep.subr.mxu0 %v825
        %2452 = vmatpush1.msra.mxu0 %v824
        %2453 = vmatprep.subr.mxu0 %v837
        %2454 = vmatpush1.msra.mxu0 %v836
        %2455 = vmatprep.subr.mxu0 %v849
        %2456 = vmatpush1.msra.mxu0 %v848
        %2457 = vmatprep.subr.mxu0 %v861
        %2458 = vmatpush1.msra.mxu0 %v860
        %2459 = vmatprep.subr.mxu0 %v873
        %2460 = vmatpush1.msra.mxu0 %v872
        %2461 = vmatprep.subr.mxu0 %v885
        %2462 = vmatpush1.msra.mxu0 %v884
        %2463 = vmatprep.subr.mxu0 %v897
        %2464 = vmatpush1.msra.mxu0 %v896
        %2465 = vmatprep.subr.mxu0 %v909
        %2466 = vmatpush1.msra.mxu0 %v908
        %2467 = vmatprep.subr.mxu0 %v921
        %2468 = vmatpush1.msra.mxu0 %v920
        %2469 = vmatprep.subr.mxu0 0.0
        %2470 = vmatpush1.msra.mxu0 0.0
        %2471 = vmatprep.subr.mxu0 0.0
        %2472 = vmatpush1.msra.mxu0 0.0
        %2473 = vmatprep.subr.mxu0 0.0
        %2474 = vmatpush1.msra.mxu0 0.0
        %2475 = vmatprep.subr.mxu0 0.0
        %2476 = vmatpush1.msra.mxu0 0.0
        %2477 = vmatprep.subr.mxu0 0.0
        %2478 = vmatpush1.msra.mxu0 0.0
        %2479 = vmatprep.subr.mxu0 0.0
        %2480 = vmatpush1.msra.mxu0 0.0
        %2481 = vmatprep.subr.mxu0 0.0
        %2482 = vmatpush1.msra.mxu0 0.0
        %2483 = vmatprep.subr.mxu0 0.0
        %2484 = vmatpush1.msra.mxu0 0.0
        %2485 = vmatprep.subr.mxu0 0.0
        %2486 = vmatpush1.msra.mxu0 0.0
        %2487 = vmatprep.subr.mxu0 0.0
        %2488 = vmatpush1.msra.mxu0 0.0
        %2489 = vmatprep.subr.mxu0 0.0
        %2490 = vmatpush1.msra.mxu0 0.0
        %2491 = vmatprep.subr.mxu0 0.0
        %2492 = vmatpush1.msra.mxu0 0.0
        %2493 = vmatprep.subr.mxu0 0.0
        %2494 = vmatpush1.msra.mxu0 0.0
        %2495 = vmatprep.subr.mxu0 0.0
        %2496 = vmatpush1.msra.mxu0 0.0
        %2497 = vmatprep.subr.mxu0 0.0
        %2498 = vmatpush1.msra.mxu0 0.0
        %2499 = vmatprep.subr.mxu0 0.0
        %2500 = vmatpush1.msra.mxu0 0.0
        %2501 = vmatprep.mubr.f32.mxu0 0.0
        %2502 = vmatmul.mubr.f32.gmra.mrb[0].mxu0 %v302
        %v2503 = vpop.f32.mrb[0].mxu0
        %v2504 = vadd.f32 %v2343, %v2503
        %v2505 = vpop.f32.mrb[0].mxu0
        %v2506 = vadd.f32 %v2345, %v2505
        %2507 = vmatprep.mubr.f32.mxu0 0.0
        %2508 = vmatmul.mubr.f32.gmra.mrb[0].mxu0 %v305
        %v2509 = vpop.f32.mrb[0].mxu0
        %v2510 = vadd.f32 %v2349, %v2509
        %v2511 = vpop.f32.mrb[0].mxu0
        %v2512 = vadd.f32 %v2351, %v2511
        %2513 = vmatprep.mubr.f32.mxu0 0.0
        %2514 = vmatmul.mubr.f32.gmra.mrb[0].mxu0 %v308
        %v2515 = vpop.f32.mrb[0].mxu0
        %v2516 = vadd.f32 %v2355, %v2515
        %v2517 = vpop.f32.mrb[0].mxu0
        %v2518 = vadd.f32 %v2357, %v2517
        %2519 = vmatprep.mubr.f32.mxu0 0.0
        %2520 = vmatmul.mubr.f32.gmra.mrb[0].mxu0 %v311
        %v2521 = vpop.f32.mrb[0].mxu0
        %v2522 = vadd.f32 %v2361, %v2521
        %v2523 = vpop.f32.mrb[0].mxu0
        %v2524 = vadd.f32 %v2363, %v2523
        %2525 = vmatprep.mubr.f32.mxu0 0.0
        %2526 = vmatmul.mubr.f32.gmra.mrb[0].mxu0 %v314
        %v2527 = vpop.f32.mrb[0].mxu0
        %v2528 = vadd.f32 %v2367, %v2527
        %v2529 = vpop.f32.mrb[0].mxu0
        %v2530 = vadd.f32 %v2369, %v2529
        %2531 = vmatprep.mubr.f32.mxu0 0.0
        %2532 = vmatmul.mubr.f32.gmra.mrb[0].mxu0 %v317
        %v2533 = vpop.f32.mrb[0].mxu0
        %v2534 = vadd.f32 %v2373, %v2533
        %v2535 = vpop.f32.mrb[0].mxu0
        %v2536 = vadd.f32 %v2375, %v2535
        %2537 = vmatprep.mubr.f32.mxu0 0.0
        %2538 = vmatmul.mubr.f32.gmra.mrb[0].mxu0 %v320
        %v2539 = vpop.f32.mrb[0].mxu0
        %v2540 = vadd.f32 %v2379, %v2539
        %v2541 = vpop.f32.mrb[0].mxu0
        %v2542 = vadd.f32 %v2381, %v2541
        %2543 = vmatprep.mubr.f32.mxu0 0.0
        %2544 = vmatmul.mubr.f32.gmra.mrb[0].mxu0 %v323
        %v2545 = vpop.f32.mrb[0].mxu0
        %v2546 = vadd.f32 %v2385, %v2545
        %v2547 = vpop.f32.mrb[0].mxu0
        %v2548 = vadd.f32 %v2387, %v2547
        %2549 = vmatprep.mubr.f32.mxu0 0.0
        %2550 = vmatmul.mubr.f32.gmra.mrb[0].mxu0 %v326
        %v2551 = vpop.f32.mrb[0].mxu0
        %v2552 = vadd.f32 %v2391, %v2551
        %v2553 = vpop.f32.mrb[0].mxu0
        %v2554 = vadd.f32 %v2393, %v2553
        %2555 = vmatprep.mubr.f32.mxu0 0.0
        %2556 = vmatmul.mubr.f32.gmra.mrb[0].mxu0 %v329
        %v2557 = vpop.f32.mrb[0].mxu0
        %v2558 = vadd.f32 %v2397, %v2557
        %v2559 = vpop.f32.mrb[0].mxu0
        %v2560 = vadd.f32 %v2399, %v2559
        %2561 = vmatprep.mubr.f32.mxu0 0.0
        %2562 = vmatmul.mubr.f32.gmra.mrb[0].mxu0 %v332
        %v2563 = vpop.f32.mrb[0].mxu0
        %v2564 = vadd.f32 %v2403, %v2563
        %v2565 = vpop.f32.mrb[0].mxu0
        %v2566 = vadd.f32 %v2405, %v2565
        %2567 = vmatprep.mubr.f32.mxu0 0.0
        %2568 = vmatmul.mubr.f32.gmra.mrb[0].mxu0 %v335
        %v2569 = vpop.f32.mrb[0].mxu0
        %v2570 = vadd.f32 %v2409, %v2569
        %v2571 = vpop.f32.mrb[0].mxu0
        %v2572 = vadd.f32 %v2411, %v2571
        %2573 = vmatprep.mubr.f32.mxu0 0.0
        %2574 = vmatmul.mubr.f32.gmra.mrb[0].mxu0 %v338
        %v2575 = vpop.f32.mrb[0].mxu0
        %v2576 = vadd.f32 %v2415, %v2575
        %v2577 = vpop.f32.mrb[0].mxu0
        %v2578 = vadd.f32 %v2417, %v2577
        %2579 = vmatprep.mubr.f32.mxu0 0.0
        %2580 = vmatmul.mubr.f32.gmra.mrb[0].mxu0 %v341
        %v2581 = vpop.f32.mrb[0].mxu0
        %v2582 = vadd.f32 %v2421, %v2581
        %v2583 = vpop.f32.mrb[0].mxu0
        %v2584 = vadd.f32 %v2423, %v2583
        %2585 = vmatprep.mubr.f32.mxu0 0.0
        %2586 = vmatmul.mubr.f32.gmra.mrb[0].mxu0 %v344
        %v2587 = vpop.f32.mrb[0].mxu0
        %v2588 = vadd.f32 %v2427, %v2587
        %v2589 = vpop.f32.mrb[0].mxu0
        %v2590 = vadd.f32 %v2429, %v2589
        %2591 = vmatprep.mubr.f32.mxu0 0.0
        %2592 = vmatmul.mubr.f32.gmra.mrb[0].mxu0 %v347
        %v2593 = vpop.f32.mrb[0].mxu0
        %v2594 = vadd.f32 %v2433, %v2593
        %v2595 = vpop.f32.mrb[0].mxu0
        %v2596 = vadd.f32 %v2435, %v2595
        %2597 = vdwg.mxu0
        %2598 = vmatprep.subr.mxu0 %v359
        %2599 = vmatpush1.msra.mxu0 %v358
        %2600 = vmatprep.subr.mxu0 %v371
        %2601 = vmatpush1.msra.mxu0 %v370
        %2602 = vmatprep.subr.mxu0 %v383
        %2603 = vmatpush1.msra.mxu0 %v382
        %2604 = vmatprep.subr.mxu0 %v395
        %2605 = vmatpush1.msra.mxu0 %v394
        %2606 = vmatprep.subr.mxu0 %v407
        %2607 = vmatpush1.msra.mxu0 %v406
        %2608 = vmatprep.subr.mxu0 %v419
        %2609 = vmatpush1.msra.mxu0 %v418
        %2610 = vmatprep.subr.mxu0 %v431
        %2611 = vmatpush1.msra.mxu0 %v430
        %2612 = vmatprep.subr.mxu0 %v443
        %2613 = vmatpush1.msra.mxu0 %v442
        %2614 = vmatprep.subr.mxu0 %v455
        %2615 = vmatpush1.msra.mxu0 %v454
        %2616 = vmatprep.subr.mxu0 %v467
        %2617 = vmatpush1.msra.mxu0 %v466
        %2618 = vmatprep.subr.mxu0 %v479
        %2619 = vmatpush1.msra.mxu0 %v478
        %2620 = vmatprep.subr.mxu0 %v491
        %2621 = vmatpush1.msra.mxu0 %v490
        %2622 = vmatprep.subr.mxu0 %v503
        %2623 = vmatpush1.msra.mxu0 %v502
        %2624 = vmatprep.subr.mxu0 %v515
        %2625 = vmatpush1.msra.mxu0 %v514
        %2626 = vmatprep.subr.mxu0 %v527
        %2627 = vmatpush1.msra.mxu0 %v526
        %2628 = vmatprep.subr.mxu0 %v539
        %2629 = vmatpush1.msra.mxu0 %v538
        %2630 = vmatprep.subr.mxu0 %v551
        %2631 = vmatpush1.msra.mxu0 %v550
        %2632 = vmatprep.subr.mxu0 %v563
        %2633 = vmatpush1.msra.mxu0 %v562
        %2634 = vmatprep.subr.mxu0 %v575
        %2635 = vmatpush1.msra.mxu0 %v574
        %2636 = vmatprep.subr.mxu0 %v587
        %2637 = vmatpush1.msra.mxu0 %v586
        %2638 = vmatprep.subr.mxu0 %v599
        %2639 = vmatpush1.msra.mxu0 %v598
        %2640 = vmatprep.subr.mxu0 %v611
        %2641 = vmatpush1.msra.mxu0 %v610
        %2642 = vmatprep.subr.mxu0 %v623
        %2643 = vmatpush1.msra.mxu0 %v622
        %2644 = vmatprep.subr.mxu0 %v635
        %2645 = vmatpush1.msra.mxu0 %v634
        %2646 = vmatprep.subr.mxu0 %v647
        %2647 = vmatpush1.msra.mxu0 %v646
        %2648 = vmatprep.subr.mxu0 %v659
        %2649 = vmatpush1.msra.mxu0 %v658
        %2650 = vmatprep.subr.mxu0 %v671
        %2651 = vmatpush1.msra.mxu0 %v670
        %2652 = vmatprep.subr.mxu0 %v683
        %2653 = vmatpush1.msra.mxu0 %v682
        %2654 = vmatprep.subr.mxu0 %v695
        %2655 = vmatpush1.msra.mxu0 %v694
        %2656 = vmatprep.subr.mxu0 %v707
        %2657 = vmatpush1.msra.mxu0 %v706
        %2658 = vmatprep.subr.mxu0 %v719
        %2659 = vmatpush1.msra.mxu0 %v718
        %2660 = vmatprep.subr.mxu0 %v731
        %2661 = vmatpush1.msra.mxu0 %v730
        %2662 = vmatprep.mubr.f32.mxu0 %v301
        %2663 = vmatmul.mubr.f32.gmra.mrb[0].mxu0 %v300
        %v2664 = vpop.f32.mrb[0].mxu0
        %v2665 = vadd.f32 %v971, %v2664
        %v2666 = vpop.f32.mrb[0].mxu0
        %v2667 = vadd.f32 %v975, %v2666
        %2668 = vmatprep.mubr.f32.mxu0 %v304
        %2669 = vmatmul.mubr.f32.gmra.mrb[0].mxu0 %v303
        %v2670 = vpop.f32.mrb[0].mxu0
        %v2671 = vadd.f32 %v971, %v2670
        %v2672 = vpop.f32.mrb[0].mxu0
        %v2673 = vadd.f32 %v975, %v2672
        %2674 = vmatprep.mubr.f32.mxu0 %v307
        %2675 = vmatmul.mubr.f32.gmra.mrb[0].mxu0 %v306
        %v2676 = vpop.f32.mrb[0].mxu0
        %v2677 = vadd.f32 %v971, %v2676
        %v2678 = vpop.f32.mrb[0].mxu0
        %v2679 = vadd.f32 %v975, %v2678
        %2680 = vmatprep.mubr.f32.mxu0 %v310
        %2681 = vmatmul.mubr.f32.gmra.mrb[0].mxu0 %v309
        %v2682 = vpop.f32.mrb[0].mxu0
        %v2683 = vadd.f32 %v971, %v2682
        %v2684 = vpop.f32.mrb[0].mxu0
        %v2685 = vadd.f32 %v975, %v2684
        %2686 = vmatprep.mubr.f32.mxu0 %v313
        %2687 = vmatmul.mubr.f32.gmra.mrb[0].mxu0 %v312
        %v2688 = vpop.f32.mrb[0].mxu0
        %v2689 = vadd.f32 %v971, %v2688
        %v2690 = vpop.f32.mrb[0].mxu0
        %v2691 = vadd.f32 %v975, %v2690
        %2692 = vmatprep.mubr.f32.mxu0 %v316
        %2693 = vmatmul.mubr.f32.gmra.mrb[0].mxu0 %v315
        %v2694 = vpop.f32.mrb[0].mxu0
        %v2695 = vadd.f32 %v971, %v2694
        %v2696 = vpop.f32.mrb[0].mxu0
        %v2697 = vadd.f32 %v975, %v2696
        %2698 = vmatprep.mubr.f32.mxu0 %v319
        %2699 = vmatmul.mubr.f32.gmra.mrb[0].mxu0 %v318
        %v2700 = vpop.f32.mrb[0].mxu0
        %v2701 = vadd.f32 %v971, %v2700
        %v2702 = vpop.f32.mrb[0].mxu0
        %v2703 = vadd.f32 %v975, %v2702
        %2704 = vmatprep.mubr.f32.mxu0 %v322
        %2705 = vmatmul.mubr.f32.gmra.mrb[0].mxu0 %v321
        %v2706 = vpop.f32.mrb[0].mxu0
        %v2707 = vadd.f32 %v971, %v2706
        %v2708 = vpop.f32.mrb[0].mxu0
        %v2709 = vadd.f32 %v975, %v2708
        %2710 = vmatprep.mubr.f32.mxu0 %v325
        %2711 = vmatmul.mubr.f32.gmra.mrb[0].mxu0 %v324
        %v2712 = vpop.f32.mrb[0].mxu0
        %v2713 = vadd.f32 %v971, %v2712
        %v2714 = vpop.f32.mrb[0].mxu0
        %v2715 = vadd.f32 %v975, %v2714
        %2716 = vmatprep.mubr.f32.mxu0 %v328
        %2717 = vmatmul.mubr.f32.gmra.mrb[0].mxu0 %v327
        %v2718 = vpop.f32.mrb[0].mxu0
        %v2719 = vadd.f32 %v971, %v2718
        %v2720 = vpop.f32.mrb[0].mxu0
        %v2721 = vadd.f32 %v975, %v2720
        %2722 = vmatprep.mubr.f32.mxu0 %v331
        %2723 = vmatmul.mubr.f32.gmra.mrb[0].mxu0 %v330
        %v2724 = vpop.f32.mrb[0].mxu0
        %v2725 = vadd.f32 %v971, %v2724
        %v2726 = vpop.f32.mrb[0].mxu0
        %v2727 = vadd.f32 %v975, %v2726
        %2728 = vmatprep.mubr.f32.mxu0 %v334
        %2729 = vmatmul.mubr.f32.gmra.mrb[0].mxu0 %v333
        %v2730 = vpop.f32.mrb[0].mxu0
        %v2731 = vadd.f32 %v971, %v2730
        %v2732 = vpop.f32.mrb[0].mxu0
        %v2733 = vadd.f32 %v975, %v2732
        %2734 = vmatprep.mubr.f32.mxu0 %v337
        %2735 = vmatmul.mubr.f32.gmra.mrb[0].mxu0 %v336
        %v2736 = vpop.f32.mrb[0].mxu0
        %v2737 = vadd.f32 %v971, %v2736
        %v2738 = vpop.f32.mrb[0].mxu0
        %v2739 = vadd.f32 %v975, %v2738
        %2740 = vmatprep.mubr.f32.mxu0 %v340
        %2741 = vmatmul.mubr.f32.gmra.mrb[0].mxu0 %v339
        %v2742 = vpop.f32.mrb[0].mxu0
        %v2743 = vadd.f32 %v971, %v2742
        %v2744 = vpop.f32.mrb[0].mxu0
        %v2745 = vadd.f32 %v975, %v2744
        %2746 = vmatprep.mubr.f32.mxu0 %v343
        %2747 = vmatmul.mubr.f32.gmra.mrb[0].mxu0 %v342
        %v2748 = vpop.f32.mrb[0].mxu0
        %v2749 = vadd.f32 %v971, %v2748
        %v2750 = vpop.f32.mrb[0].mxu0
        %v2751 = vadd.f32 %v975, %v2750
        %2752 = vmatprep.mubr.f32.mxu0 %v346
        %2753 = vmatmul.mubr.f32.gmra.mrb[0].mxu0 %v345
        %v2754 = vpop.f32.mrb[0].mxu0
        %v2755 = vadd.f32 %v971, %v2754
        %v2756 = vpop.f32.mrb[0].mxu0
        %v2757 = vadd.f32 %v975, %v2756
        %2758 = vdwg.mxu0
        %2759 = vmatprep.subr.mxu0 %v743
        %2760 = vmatpush1.msra.mxu0 %v742
        %2761 = vmatprep.subr.mxu0 %v755
        %2762 = vmatpush1.msra.mxu0 %v754
        %2763 = vmatprep.subr.mxu0 %v767
        %2764 = vmatpush1.msra.mxu0 %v766
        %2765 = vmatprep.subr.mxu0 %v779
        %2766 = vmatpush1.msra.mxu0 %v778
        %2767 = vmatprep.subr.mxu0 %v791
        %2768 = vmatpush1.msra.mxu0 %v790
        %2769 = vmatprep.subr.mxu0 %v803
        %2770 = vmatpush1.msra.mxu0 %v802
        %2771 = vmatprep.subr.mxu0 %v815
        %2772 = vmatpush1.msra.mxu0 %v814
        %2773 = vmatprep.subr.mxu0 %v827
        %2774 = vmatpush1.msra.mxu0 %v826
        %2775 = vmatprep.subr.mxu0 %v839
        %2776 = vmatpush1.msra.mxu0 %v838
        %2777 = vmatprep.subr.mxu0 %v851
        %2778 = vmatpush1.msra.mxu0 %v850
        %2779 = vmatprep.subr.mxu0 %v863
        %2780 = vmatpush1.msra.mxu0 %v862
        %2781 = vmatprep.subr.mxu0 %v875
        %2782 = vmatpush1.msra.mxu0 %v874
        %2783 = vmatprep.subr.mxu0 %v887
        %2784 = vmatpush1.msra.mxu0 %v886
        %2785 = vmatprep.subr.mxu0 %v899
        %2786 = vmatpush1.msra.mxu0 %v898
        %2787 = vmatprep.subr.mxu0 %v911
        %2788 = vmatpush1.msra.mxu0 %v910
        %2789 = vmatprep.subr.mxu0 %v923
        %2790 = vmatpush1.msra.mxu0 %v922
        %2791 = vmatprep.subr.mxu0 0.0
        %2792 = vmatpush1.msra.mxu0 0.0
        %2793 = vmatprep.subr.mxu0 0.0
        %2794 = vmatpush1.msra.mxu0 0.0
        %2795 = vmatprep.subr.mxu0 0.0
        %2796 = vmatpush1.msra.mxu0 0.0
        %2797 = vmatprep.subr.mxu0 0.0
        %2798 = vmatpush1.msra.mxu0 0.0
        %2799 = vmatprep.subr.mxu0 0.0
        %2800 = vmatpush1.msra.mxu0 0.0
        %2801 = vmatprep.subr.mxu0 0.0
        %2802 = vmatpush1.msra.mxu0 0.0
        %2803 = vmatprep.subr.mxu0 0.0
        %2804 = vmatpush1.msra.mxu0 0.0
        %2805 = vmatprep.subr.mxu0 0.0
        %2806 = vmatpush1.msra.mxu0 0.0
        %2807 = vmatprep.subr.mxu0 0.0
        %2808 = vmatpush1.msra.mxu0 0.0
        %2809 = vmatprep.subr.mxu0 0.0
        %2810 = vmatpush1.msra.mxu0 0.0
        %2811 = vmatprep.subr.mxu0 0.0
        %2812 = vmatpush1.msra.mxu0 0.0
        %2813 = vmatprep.subr.mxu0 0.0
        %2814 = vmatpush1.msra.mxu0 0.0
        %2815 = vmatprep.subr.mxu0 0.0
        %2816 = vmatpush1.msra.mxu0 0.0
        %2817 = vmatprep.subr.mxu0 0.0
        %2818 = vmatpush1.msra.mxu0 0.0
        %2819 = vmatprep.subr.mxu0 0.0
        %2820 = vmatpush1.msra.mxu0 0.0
        %2821 = vmatprep.subr.mxu0 0.0
        %2822 = vmatpush1.msra.mxu0 0.0
        %2823 = vmatprep.mubr.f32.mxu0 0.0
        %2824 = vmatmul.mubr.f32.gmra.mrb[0].mxu0 %v302
        %v2825 = vpop.f32.mrb[0].mxu0
        %v2826 = vadd.f32 %v2665, %v2825
        %v2827 = vpop.f32.mrb[0].mxu0
        %v2828 = vadd.f32 %v2667, %v2827
        %2829 = vmatprep.mubr.f32.mxu0 0.0
        %2830 = vmatmul.mubr.f32.gmra.mrb[0].mxu0 %v305
        %v2831 = vpop.f32.mrb[0].mxu0
        %v2832 = vadd.f32 %v2671, %v2831
        %v2833 = vpop.f32.mrb[0].mxu0
        %v2834 = vadd.f32 %v2673, %v2833
        %2835 = vmatprep.mubr.f32.mxu0 0.0
        %2836 = vmatmul.mubr.f32.gmra.mrb[0].mxu0 %v308
        %v2837 = vpop.f32.mrb[0].mxu0
        %v2838 = vadd.f32 %v2677, %v2837
        %v2839 = vpop.f32.mrb[0].mxu0
        %v2840 = vadd.f32 %v2679, %v2839
        %2841 = vmatprep.mubr.f32.mxu0 0.0
        %2842 = vmatmul.mubr.f32.gmra.mrb[0].mxu0 %v311
        %v2843 = vpop.f32.mrb[0].mxu0
        %v2844 = vadd.f32 %v2683, %v2843
        %v2845 = vpop.f32.mrb[0].mxu0
        %v2846 = vadd.f32 %v2685, %v2845
        %2847 = vmatprep.mubr.f32.mxu0 0.0
        %2848 = vmatmul.mubr.f32.gmra.mrb[0].mxu0 %v314
        %v2849 = vpop.f32.mrb[0].mxu0
        %v2850 = vadd.f32 %v2689, %v2849
        %v2851 = vpop.f32.mrb[0].mxu0
        %v2852 = vadd.f32 %v2691, %v2851
        %2853 = vmatprep.mubr.f32.mxu0 0.0
        %2854 = vmatmul.mubr.f32.gmra.mrb[0].mxu0 %v317
        %v2855 = vpop.f32.mrb[0].mxu0
        %v2856 = vadd.f32 %v2695, %v2855
        %v2857 = vpop.f32.mrb[0].mxu0
        %v2858 = vadd.f32 %v2697, %v2857
        %2859 = vmatprep.mubr.f32.mxu0 0.0
        %2860 = vmatmul.mubr.f32.gmra.mrb[0].mxu0 %v320
        %v2861 = vpop.f32.mrb[0].mxu0
        %v2862 = vadd.f32 %v2701, %v2861
        %v2863 = vpop.f32.mrb[0].mxu0
        %v2864 = vadd.f32 %v2703, %v2863
        %2865 = vmatprep.mubr.f32.mxu0 0.0
        %2866 = vmatmul.mubr.f32.gmra.mrb[0].mxu0 %v323
        %v2867 = vpop.f32.mrb[0].mxu0
        %v2868 = vadd.f32 %v2707, %v2867
        %v2869 = vpop.f32.mrb[0].mxu0
        %v2870 = vadd.f32 %v2709, %v2869
        %2871 = vmatprep.mubr.f32.mxu0 0.0
        %2872 = vmatmul.mubr.f32.gmra.mrb[0].mxu0 %v326
        %v2873 = vpop.f32.mrb[0].mxu0
        %v2874 = vadd.f32 %v2713, %v2873
        %v2875 = vpop.f32.mrb[0].mxu0
        %v2876 = vadd.f32 %v2715, %v2875
        %2877 = vmatprep.mubr.f32.mxu0 0.0
        %2878 = vmatmul.mubr.f32.gmra.mrb[0].mxu0 %v329
        %v2879 = vpop.f32.mrb[0].mxu0
        %v2880 = vadd.f32 %v2719, %v2879
        %v2881 = vpop.f32.mrb[0].mxu0
        %v2882 = vadd.f32 %v2721, %v2881
        %2883 = vmatprep.mubr.f32.mxu0 0.0
        %2884 = vmatmul.mubr.f32.gmra.mrb[0].mxu0 %v332
        %v2885 = vpop.f32.mrb[0].mxu0
        %v2886 = vadd.f32 %v2725, %v2885
        %v2887 = vpop.f32.mrb[0].mxu0
        %v2888 = vadd.f32 %v2727, %v2887
        %2889 = vmatprep.mubr.f32.mxu0 0.0
        %2890 = vmatmul.mubr.f32.gmra.mrb[0].mxu0 %v335
        %v2891 = vpop.f32.mrb[0].mxu0
        %v2892 = vadd.f32 %v2731, %v2891
        %v2893 = vpop.f32.mrb[0].mxu0
        %v2894 = vadd.f32 %v2733, %v2893
        %2895 = vmatprep.mubr.f32.mxu0 0.0
        %2896 = vmatmul.mubr.f32.gmra.mrb[0].mxu0 %v338
        %v2897 = vpop.f32.mrb[0].mxu0
        %v2898 = vadd.f32 %v2737, %v2897
        %v2899 = vpop.f32.mrb[0].mxu0
        %v2900 = vadd.f32 %v2739, %v2899
        %2901 = vmatprep.mubr.f32.mxu0 0.0
        %2902 = vmatmul.mubr.f32.gmra.mrb[0].mxu0 %v341
        %v2903 = vpop.f32.mrb[0].mxu0
        %v2904 = vadd.f32 %v2743, %v2903
        %v2905 = vpop.f32.mrb[0].mxu0
        %v2906 = vadd.f32 %v2745, %v2905
        %2907 = vmatprep.mubr.f32.mxu0 0.0
        %2908 = vmatmul.mubr.f32.gmra.mrb[0].mxu0 %v344
        %v2909 = vpop.f32.mrb[0].mxu0
        %v2910 = vadd.f32 %v2749, %v2909
        %v2911 = vpop.f32.mrb[0].mxu0
        %v2912 = vadd.f32 %v2751, %v2911
        %2913 = vmatprep.mubr.f32.mxu0 0.0
        %2914 = vmatmul.mubr.f32.gmra.mrb[0].mxu0 %v347
        %v2915 = vpop.f32.mrb[0].mxu0
        %v2916 = vadd.f32 %v2755, %v2915
        %v2917 = vpop.f32.mrb[0].mxu0
        %v2918 = vadd.f32 %v2757, %v2917
        %2919 = vdwg.mxu0
        %v2920 = vmax.f32 %v1216, 0.0
        %v2921 = vmax.f32 %v1218, 0.0
        %v2922 = vmax.f32 %v1538, 0.0
        %v2923 = vmax.f32 %v1540, 0.0
        %v2924 = vmax.f32 %v1860, 0.0
        %v2925 = vmax.f32 %v1862, 0.0
        %v2926 = vmax.f32 %v2182, 0.0
        %v2927 = vmax.f32 %v2184, 0.0
        %v2928 = vmax.f32 %v2504, 0.0
        %v2929 = vmax.f32 %v2506, 0.0
        %v2930 = vmax.f32 %v2826, 0.0
        %v2931 = vmax.f32 %v2828, 0.0
        %v2932 = vmax.f32 %v1222, 0.0
        %v2933 = vmax.f32 %v1224, 0.0
        %v2934 = vmax.f32 %v1544, 0.0
        %v2935 = vmax.f32 %v1546, 0.0
        %v2936 = vmax.f32 %v1866, 0.0
        %v2937 = vmax.f32 %v1868, 0.0
        %v2938 = vmax.f32 %v2188, 0.0
        %v2939 = vmax.f32 %v2190, 0.0
        %v2940 = vmax.f32 %v2510, 0.0
        %v2941 = vmax.f32 %v2512, 0.0
        %v2942 = vmax.f32 %v2832, 0.0
        %v2943 = vmax.f32 %v2834, 0.0
        %v2944 = vmax.f32 %v1228, 0.0
        %v2945 = vmax.f32 %v1230, 0.0
        %v2946 = vmax.f32 %v1550, 0.0
        %v2947 = vmax.f32 %v1552, 0.0
        %v2948 = vmax.f32 %v1872, 0.0
        %v2949 = vmax.f32 %v1874, 0.0
        %v2950 = vmax.f32 %v2194, 0.0
        %v2951 = vmax.f32 %v2196, 0.0
        %v2952 = vmax.f32 %v2516, 0.0
        %v2953 = vmax.f32 %v2518, 0.0
        %v2954 = vmax.f32 %v2838, 0.0
        %v2955 = vmax.f32 %v2840, 0.0
        %v2956 = vmax.f32 %v1234, 0.0
        %v2957 = vmax.f32 %v1236, 0.0
        %v2958 = vmax.f32 %v1556, 0.0
        %v2959 = vmax.f32 %v1558, 0.0
        %v2960 = vmax.f32 %v1878, 0.0
        %v2961 = vmax.f32 %v1880, 0.0
        %v2962 = vmax.f32 %v2200, 0.0
        %v2963 = vmax.f32 %v2202, 0.0
        %v2964 = vmax.f32 %v2522, 0.0
        %v2965 = vmax.f32 %v2524, 0.0
        %v2966 = vmax.f32 %v2844, 0.0
        %v2967 = vmax.f32 %v2846, 0.0
        %v2968 = vmax.f32 %v1240, 0.0
        %v2969 = vmax.f32 %v1242, 0.0
        %v2970 = vmax.f32 %v1562, 0.0
        %v2971 = vmax.f32 %v1564, 0.0
        %v2972 = vmax.f32 %v1884, 0.0
        %v2973 = vmax.f32 %v1886, 0.0
        %v2974 = vmax.f32 %v2206, 0.0
        %v2975 = vmax.f32 %v2208, 0.0
        %v2976 = vmax.f32 %v2528, 0.0
        %v2977 = vmax.f32 %v2530, 0.0
        %v2978 = vmax.f32 %v2850, 0.0
        %v2979 = vmax.f32 %v2852, 0.0
        %v2980 = vmax.f32 %v1246, 0.0
        %v2981 = vmax.f32 %v1248, 0.0
        %v2982 = vmax.f32 %v1568, 0.0
        %v2983 = vmax.f32 %v1570, 0.0
        %v2984 = vmax.f32 %v1890, 0.0
        %v2985 = vmax.f32 %v1892, 0.0
        %v2986 = vmax.f32 %v2212, 0.0
        %v2987 = vmax.f32 %v2214, 0.0
        %v2988 = vmax.f32 %v2534, 0.0
        %v2989 = vmax.f32 %v2536, 0.0
        %v2990 = vmax.f32 %v2856, 0.0
        %v2991 = vmax.f32 %v2858, 0.0
        %v2992 = vmax.f32 %v1252, 0.0
        %v2993 = vmax.f32 %v1254, 0.0
        %v2994 = vmax.f32 %v1574, 0.0
        %v2995 = vmax.f32 %v1576, 0.0
        %v2996 = vmax.f32 %v1896, 0.0
        %v2997 = vmax.f32 %v1898, 0.0
        %v2998 = vmax.f32 %v2218, 0.0
        %v2999 = vmax.f32 %v2220, 0.0
        %v3000 = vmax.f32 %v2540, 0.0
        %v3001 = vmax.f32 %v2542, 0.0
        %v3002 = vmax.f32 %v2862, 0.0
        %v3003 = vmax.f32 %v2864, 0.0
        %v3004 = vmax.f32 %v1258, 0.0
        %v3005 = vmax.f32 %v1260, 0.0
        %v3006 = vmax.f32 %v1580, 0.0
        %v3007 = vmax.f32 %v1582, 0.0
        %v3008 = vmax.f32 %v1902, 0.0
        %v3009 = vmax.f32 %v1904, 0.0
        %v3010 = vmax.f32 %v2224, 0.0
        %v3011 = vmax.f32 %v2226, 0.0
        %v3012 = vmax.f32 %v2546, 0.0
        %v3013 = vmax.f32 %v2548, 0.0
        %v3014 = vmax.f32 %v2868, 0.0
        %v3015 = vmax.f32 %v2870, 0.0
        %v3016 = vmax.f32 %v1264, 0.0
        %v3017 = vmax.f32 %v1266, 0.0
        %v3018 = vmax.f32 %v1586, 0.0
        %v3019 = vmax.f32 %v1588, 0.0
        %v3020 = vmax.f32 %v1908, 0.0
        %v3021 = vmax.f32 %v1910, 0.0
        %v3022 = vmax.f32 %v2230, 0.0
        %v3023 = vmax.f32 %v2232, 0.0
        %v3024 = vmax.f32 %v2552, 0.0
        %v3025 = vmax.f32 %v2554, 0.0
        %v3026 = vmax.f32 %v2874, 0.0
        %v3027 = vmax.f32 %v2876, 0.0
        %v3028 = vmax.f32 %v1270, 0.0
        %v3029 = vmax.f32 %v1272, 0.0
        %v3030 = vmax.f32 %v1592, 0.0
        %v3031 = vmax.f32 %v1594, 0.0
        %v3032 = vmax.f32 %v1914, 0.0
        %v3033 = vmax.f32 %v1916, 0.0
        %v3034 = vmax.f32 %v2236, 0.0
        %v3035 = vmax.f32 %v2238, 0.0
        %v3036 = vmax.f32 %v2558, 0.0
        %v3037 = vmax.f32 %v2560, 0.0
        %v3038 = vmax.f32 %v2880, 0.0
        %v3039 = vmax.f32 %v2882, 0.0
        %v3040 = vmax.f32 %v1276, 0.0
        %v3041 = vmax.f32 %v1278, 0.0
        %v3042 = vmax.f32 %v1598, 0.0
        %v3043 = vmax.f32 %v1600, 0.0
        %v3044 = vmax.f32 %v1920, 0.0
        %v3045 = vmax.f32 %v1922, 0.0
        %v3046 = vmax.f32 %v2242, 0.0
        %v3047 = vmax.f32 %v2244, 0.0
        %v3048 = vmax.f32 %v2564, 0.0
        %v3049 = vmax.f32 %v2566, 0.0
        %v3050 = vmax.f32 %v2886, 0.0
        %v3051 = vmax.f32 %v2888, 0.0
        %v3052 = vmax.f32 %v1282, 0.0
        %v3053 = vmax.f32 %v1284, 0.0
        %v3054 = vmax.f32 %v1604, 0.0
        %v3055 = vmax.f32 %v1606, 0.0
        %v3056 = vmax.f32 %v1926, 0.0
        %v3057 = vmax.f32 %v1928, 0.0
        %v3058 = vmax.f32 %v2248, 0.0
        %v3059 = vmax.f32 %v2250, 0.0
        %v3060 = vmax.f32 %v2570, 0.0
        %v3061 = vmax.f32 %v2572, 0.0
        %v3062 = vmax.f32 %v2892, 0.0
        %v3063 = vmax.f32 %v2894, 0.0
        %v3064 = vmax.f32 %v1288, 0.0
        %v3065 = vmax.f32 %v1290, 0.0
        %v3066 = vmax.f32 %v1610, 0.0
        %v3067 = vmax.f32 %v1612, 0.0
        %v3068 = vmax.f32 %v1932, 0.0
        %v3069 = vmax.f32 %v1934, 0.0
        %v3070 = vmax.f32 %v2254, 0.0
        %v3071 = vmax.f32 %v2256, 0.0
        %v3072 = vmax.f32 %v2576, 0.0
        %v3073 = vmax.f32 %v2578, 0.0
        %v3074 = vmax.f32 %v2898, 0.0
        %v3075 = vmax.f32 %v2900, 0.0
        %v3076 = vmax.f32 %v1294, 0.0
        %v3077 = vmax.f32 %v1296, 0.0
        %v3078 = vmax.f32 %v1616, 0.0
        %v3079 = vmax.f32 %v1618, 0.0
        %v3080 = vmax.f32 %v1938, 0.0
        %v3081 = vmax.f32 %v1940, 0.0
        %v3082 = vmax.f32 %v2260, 0.0
        %v3083 = vmax.f32 %v2262, 0.0
        %v3084 = vmax.f32 %v2582, 0.0
        %v3085 = vmax.f32 %v2584, 0.0
        %v3086 = vmax.f32 %v2904, 0.0
        %v3087 = vmax.f32 %v2906, 0.0
        %v3088 = vmax.f32 %v1300, 0.0
        %v3089 = vmax.f32 %v1302, 0.0
        %v3090 = vmax.f32 %v1622, 0.0
        %v3091 = vmax.f32 %v1624, 0.0
        %v3092 = vmax.f32 %v1944, 0.0
        %v3093 = vmax.f32 %v1946, 0.0
        %v3094 = vmax.f32 %v2266, 0.0
        %v3095 = vmax.f32 %v2268, 0.0
        %v3096 = vmax.f32 %v2588, 0.0
        %v3097 = vmax.f32 %v2590, 0.0
        %v3098 = vmax.f32 %v2910, 0.0
        %v3099 = vmax.f32 %v2912, 0.0
        %v3100 = vmax.f32 %v1306, 0.0
        %v3101 = vmax.f32 %v1308, 0.0
        %v3102 = vmax.f32 %v1628, 0.0
        %v3103 = vmax.f32 %v1630, 0.0
        %v3104 = vmax.f32 %v1950, 0.0
        %v3105 = vmax.f32 %v1952, 0.0
        %v3106 = vmax.f32 %v2272, 0.0
        %v3107 = vmax.f32 %v2274, 0.0
        %v3108 = vmax.f32 %v2594, 0.0
        %v3109 = vmax.f32 %v2596, 0.0
        %v3110 = vmax.f32 %v2916, 0.0
        %v3111 = vmax.f32 %v2918, 0.0
        %v3112 = vld [vmem:[#allocation8] sm:$0xff]
        %v3113 = vld [vmem:[#allocation8 + $0x8] sm:$0xff]
        %v3114 = vld [vmem:[#allocation8 + $0x10] sm:$0xff]
        %v3115 = vld [vmem:[#allocation8 + $0x18] sm:$0xff]
        %v3116 = vld [vmem:[#allocation8 + $0x20] sm:$0xff]
        %v3117 = vld [vmem:[#allocation8 + $0x28] sm:$0xff]
        %v3118 = vld [vmem:[#allocation8 + $0x30] sm:$0xff]
        %v3119 = vld [vmem:[#allocation8 + $0x38] sm:$0xff]
        %v3120 = vld [vmem:[#allocation8 + $0x40] sm:$0xff]
        %v3121 = vld [vmem:[#allocation8 + $0x48] sm:$0xff]
        %v3122 = vld [vmem:[#allocation8 + $0x50] sm:$0xff]
        %v3123 = vld [vmem:[#allocation8 + $0x58] sm:$0xff]
        %v3124 = vld [vmem:[#allocation8 + $0x60] sm:$0xff]
        %v3125 = vld [vmem:[#allocation8 + $0x68] sm:$0xff]
        %v3126 = vld [vmem:[#allocation8 + $0x70] sm:$0xff]
        %v3127 = vld [vmem:[#allocation8 + $0x78] sm:$0xff]
        %v3128 = vld [vmem:[#allocation8 + $0x80] sm:$0xff]
        %v3129 = vld [vmem:[#allocation8 + $0x88] sm:$0xff]
        %v3130 = vld [vmem:[#allocation8 + $0x90] sm:$0xff]
        %v3131 = vld [vmem:[#allocation8 + $0x98] sm:$0xff]
        %v3132 = vld [vmem:[#allocation8 + $0xa0] sm:$0xff]
        %v3133 = vld [vmem:[#allocation8 + $0xa8] sm:$0xff]
        %v3134 = vld [vmem:[#allocation8 + $0xb0] sm:$0xff]
        %v3135 = vld [vmem:[#allocation8 + $0xb8] sm:$0xff]
        %v3136 = vld [vmem:[#allocation8 + $0xc0] sm:$0xff]
        %v3137 = vld [vmem:[#allocation8 + $0xc8] sm:$0xff]
        %v3138 = vld [vmem:[#allocation8 + $0xd0] sm:$0xff]
        %v3139 = vld [vmem:[#allocation8 + $0xd8] sm:$0xff]
        %v3140 = vld [vmem:[#allocation8 + $0xe0] sm:$0xff]
        %v3141 = vld [vmem:[#allocation8 + $0xe8] sm:$0xff]
        %v3142 = vld [vmem:[#allocation8 + $0xf0] sm:$0xff]
        %v3143 = vld [vmem:[#allocation8 + $0xf8] sm:$0xff]
        %v3144 = vld [vmem:[#allocation8 + $0x100] sm:$0xff]
        %v3145 = vld [vmem:[#allocation8 + $0x108] sm:$0xff]
        %v3146 = vld [vmem:[#allocation8 + $0x110] sm:$0xff]
        %v3147 = vld [vmem:[#allocation8 + $0x118] sm:$0xff]
        %v3148 = vld [vmem:[#allocation8 + $0x120] sm:$0xff]
        %v3149 = vld [vmem:[#allocation8 + $0x128] sm:$0xff]
        %v3150 = vld [vmem:[#allocation8 + $0x130] sm:$0xff]
        %v3151 = vld [vmem:[#allocation8 + $0x138] sm:$0xff]
        %v3152 = vld [vmem:[#allocation8 + $0x140] sm:$0xff]
        %v3153 = vld [vmem:[#allocation8 + $0x148] sm:$0xff]
        %v3154 = vld [vmem:[#allocation8 + $0x150] sm:$0xff]
        %v3155 = vld [vmem:[#allocation8 + $0x158] sm:$0xff]
        %v3156 = vld [vmem:[#allocation8 + $0x160] sm:$0xff]
        %v3157 = vld [vmem:[#allocation8 + $0x168] sm:$0xff]
        %v3158 = vld [vmem:[#allocation8 + $0x170] sm:$0xff]
        %v3159 = vld [vmem:[#allocation8 + $0x178] sm:$0xff]
        %v3160 = vld [vmem:[#allocation8 + $0x180] sm:$0xff]
        %v3161 = vld [vmem:[#allocation8 + $0x188] sm:$0xff]
        %v3162 = vld [vmem:[#allocation8 + $0x190] sm:$0xff]
        %v3163 = vld [vmem:[#allocation8 + $0x198] sm:$0xff]
        %v3164 = vld [vmem:[#allocation8 + $0x1a0] sm:$0xff]
        %v3165 = vld [vmem:[#allocation8 + $0x1a8] sm:$0xff]
        %v3166 = vld [vmem:[#allocation8 + $0x1b0] sm:$0xff]
        %v3167 = vld [vmem:[#allocation8 + $0x1b8] sm:$0xff]
        %v3168 = vld [vmem:[#allocation8 + $0x1c0] sm:$0xff]
        %v3169 = vld [vmem:[#allocation8 + $0x1c8] sm:$0xff]
        %v3170 = vld [vmem:[#allocation8 + $0x1d0] sm:$0xff]
        %v3171 = vld [vmem:[#allocation8 + $0x1d8] sm:$0xff]
        %v3172 = vld [vmem:[#allocation8 + $0x1e0] sm:$0xff]
        %v3173 = vld [vmem:[#allocation8 + $0x1e8] sm:$0xff]
        %v3174 = vld [vmem:[#allocation8 + $0x1f0] sm:$0xff]
        %v3175 = vld [vmem:[#allocation8 + $0x1f8] sm:$0xff]
        %v3176 = vld [vmem:[#allocation8 + $0x200] sm:$0xff]
        %v3177 = vld [vmem:[#allocation8 + $0x208] sm:$0xff]
        %v3178 = vld [vmem:[#allocation8 + $0x210] sm:$0xff]
        %v3179 = vld [vmem:[#allocation8 + $0x218] sm:$0xff]
        %v3180 = vld [vmem:[#allocation8 + $0x220] sm:$0xff]
        %v3181 = vld [vmem:[#allocation8 + $0x228] sm:$0xff]
        %v3182 = vld [vmem:[#allocation8 + $0x230] sm:$0xff]
        %v3183 = vld [vmem:[#allocation8 + $0x238] sm:$0xff]
        %v3184 = vld [vmem:[#allocation8 + $0x240] sm:$0xff]
        %v3185 = vld [vmem:[#allocation8 + $0x248] sm:$0xff]
        %v3186 = vld [vmem:[#allocation8 + $0x250] sm:$0xff]
        %v3187 = vld [vmem:[#allocation8 + $0x258] sm:$0xff]
        %v3188 = vld [vmem:[#allocation8 + $0x260] sm:$0xff]
        %v3189 = vld [vmem:[#allocation8 + $0x268] sm:$0xff]
        %v3190 = vld [vmem:[#allocation8 + $0x270] sm:$0xff]
        %v3191 = vld [vmem:[#allocation8 + $0x278] sm:$0xff]
        %v3192 = vld [vmem:[#allocation8 + $0x280] sm:$0xff]
        %v3193 = vld [vmem:[#allocation8 + $0x288] sm:$0xff]
        %v3194 = vld [vmem:[#allocation8 + $0x290] sm:$0xff]
        %v3195 = vld [vmem:[#allocation8 + $0x298] sm:$0xff]
        %v3196 = vld [vmem:[#allocation8 + $0x2a0] sm:$0xff]
        %v3197 = vld [vmem:[#allocation8 + $0x2a8] sm:$0xff]
        %v3198 = vld [vmem:[#allocation8 + $0x2b0] sm:$0xff]
        %v3199 = vld [vmem:[#allocation8 + $0x2b8] sm:$0xff]
        %v3200 = vld [vmem:[#allocation8 + $0x2c0] sm:$0xff]
        %v3201 = vld [vmem:[#allocation8 + $0x2c8] sm:$0xff]
        %v3202 = vld [vmem:[#allocation8 + $0x2d0] sm:$0xff]
        %v3203 = vld [vmem:[#allocation8 + $0x2d8] sm:$0xff]
        %v3204 = vld [vmem:[#allocation8 + $0x2e0] sm:$0xff]
        %v3205 = vld [vmem:[#allocation8 + $0x2e8] sm:$0xff]
        %v3206 = vld [vmem:[#allocation8 + $0x2f0] sm:$0xff]
        %v3207 = vld [vmem:[#allocation8 + $0x2f8] sm:$0xff]
        %v3208 = vld [vmem:[#allocation8 + $0x300] sm:$0xff]
        %v3209 = vld [vmem:[#allocation8 + $0x308] sm:$0xff]
        %v3210 = vld [vmem:[#allocation8 + $0x310] sm:$0xff]
        %v3211 = vld [vmem:[#allocation8 + $0x318] sm:$0xff]
        %v3212 = vld [vmem:[#allocation8 + $0x320] sm:$0xff]
        %v3213 = vld [vmem:[#allocation8 + $0x328] sm:$0xff]
        %v3214 = vld [vmem:[#allocation8 + $0x330] sm:$0xff]
        %v3215 = vld [vmem:[#allocation8 + $0x338] sm:$0xff]
        %v3216 = vld [vmem:[#allocation8 + $0x340] sm:$0xff]
        %v3217 = vld [vmem:[#allocation8 + $0x348] sm:$0xff]
        %v3218 = vld [vmem:[#allocation8 + $0x350] sm:$0xff]
        %v3219 = vld [vmem:[#allocation8 + $0x358] sm:$0xff]
        %v3220 = vld [vmem:[#allocation8 + $0x360] sm:$0xff]
        %v3221 = vld [vmem:[#allocation8 + $0x368] sm:$0xff]
        %v3222 = vld [vmem:[#allocation8 + $0x370] sm:$0xff]
        %v3223 = vld [vmem:[#allocation8 + $0x378] sm:$0xff]
        %v3224 = vld [vmem:[#allocation8 + $0x380] sm:$0xff]
        %v3225 = vld [vmem:[#allocation8 + $0x388] sm:$0xff]
        %v3226 = vld [vmem:[#allocation8 + $0x390] sm:$0xff]
        %v3227 = vld [vmem:[#allocation8 + $0x398] sm:$0xff]
        %v3228 = vld [vmem:[#allocation8 + $0x3a0] sm:$0xff]
        %v3229 = vld [vmem:[#allocation8 + $0x3a8] sm:$0xff]
        %v3230 = vld [vmem:[#allocation8 + $0x3b0] sm:$0xff]
        %v3231 = vld [vmem:[#allocation8 + $0x3b8] sm:$0xff]
        %v3232 = vld [vmem:[#allocation8 + $0x3c0] sm:$0xff]
        %v3233 = vld [vmem:[#allocation8 + $0x3c8] sm:$0xff]
        %v3234 = vld [vmem:[#allocation8 + $0x3d0] sm:$0xff]
        %v3235 = vld [vmem:[#allocation8 + $0x3d8] sm:$0xff]
        %v3236 = vld [vmem:[#allocation8 + $0x3e0] sm:$0xff]
        %v3237 = vld [vmem:[#allocation8 + $0x3e8] sm:$0xff]
        %v3238 = vld [vmem:[#allocation8 + $0x3f0] sm:$0xff]
        %v3239 = vld [vmem:[#allocation8 + $0x3f8] sm:$0xff]
        %v3240 = vld [vmem:[#allocation8 + $0x400] sm:$0xff]
        %v3241 = vld [vmem:[#allocation8 + $0x408] sm:$0xff]
        %v3242 = vld [vmem:[#allocation8 + $0x410] sm:$0xff]
        %v3243 = vld [vmem:[#allocation8 + $0x418] sm:$0xff]
        %v3244 = vld [vmem:[#allocation8 + $0x420] sm:$0xff]
        %v3245 = vld [vmem:[#allocation8 + $0x428] sm:$0xff]
        %v3246 = vld [vmem:[#allocation8 + $0x430] sm:$0xff]
        %v3247 = vld [vmem:[#allocation8 + $0x438] sm:$0xff]
        %v3248 = vld [vmem:[#allocation8 + $0x440] sm:$0xff]
        %v3249 = vld [vmem:[#allocation8 + $0x448] sm:$0xff]
        %v3250 = vld [vmem:[#allocation8 + $0x450] sm:$0xff]
        %v3251 = vld [vmem:[#allocation8 + $0x458] sm:$0xff]
        %v3252 = vld [vmem:[#allocation8 + $0x460] sm:$0xff]
        %v3253 = vld [vmem:[#allocation8 + $0x468] sm:$0xff]
        %v3254 = vld [vmem:[#allocation8 + $0x470] sm:$0xff]
        %v3255 = vld [vmem:[#allocation8 + $0x478] sm:$0xff]
        %v3256 = vld [vmem:[#allocation8 + $0x480] sm:$0xff]
        %v3257 = vld [vmem:[#allocation8 + $0x488] sm:$0xff]
        %v3258 = vld [vmem:[#allocation8 + $0x490] sm:$0xff]
        %v3259 = vld [vmem:[#allocation8 + $0x498] sm:$0xff]
        %v3260 = vld [vmem:[#allocation8 + $0x4a0] sm:$0xff]
        %v3261 = vld [vmem:[#allocation8 + $0x4a8] sm:$0xff]
        %v3262 = vld [vmem:[#allocation8 + $0x4b0] sm:$0xff]
        %v3263 = vld [vmem:[#allocation8 + $0x4b8] sm:$0xff]
        %v3264 = vld [vmem:[#allocation8 + $0x4c0] sm:$0xff]
        %v3265 = vld [vmem:[#allocation8 + $0x4c8] sm:$0xff]
        %v3266 = vld [vmem:[#allocation8 + $0x4d0] sm:$0xff]
        %v3267 = vld [vmem:[#allocation8 + $0x4d8] sm:$0xff]
        %v3268 = vld [vmem:[#allocation8 + $0x4e0] sm:$0xff]
        %v3269 = vld [vmem:[#allocation8 + $0x4e8] sm:$0xff]
        %v3270 = vld [vmem:[#allocation8 + $0x4f0] sm:$0xff]
        %v3271 = vld [vmem:[#allocation8 + $0x4f8] sm:$0xff]
        %v3272 = vld [vmem:[#allocation8 + $0x500] sm:$0xff]
        %v3273 = vld [vmem:[#allocation8 + $0x508] sm:$0xff]
        %v3274 = vld [vmem:[#allocation8 + $0x510] sm:$0xff]
        %v3275 = vld [vmem:[#allocation8 + $0x518] sm:$0xff]
        %v3276 = vld [vmem:[#allocation8 + $0x520] sm:$0xff]
        %v3277 = vld [vmem:[#allocation8 + $0x528] sm:$0xff]
        %v3278 = vld [vmem:[#allocation8 + $0x530] sm:$0xff]
        %v3279 = vld [vmem:[#allocation8 + $0x538] sm:$0xff]
        %v3280 = vld [vmem:[#allocation8 + $0x540] sm:$0xff]
        %v3281 = vld [vmem:[#allocation8 + $0x548] sm:$0xff]
        %v3282 = vld [vmem:[#allocation8 + $0x550] sm:$0xff]
        %v3283 = vld [vmem:[#allocation8 + $0x558] sm:$0xff]
        %v3284 = vld [vmem:[#allocation8 + $0x560] sm:$0xff]
        %v3285 = vld [vmem:[#allocation8 + $0x568] sm:$0xff]
        %v3286 = vld [vmem:[#allocation8 + $0x570] sm:$0xff]
        %v3287 = vld [vmem:[#allocation8 + $0x578] sm:$0xff]
        %v3288 = vld [vmem:[#allocation8 + $0x580] sm:$0xff]
        %v3289 = vld [vmem:[#allocation8 + $0x588] sm:$0xff]
        %v3290 = vld [vmem:[#allocation8 + $0x590] sm:$0xff]
        %v3291 = vld [vmem:[#allocation8 + $0x598] sm:$0xff]
        %v3292 = vld [vmem:[#allocation8 + $0x5a0] sm:$0xff]
        %v3293 = vld [vmem:[#allocation8 + $0x5a8] sm:$0xff]
        %v3294 = vld [vmem:[#allocation8 + $0x5b0] sm:$0xff]
        %v3295 = vld [vmem:[#allocation8 + $0x5b8] sm:$0xff]
        %v3296 = vld [vmem:[#allocation8 + $0x5c0] sm:$0xff]
        %v3297 = vld [vmem:[#allocation8 + $0x5c8] sm:$0xff]
        %v3298 = vld [vmem:[#allocation8 + $0x5d0] sm:$0xff]
        %v3299 = vld [vmem:[#allocation8 + $0x5d8] sm:$0xff]
        %v3300 = vld [vmem:[#allocation8 + $0x5e0] sm:$0xff]
        %v3301 = vld [vmem:[#allocation8 + $0x5e8] sm:$0xff]
        %v3302 = vld [vmem:[#allocation8 + $0x5f0] sm:$0xff]
        %v3303 = vld [vmem:[#allocation8 + $0x5f8] sm:$0xff]
        %v3304 = vld [vmem:[#allocation8 + $0x600] sm:$0xff]
        %v3305 = vld [vmem:[#allocation8 + $0x608] sm:$0xff]
        %v3306 = vld [vmem:[#allocation8 + $0x610] sm:$0xff]
        %v3307 = vld [vmem:[#allocation8 + $0x618] sm:$0xff]
        %v3308 = vld [vmem:[#allocation8 + $0x620] sm:$0xff]
        %v3309 = vld [vmem:[#allocation8 + $0x628] sm:$0xff]
        %v3310 = vld [vmem:[#allocation8 + $0x630] sm:$0xff]
        %v3311 = vld [vmem:[#allocation8 + $0x638] sm:$0xff]
        %v3312 = vld [vmem:[#allocation8 + $0x640] sm:$0xff]
        %v3313 = vld [vmem:[#allocation8 + $0x648] sm:$0xff]
        %v3314 = vld [vmem:[#allocation8 + $0x650] sm:$0xff]
        %v3315 = vld [vmem:[#allocation8 + $0x658] sm:$0xff]
        %v3316 = vld [vmem:[#allocation8 + $0x660] sm:$0xff]
        %v3317 = vld [vmem:[#allocation8 + $0x668] sm:$0xff]
        %v3318 = vld [vmem:[#allocation8 + $0x670] sm:$0xff]
        %v3319 = vld [vmem:[#allocation8 + $0x678] sm:$0xff]
        %v3320 = vld [vmem:[#allocation8 + $0x680] sm:$0xff]
        %v3321 = vld [vmem:[#allocation8 + $0x688] sm:$0xff]
        %v3322 = vld [vmem:[#allocation8 + $0x690] sm:$0xff]
        %v3323 = vld [vmem:[#allocation8 + $0x698] sm:$0xff]
        %v3324 = vld [vmem:[#allocation8 + $0x6a0] sm:$0xff]
        %v3325 = vld [vmem:[#allocation8 + $0x6a8] sm:$0xff]
        %v3326 = vld [vmem:[#allocation8 + $0x6b0] sm:$0xff]
        %v3327 = vld [vmem:[#allocation8 + $0x6b8] sm:$0xff]
        %v3328 = vld [vmem:[#allocation8 + $0x6c0] sm:$0xff]
        %v3329 = vld [vmem:[#allocation8 + $0x6c8] sm:$0xff]
        %v3330 = vld [vmem:[#allocation8 + $0x6d0] sm:$0xff]
        %v3331 = vld [vmem:[#allocation8 + $0x6d8] sm:$0xff]
        %v3332 = vld [vmem:[#allocation8 + $0x6e0] sm:$0xff]
        %v3333 = vld [vmem:[#allocation8 + $0x6e8] sm:$0xff]
        %v3334 = vld [vmem:[#allocation8 + $0x6f0] sm:$0xff]
        %v3335 = vld [vmem:[#allocation8 + $0x6f8] sm:$0xff]
        %v3336 = vld [vmem:[#allocation8 + $0x700] sm:$0xff]
        %v3337 = vld [vmem:[#allocation8 + $0x708] sm:$0xff]
        %v3338 = vld [vmem:[#allocation8 + $0x710] sm:$0xff]
        %v3339 = vld [vmem:[#allocation8 + $0x718] sm:$0xff]
        %v3340 = vld [vmem:[#allocation8 + $0x720] sm:$0xff]
        %v3341 = vld [vmem:[#allocation8 + $0x728] sm:$0xff]
        %v3342 = vld [vmem:[#allocation8 + $0x730] sm:$0xff]
        %v3343 = vld [vmem:[#allocation8 + $0x738] sm:$0xff]
        %v3344 = vld [vmem:[#allocation8 + $0x740] sm:$0xff]
        %v3345 = vld [vmem:[#allocation8 + $0x748] sm:$0xff]
        %v3346 = vld [vmem:[#allocation8 + $0x750] sm:$0xff]
        %v3347 = vld [vmem:[#allocation8 + $0x758] sm:$0xff]
        %v3348 = vld [vmem:[#allocation8 + $0x760] sm:$0xff]
        %v3349 = vld [vmem:[#allocation8 + $0x768] sm:$0xff]
        %v3350 = vld [vmem:[#allocation8 + $0x770] sm:$0xff]
        %v3351 = vld [vmem:[#allocation8 + $0x778] sm:$0xff]
        %v3352 = vld [vmem:[#allocation8 + $0x780] sm:$0xff]
        %v3353 = vld [vmem:[#allocation8 + $0x788] sm:$0xff]
        %v3354 = vld [vmem:[#allocation8 + $0x790] sm:$0xff]
        %v3355 = vld [vmem:[#allocation8 + $0x798] sm:$0xff]
        %v3356 = vld [vmem:[#allocation8 + $0x7a0] sm:$0xff]
        %v3357 = vld [vmem:[#allocation8 + $0x7a8] sm:$0xff]
        %v3358 = vld [vmem:[#allocation8 + $0x7b0] sm:$0xff]
        %v3359 = vld [vmem:[#allocation8 + $0x7b8] sm:$0xff]
        %v3360 = vld [vmem:[#allocation8 + $0x7c0] sm:$0xff]
        %v3361 = vld [vmem:[#allocation8 + $0x7c8] sm:$0xff]
        %v3362 = vld [vmem:[#allocation8 + $0x7d0] sm:$0xff]
        %v3363 = vld [vmem:[#allocation8 + $0x7d8] sm:$0xff]
        %v3364 = vld [vmem:[#allocation8 + $0x7e0] sm:$0xff]
        %v3365 = vld [vmem:[#allocation8 + $0x7e8] sm:$0xff]
        %v3366 = vld [vmem:[#allocation8 + $0x7f0] sm:$0xff]
        %v3367 = vld [vmem:[#allocation8 + $0x7f8] sm:$0xff]
        %v3368 = vld [vmem:[#allocation8 + $0x800] sm:$0xff]
        %v3369 = vld [vmem:[#allocation8 + $0x808] sm:$0xff]
        %v3370 = vld [vmem:[#allocation8 + $0x810] sm:$0xff]
        %v3371 = vld [vmem:[#allocation8 + $0x818] sm:$0xff]
        %v3372 = vld [vmem:[#allocation8 + $0x820] sm:$0xff]
        %v3373 = vld [vmem:[#allocation8 + $0x828] sm:$0xff]
        %v3374 = vld [vmem:[#allocation8 + $0x830] sm:$0xff]
        %v3375 = vld [vmem:[#allocation8 + $0x838] sm:$0xff]
        %v3376 = vld [vmem:[#allocation8 + $0x840] sm:$0xff]
        %v3377 = vld [vmem:[#allocation8 + $0x848] sm:$0xff]
        %v3378 = vld [vmem:[#allocation8 + $0x850] sm:$0xff]
        %v3379 = vld [vmem:[#allocation8 + $0x858] sm:$0xff]
        %v3380 = vld [vmem:[#allocation8 + $0x860] sm:$0xff]
        %v3381 = vld [vmem:[#allocation8 + $0x868] sm:$0xff]
        %v3382 = vld [vmem:[#allocation8 + $0x870] sm:$0xff]
        %v3383 = vld [vmem:[#allocation8 + $0x878] sm:$0xff]
        %v3384 = vld [vmem:[#allocation8 + $0x880] sm:$0xff]
        %v3385 = vld [vmem:[#allocation8 + $0x888] sm:$0xff]
        %v3386 = vld [vmem:[#allocation8 + $0x890] sm:$0xff]
        %v3387 = vld [vmem:[#allocation8 + $0x898] sm:$0xff]
        %v3388 = vld [vmem:[#allocation8 + $0x8a0] sm:$0xff]
        %v3389 = vld [vmem:[#allocation8 + $0x8a8] sm:$0xff]
        %v3390 = vld [vmem:[#allocation8 + $0x8b0] sm:$0xff]
        %v3391 = vld [vmem:[#allocation8 + $0x8b8] sm:$0xff]
        %v3392 = vld [vmem:[#allocation8 + $0x8c0] sm:$0xff]
        %v3393 = vld [vmem:[#allocation8 + $0x8c8] sm:$0xff]
        %v3394 = vld [vmem:[#allocation8 + $0x8d0] sm:$0xff]
        %v3395 = vld [vmem:[#allocation8 + $0x8d8] sm:$0xff]
        %v3396 = vld [vmem:[#allocation8 + $0x8e0] sm:$0xff]
        %v3397 = vld [vmem:[#allocation8 + $0x8e8] sm:$0xff]
        %v3398 = vld [vmem:[#allocation8 + $0x8f0] sm:$0xff]
        %v3399 = vld [vmem:[#allocation8 + $0x8f8] sm:$0xff]
        %v3400 = vld [vmem:[#allocation8 + $0x900] sm:$0xff]
        %v3401 = vld [vmem:[#allocation8 + $0x908] sm:$0xff]
        %v3402 = vld [vmem:[#allocation8 + $0x910] sm:$0xff]
        %v3403 = vld [vmem:[#allocation8 + $0x918] sm:$0xff]
        %v3404 = vld [vmem:[#allocation8 + $0x920] sm:$0xff]
        %v3405 = vld [vmem:[#allocation8 + $0x928] sm:$0xff]
        %v3406 = vld [vmem:[#allocation8 + $0x930] sm:$0xff]
        %v3407 = vld [vmem:[#allocation8 + $0x938] sm:$0xff]
        %v3408 = vld [vmem:[#allocation8 + $0x940] sm:$0xff]
        %v3409 = vld [vmem:[#allocation8 + $0x948] sm:$0xff]
        %v3410 = vld [vmem:[#allocation8 + $0x950] sm:$0xff]
        %v3411 = vld [vmem:[#allocation8 + $0x958] sm:$0xff]
        %v3412 = vld [vmem:[#allocation8 + $0x960] sm:$0xff]
        %v3413 = vld [vmem:[#allocation8 + $0x968] sm:$0xff]
        %v3414 = vld [vmem:[#allocation8 + $0x970] sm:$0xff]
        %v3415 = vld [vmem:[#allocation8 + $0x978] sm:$0xff]
        %v3416 = vld [vmem:[#allocation8 + $0x980] sm:$0xff]
        %v3417 = vld [vmem:[#allocation8 + $0x988] sm:$0xff]
        %v3418 = vld [vmem:[#allocation8 + $0x990] sm:$0xff]
        %v3419 = vld [vmem:[#allocation8 + $0x998] sm:$0xff]
        %v3420 = vld [vmem:[#allocation8 + $0x9a0] sm:$0xff]
        %v3421 = vld [vmem:[#allocation8 + $0x9a8] sm:$0xff]
        %v3422 = vld [vmem:[#allocation8 + $0x9b0] sm:$0xff]
        %v3423 = vld [vmem:[#allocation8 + $0x9b8] sm:$0xff]
        %v3424 = vld [vmem:[#allocation8 + $0x9c0] sm:$0xff]
        %v3425 = vld [vmem:[#allocation8 + $0x9c8] sm:$0xff]
        %v3426 = vld [vmem:[#allocation8 + $0x9d0] sm:$0xff]
        %v3427 = vld [vmem:[#allocation8 + $0x9d8] sm:$0xff]
        %v3428 = vld [vmem:[#allocation8 + $0x9e0] sm:$0xff]
        %v3429 = vld [vmem:[#allocation8 + $0x9e8] sm:$0xff]
        %v3430 = vld [vmem:[#allocation8 + $0x9f0] sm:$0xff]
        %v3431 = vld [vmem:[#allocation8 + $0x9f8] sm:$0xff]
        %v3432 = vld [vmem:[#allocation8 + $0xa00] sm:$0xff]
        %v3433 = vld [vmem:[#allocation8 + $0xa08] sm:$0xff]
        %v3434 = vld [vmem:[#allocation8 + $0xa10] sm:$0xff]
        %v3435 = vld [vmem:[#allocation8 + $0xa18] sm:$0xff]
        %v3436 = vld [vmem:[#allocation8 + $0xa20] sm:$0xff]
        %v3437 = vld [vmem:[#allocation8 + $0xa28] sm:$0xff]
        %v3438 = vld [vmem:[#allocation8 + $0xa30] sm:$0xff]
        %v3439 = vld [vmem:[#allocation8 + $0xa38] sm:$0xff]
        %v3440 = vld [vmem:[#allocation8 + $0xa40] sm:$0xff]
        %v3441 = vld [vmem:[#allocation8 + $0xa48] sm:$0xff]
        %v3442 = vld [vmem:[#allocation8 + $0xa50] sm:$0xff]
        %v3443 = vld [vmem:[#allocation8 + $0xa58] sm:$0xff]
        %v3444 = vld [vmem:[#allocation8 + $0xa60] sm:$0xff]
        %v3445 = vld [vmem:[#allocation8 + $0xa68] sm:$0xff]
        %v3446 = vld [vmem:[#allocation8 + $0xa70] sm:$0xff]
        %v3447 = vld [vmem:[#allocation8 + $0xa78] sm:$0xff]
        %v3448 = vld [vmem:[#allocation8 + $0xa80] sm:$0xff]
        %v3449 = vld [vmem:[#allocation8 + $0xa88] sm:$0xff]
        %v3450 = vld [vmem:[#allocation8 + $0xa90] sm:$0xff]
        %v3451 = vld [vmem:[#allocation8 + $0xa98] sm:$0xff]
        %v3452 = vld [vmem:[#allocation8 + $0xaa0] sm:$0xff]
        %v3453 = vld [vmem:[#allocation8 + $0xaa8] sm:$0xff]
        %v3454 = vld [vmem:[#allocation8 + $0xab0] sm:$0xff]
        %v3455 = vld [vmem:[#allocation8 + $0xab8] sm:$0xff]
        %v3456 = vld [vmem:[#allocation8 + $0xac0] sm:$0xff]
        %v3457 = vld [vmem:[#allocation8 + $0xac8] sm:$0xff]
        %v3458 = vld [vmem:[#allocation8 + $0xad0] sm:$0xff]
        %v3459 = vld [vmem:[#allocation8 + $0xad8] sm:$0xff]
        %v3460 = vld [vmem:[#allocation8 + $0xae0] sm:$0xff]
        %v3461 = vld [vmem:[#allocation8 + $0xae8] sm:$0xff]
        %v3462 = vld [vmem:[#allocation8 + $0xaf0] sm:$0xff]
        %v3463 = vld [vmem:[#allocation8 + $0xaf8] sm:$0xff]
        %v3464 = vld [vmem:[#allocation8 + $0xb00] sm:$0xff]
        %v3465 = vld [vmem:[#allocation8 + $0xb08] sm:$0xff]
        %v3466 = vld [vmem:[#allocation8 + $0xb10] sm:$0xff]
        %v3467 = vld [vmem:[#allocation8 + $0xb18] sm:$0xff]
        %v3468 = vld [vmem:[#allocation8 + $0xb20] sm:$0xff]
        %v3469 = vld [vmem:[#allocation8 + $0xb28] sm:$0xff]
        %v3470 = vld [vmem:[#allocation8 + $0xb30] sm:$0xff]
        %v3471 = vld [vmem:[#allocation8 + $0xb38] sm:$0xff]
        %v3472 = vld [vmem:[#allocation8 + $0xb40] sm:$0xff]
        %v3473 = vld [vmem:[#allocation8 + $0xb48] sm:$0xff]
        %v3474 = vld [vmem:[#allocation8 + $0xb50] sm:$0xff]
        %v3475 = vld [vmem:[#allocation8 + $0xb58] sm:$0xff]
        %v3476 = vld [vmem:[#allocation8 + $0xb60] sm:$0xff]
        %v3477 = vld [vmem:[#allocation8 + $0xb68] sm:$0xff]
        %v3478 = vld [vmem:[#allocation8 + $0xb70] sm:$0xff]
        %v3479 = vld [vmem:[#allocation8 + $0xb78] sm:$0xff]
        %v3480 = vld [vmem:[#allocation8 + $0xb80] sm:$0xff]
        %v3481 = vld [vmem:[#allocation8 + $0xb88] sm:$0xff]
        %v3482 = vld [vmem:[#allocation8 + $0xb90] sm:$0xff]
        %v3483 = vld [vmem:[#allocation8 + $0xb98] sm:$0xff]
        %v3484 = vld [vmem:[#allocation8 + $0xba0] sm:$0xff]
        %v3485 = vld [vmem:[#allocation8 + $0xba8] sm:$0xff]
        %v3486 = vld [vmem:[#allocation8 + $0xbb0] sm:$0xff]
        %v3487 = vld [vmem:[#allocation8 + $0xbb8] sm:$0xff]
        %v3488 = vld [vmem:[#allocation8 + $0xbc0] sm:$0xff]
        %v3489 = vld [vmem:[#allocation8 + $0xbc8] sm:$0xff]
        %v3490 = vld [vmem:[#allocation8 + $0xbd0] sm:$0xff]
        %v3491 = vld [vmem:[#allocation8 + $0xbd8] sm:$0xff]
        %v3492 = vld [vmem:[#allocation8 + $0xbe0] sm:$0xff]
        %v3493 = vld [vmem:[#allocation8 + $0xbe8] sm:$0xff]
        %v3494 = vld [vmem:[#allocation8 + $0xbf0] sm:$0xff]
        %v3495 = vld [vmem:[#allocation8 + $0xbf8] sm:$0xff]
        %v3496 = vld [vmem:[#allocation8 + $0xc00] sm:$0xff]
        %v3497 = vld [vmem:[#allocation8 + $0xc08] sm:$0xff]
        %v3498 = vld [vmem:[#allocation8 + $0xc10] sm:$0xff]
        %v3499 = vld [vmem:[#allocation8 + $0xc18] sm:$0xff]
        %v3500 = vld [vmem:[#allocation8 + $0xc20] sm:$0xff]
        %v3501 = vld [vmem:[#allocation8 + $0xc28] sm:$0xff]
        %v3502 = vld [vmem:[#allocation8 + $0xc30] sm:$0xff]
        %v3503 = vld [vmem:[#allocation8 + $0xc38] sm:$0xff]
        %v3504 = vld [vmem:[#allocation8 + $0xc40] sm:$0xff]
        %v3505 = vld [vmem:[#allocation8 + $0xc48] sm:$0xff]
        %v3506 = vld [vmem:[#allocation8 + $0xc50] sm:$0xff]
        %v3507 = vld [vmem:[#allocation8 + $0xc58] sm:$0xff]
        %v3508 = vld [vmem:[#allocation8 + $0xc60] sm:$0xff]
        %v3509 = vld [vmem:[#allocation8 + $0xc68] sm:$0xff]
        %v3510 = vld [vmem:[#allocation8 + $0xc70] sm:$0xff]
        %v3511 = vld [vmem:[#allocation8 + $0xc78] sm:$0xff]
        %v3512 = vld [vmem:[#allocation8 + $0xc80] sm:$0xff]
        %v3513 = vld [vmem:[#allocation8 + $0xc88] sm:$0xff]
        %v3514 = vld [vmem:[#allocation8 + $0xc90] sm:$0xff]
        %v3515 = vld [vmem:[#allocation8 + $0xc98] sm:$0xff]
        %v3516 = vld [vmem:[#allocation8 + $0xca0] sm:$0xff]
        %v3517 = vld [vmem:[#allocation8 + $0xca8] sm:$0xff]
        %v3518 = vld [vmem:[#allocation8 + $0xcb0] sm:$0xff]
        %v3519 = vld [vmem:[#allocation8 + $0xcb8] sm:$0xff]
        %v3520 = vld [vmem:[#allocation8 + $0xcc0] sm:$0xff]
        %v3521 = vld [vmem:[#allocation8 + $0xcc8] sm:$0xff]
        %v3522 = vld [vmem:[#allocation8 + $0xcd0] sm:$0xff]
        %v3523 = vld [vmem:[#allocation8 + $0xcd8] sm:$0xff]
        %v3524 = vld [vmem:[#allocation8 + $0xce0] sm:$0xff]
        %v3525 = vld [vmem:[#allocation8 + $0xce8] sm:$0xff]
        %v3526 = vld [vmem:[#allocation8 + $0xcf0] sm:$0xff]
        %v3527 = vld [vmem:[#allocation8 + $0xcf8] sm:$0xff]
        %v3528 = vld [vmem:[#allocation8 + $0xd00] sm:$0xff]
        %v3529 = vld [vmem:[#allocation8 + $0xd08] sm:$0xff]
        %v3530 = vld [vmem:[#allocation8 + $0xd10] sm:$0xff]
        %v3531 = vld [vmem:[#allocation8 + $0xd18] sm:$0xff]
        %v3532 = vld [vmem:[#allocation8 + $0xd20] sm:$0xff]
        %v3533 = vld [vmem:[#allocation8 + $0xd28] sm:$0xff]
        %v3534 = vld [vmem:[#allocation8 + $0xd30] sm:$0xff]
        %v3535 = vld [vmem:[#allocation8 + $0xd38] sm:$0xff]
        %v3536 = vld [vmem:[#allocation8 + $0xd40] sm:$0xff]
        %v3537 = vld [vmem:[#allocation8 + $0xd48] sm:$0xff]
        %v3538 = vld [vmem:[#allocation8 + $0xd50] sm:$0xff]
        %v3539 = vld [vmem:[#allocation8 + $0xd58] sm:$0xff]
        %v3540 = vld [vmem:[#allocation8 + $0xd60] sm:$0xff]
        %v3541 = vld [vmem:[#allocation8 + $0xd68] sm:$0xff]
        %v3542 = vld [vmem:[#allocation8 + $0xd70] sm:$0xff]
        %v3543 = vld [vmem:[#allocation8 + $0xd78] sm:$0xff]
        %v3544 = vld [vmem:[#allocation8 + $0xd80] sm:$0xff]
        %v3545 = vld [vmem:[#allocation8 + $0xd88] sm:$0xff]
        %v3546 = vld [vmem:[#allocation8 + $0xd90] sm:$0xff]
        %v3547 = vld [vmem:[#allocation8 + $0xd98] sm:$0xff]
        %v3548 = vld [vmem:[#allocation8 + $0xda0] sm:$0xff]
        %v3549 = vld [vmem:[#allocation8 + $0xda8] sm:$0xff]
        %v3550 = vld [vmem:[#allocation8 + $0xdb0] sm:$0xff]
        %v3551 = vld [vmem:[#allocation8 + $0xdb8] sm:$0xff]
        %v3552 = vld [vmem:[#allocation8 + $0xdc0] sm:$0xff]
        %v3553 = vld [vmem:[#allocation8 + $0xdc8] sm:$0xff]
        %v3554 = vld [vmem:[#allocation8 + $0xdd0] sm:$0xff]
        %v3555 = vld [vmem:[#allocation8 + $0xdd8] sm:$0xff]
        %v3556 = vld [vmem:[#allocation8 + $0xde0] sm:$0xff]
        %v3557 = vld [vmem:[#allocation8 + $0xde8] sm:$0xff]
        %v3558 = vld [vmem:[#allocation8 + $0xdf0] sm:$0xff]
        %v3559 = vld [vmem:[#allocation8 + $0xdf8] sm:$0xff]
        %v3560 = vld [vmem:[#allocation8 + $0xe00] sm:$0xff]
        %v3561 = vld [vmem:[#allocation8 + $0xe08] sm:$0xff]
        %v3562 = vld [vmem:[#allocation8 + $0xe10] sm:$0xff]
        %v3563 = vld [vmem:[#allocation8 + $0xe18] sm:$0xff]
        %v3564 = vld [vmem:[#allocation8 + $0xe20] sm:$0xff]
        %v3565 = vld [vmem:[#allocation8 + $0xe28] sm:$0xff]
        %v3566 = vld [vmem:[#allocation8 + $0xe30] sm:$0xff]
        %v3567 = vld [vmem:[#allocation8 + $0xe38] sm:$0xff]
        %v3568 = vld [vmem:[#allocation8 + $0xe40] sm:$0xff]
        %v3569 = vld [vmem:[#allocation8 + $0xe48] sm:$0xff]
        %v3570 = vld [vmem:[#allocation8 + $0xe50] sm:$0xff]
        %v3571 = vld [vmem:[#allocation8 + $0xe58] sm:$0xff]
        %v3572 = vld [vmem:[#allocation8 + $0xe60] sm:$0xff]
        %v3573 = vld [vmem:[#allocation8 + $0xe68] sm:$0xff]
        %v3574 = vld [vmem:[#allocation8 + $0xe70] sm:$0xff]
        %v3575 = vld [vmem:[#allocation8 + $0xe78] sm:$0xff]
        %v3576 = vld [vmem:[#allocation8 + $0xe80] sm:$0xff]
        %v3577 = vld [vmem:[#allocation8 + $0xe88] sm:$0xff]
        %v3578 = vld [vmem:[#allocation8 + $0xe90] sm:$0xff]
        %v3579 = vld [vmem:[#allocation8 + $0xe98] sm:$0xff]
        %v3580 = vld [vmem:[#allocation8 + $0xea0] sm:$0xff]
        %v3581 = vld [vmem:[#allocation8 + $0xea8] sm:$0xff]
        %v3582 = vld [vmem:[#allocation8 + $0xeb0] sm:$0xff]
        %v3583 = vld [vmem:[#allocation8 + $0xeb8] sm:$0xff]
        %v3584 = vld [vmem:[#allocation8 + $0xec0] sm:$0xff]
        %v3585 = vld [vmem:[#allocation8 + $0xec8] sm:$0xff]
        %v3586 = vld [vmem:[#allocation8 + $0xed0] sm:$0xff]
        %v3587 = vld [vmem:[#allocation8 + $0xed8] sm:$0xff]
        %v3588 = vld [vmem:[#allocation8 + $0xee0] sm:$0xff]
        %v3589 = vld [vmem:[#allocation8 + $0xee8] sm:$0xff]
        %v3590 = vld [vmem:[#allocation8 + $0xef0] sm:$0xff]
        %v3591 = vld [vmem:[#allocation8 + $0xef8] sm:$0xff]
        %v3592 = vld [vmem:[#allocation8 + $0xf00] sm:$0xff]
        %v3593 = vld [vmem:[#allocation8 + $0xf08] sm:$0xff]
        %v3594 = vld [vmem:[#allocation8 + $0xf10] sm:$0xff]
        %v3595 = vld [vmem:[#allocation8 + $0xf18] sm:$0xff]
        %v3596 = vld [vmem:[#allocation8 + $0xf20] sm:$0xff]
        %v3597 = vld [vmem:[#allocation8 + $0xf28] sm:$0xff]
        %v3598 = vld [vmem:[#allocation8 + $0xf30] sm:$0xff]
        %v3599 = vld [vmem:[#allocation8 + $0xf38] sm:$0xff]
        %v3600 = vld [vmem:[#allocation8 + $0xf40] sm:$0xff]
        %v3601 = vld [vmem:[#allocation8 + $0xf48] sm:$0xff]
        %v3602 = vld [vmem:[#allocation8 + $0xf50] sm:$0xff]
        %v3603 = vld [vmem:[#allocation8 + $0xf58] sm:$0xff]
        %v3604 = vld [vmem:[#allocation8 + $0xf60] sm:$0xff]
        %v3605 = vld [vmem:[#allocation8 + $0xf68] sm:$0xff]
        %v3606 = vld [vmem:[#allocation8 + $0xf70] sm:$0xff]
        %v3607 = vld [vmem:[#allocation8 + $0xf78] sm:$0xff]
        %v3608 = vld [vmem:[#allocation8 + $0xf80] sm:$0xff]
        %v3609 = vld [vmem:[#allocation8 + $0xf88] sm:$0xff]
        %v3610 = vld [vmem:[#allocation8 + $0xf90] sm:$0xff]
        %v3611 = vld [vmem:[#allocation8 + $0xf98] sm:$0xff]
        %v3612 = vld [vmem:[#allocation8 + $0xfa0] sm:$0xff]
        %v3613 = vld [vmem:[#allocation8 + $0xfa8] sm:$0xff]
        %v3614 = vld [vmem:[#allocation8 + $0xfb0] sm:$0xff]
        %v3615 = vld [vmem:[#allocation8 + $0xfb8] sm:$0xff]
        %v3616 = vld [vmem:[#allocation8 + $0xfc0] sm:$0xff]
        %v3617 = vld [vmem:[#allocation8 + $0xfc8] sm:$0xff]
        %v3618 = vld [vmem:[#allocation8 + $0xfd0] sm:$0xff]
        %v3619 = vld [vmem:[#allocation8 + $0xfd8] sm:$0xff]
        %v3620 = vld [vmem:[#allocation8 + $0xfe0] sm:$0xff]
        %v3621 = vld [vmem:[#allocation8 + $0xfe8] sm:$0xff]
        %v3622 = vld [vmem:[#allocation8 + $0xff0] sm:$0xff]
        %v3623 = vld [vmem:[#allocation8 + $0xff8] sm:$0xff]
        %v3624 = vld [vmem:[#allocation8 + $0x1000] sm:$0xff]
        %v3625 = vld [vmem:[#allocation8 + $0x1008] sm:$0xff]
        %v3626 = vld [vmem:[#allocation8 + $0x1010] sm:$0xff]
        %v3627 = vld [vmem:[#allocation8 + $0x1018] sm:$0xff]
        %v3628 = vld [vmem:[#allocation8 + $0x1020] sm:$0xff]
        %v3629 = vld [vmem:[#allocation8 + $0x1028] sm:$0xff]
        %v3630 = vld [vmem:[#allocation8 + $0x1030] sm:$0xff]
        %v3631 = vld [vmem:[#allocation8 + $0x1038] sm:$0xff]
        %v3632 = vld [vmem:[#allocation8 + $0x1040] sm:$0xff]
        %v3633 = vld [vmem:[#allocation8 + $0x1048] sm:$0xff]
        %v3634 = vld [vmem:[#allocation8 + $0x1050] sm:$0xff]
        %v3635 = vld [vmem:[#allocation8 + $0x1058] sm:$0xff]
        %v3636 = vld [vmem:[#allocation8 + $0x1060] sm:$0xff]
        %v3637 = vld [vmem:[#allocation8 + $0x1068] sm:$0xff]
        %v3638 = vld [vmem:[#allocation8 + $0x1070] sm:$0xff]
        %v3639 = vld [vmem:[#allocation8 + $0x1078] sm:$0xff]
        %v3640 = vld [vmem:[#allocation8 + $0x1080] sm:$0xff]
        %v3641 = vld [vmem:[#allocation8 + $0x1088] sm:$0xff]
        %v3642 = vld [vmem:[#allocation8 + $0x1090] sm:$0xff]
        %v3643 = vld [vmem:[#allocation8 + $0x1098] sm:$0xff]
        %v3644 = vld [vmem:[#allocation8 + $0x10a0] sm:$0xff]
        %v3645 = vld [vmem:[#allocation8 + $0x10a8] sm:$0xff]
        %v3646 = vld [vmem:[#allocation8 + $0x10b0] sm:$0xff]
        %v3647 = vld [vmem:[#allocation8 + $0x10b8] sm:$0xff]
        %v3648 = vld [vmem:[#allocation8 + $0x10c0] sm:$0xff]
        %v3649 = vld [vmem:[#allocation8 + $0x10c8] sm:$0xff]
        %v3650 = vld [vmem:[#allocation8 + $0x10d0] sm:$0xff]
        %v3651 = vld [vmem:[#allocation8 + $0x10d8] sm:$0xff]
        %v3652 = vld [vmem:[#allocation8 + $0x10e0] sm:$0xff]
        %v3653 = vld [vmem:[#allocation8 + $0x10e8] sm:$0xff]
        %v3654 = vld [vmem:[#allocation8 + $0x10f0] sm:$0xff]
        %v3655 = vld [vmem:[#allocation8 + $0x10f8] sm:$0xff]
        %v3656 = vld [vmem:[#allocation8 + $0x1100] sm:$0xff]
        %v3657 = vld [vmem:[#allocation8 + $0x1108] sm:$0xff]
        %v3658 = vld [vmem:[#allocation8 + $0x1110] sm:$0xff]
        %v3659 = vld [vmem:[#allocation8 + $0x1118] sm:$0xff]
        %v3660 = vld [vmem:[#allocation8 + $0x1120] sm:$0xff]
        %v3661 = vld [vmem:[#allocation8 + $0x1128] sm:$0xff]
        %v3662 = vld [vmem:[#allocation8 + $0x1130] sm:$0xff]
        %v3663 = vld [vmem:[#allocation8 + $0x1138] sm:$0xff]
        %v3664 = vld [vmem:[#allocation8 + $0x1140] sm:$0xff]
        %v3665 = vld [vmem:[#allocation8 + $0x1148] sm:$0xff]
        %v3666 = vld [vmem:[#allocation8 + $0x1150] sm:$0xff]
        %v3667 = vld [vmem:[#allocation8 + $0x1158] sm:$0xff]
        %v3668 = vld [vmem:[#allocation8 + $0x1160] sm:$0xff]
        %v3669 = vld [vmem:[#allocation8 + $0x1168] sm:$0xff]
        %v3670 = vld [vmem:[#allocation8 + $0x1170] sm:$0xff]
        %v3671 = vld [vmem:[#allocation8 + $0x1178] sm:$0xff]
        %v3672 = vld [vmem:[#allocation8 + $0x1180] sm:$0xff]
        %v3673 = vld [vmem:[#allocation8 + $0x1188] sm:$0xff]
        %v3674 = vld [vmem:[#allocation8 + $0x1190] sm:$0xff]
        %v3675 = vld [vmem:[#allocation8 + $0x1198] sm:$0xff]
        %v3676 = vld [vmem:[#allocation8 + $0x11a0] sm:$0xff]
        %v3677 = vld [vmem:[#allocation8 + $0x11a8] sm:$0xff]
        %v3678 = vld [vmem:[#allocation8 + $0x11b0] sm:$0xff]
        %v3679 = vld [vmem:[#allocation8 + $0x11b8] sm:$0xff]
        %v3680 = vld [vmem:[#allocation8 + $0x11c0] sm:$0xff]
        %v3681 = vld [vmem:[#allocation8 + $0x11c8] sm:$0xff]
        %v3682 = vld [vmem:[#allocation8 + $0x11d0] sm:$0xff]
        %v3683 = vld [vmem:[#allocation8 + $0x11d8] sm:$0xff]
        %v3684 = vld [vmem:[#allocation8 + $0x11e0] sm:$0xff]
        %v3685 = vld [vmem:[#allocation8 + $0x11e8] sm:$0xff]
        %v3686 = vld [vmem:[#allocation8 + $0x11f0] sm:$0xff]
        %v3687 = vld [vmem:[#allocation8 + $0x11f8] sm:$0xff]
        %v3688 = vld [vmem:[#allocation10] sm:$0x7]
        %v3690 = vlaneseq
        %v3691 = vshrl.u32 %v3690, 7
        %v3692 = vsub.s32 0, %v3691
        %v3693 = vrot.slane %v3688, %v3692
        %v3694 = vlaneseq
        %v3695 = vshrl.u32 %v3694, 7
        %v3696 = vsub.s32 1, %v3695
        %v3697 = vrot.slane %v3688, %v3696
        %v3698 = vlaneseq
        %v3699 = vshrl.u32 %v3698, 7
        %v3700 = vsub.s32 2, %v3699
        %v3701 = vrot.slane %v3688, %v3700
        %3705 = vmatprep.subr.mxu0 %v3113
        %3706 = vmatpush1.msra.mxu0 %v3112
        %3707 = vmatprep.subr.mxu0 %v3116
        %3708 = vmatpush1.msra.mxu0 %v3115
        %3709 = vmatprep.subr.mxu0 %v3119
        %3710 = vmatpush1.msra.mxu0 %v3118
        %3711 = vmatprep.subr.mxu0 %v3122
        %3712 = vmatpush1.msra.mxu0 %v3121
        %3713 = vmatprep.subr.mxu0 %v3125
        %3714 = vmatpush1.msra.mxu0 %v3124
        %3715 = vmatprep.subr.mxu0 %v3128
        %3716 = vmatpush1.msra.mxu0 %v3127
        %3717 = vmatprep.subr.mxu0 %v3131
        %3718 = vmatpush1.msra.mxu0 %v3130
        %3719 = vmatprep.subr.mxu0 %v3134
        %3720 = vmatpush1.msra.mxu0 %v3133
        %3721 = vmatprep.subr.mxu0 %v3137
        %3722 = vmatpush1.msra.mxu0 %v3136
        %3723 = vmatprep.subr.mxu0 %v3140
        %3724 = vmatpush1.msra.mxu0 %v3139
        %3725 = vmatprep.subr.mxu0 %v3143
        %3726 = vmatpush1.msra.mxu0 %v3142
        %3727 = vmatprep.subr.mxu0 %v3146
        %3728 = vmatpush1.msra.mxu0 %v3145
        %3729 = vmatprep.subr.mxu0 %v3149
        %3730 = vmatpush1.msra.mxu0 %v3148
        %3731 = vmatprep.subr.mxu0 %v3152
        %3732 = vmatpush1.msra.mxu0 %v3151
        %3733 = vmatprep.subr.mxu0 %v3155
        %3734 = vmatpush1.msra.mxu0 %v3154
        %3735 = vmatprep.subr.mxu0 %v3158
        %3736 = vmatpush1.msra.mxu0 %v3157
        %3737 = vmatprep.subr.mxu0 %v3161
        %3738 = vmatpush1.msra.mxu0 %v3160
        %3739 = vmatprep.subr.mxu0 %v3164
        %3740 = vmatpush1.msra.mxu0 %v3163
        %3741 = vmatprep.subr.mxu0 %v3167
        %3742 = vmatpush1.msra.mxu0 %v3166
        %3743 = vmatprep.subr.mxu0 %v3170
        %3744 = vmatpush1.msra.mxu0 %v3169
        %3745 = vmatprep.subr.mxu0 %v3173
        %3746 = vmatpush1.msra.mxu0 %v3172
        %3747 = vmatprep.subr.mxu0 %v3176
        %3748 = vmatpush1.msra.mxu0 %v3175
        %3749 = vmatprep.subr.mxu0 %v3179
        %3750 = vmatpush1.msra.mxu0 %v3178
        %3751 = vmatprep.subr.mxu0 %v3182
        %3752 = vmatpush1.msra.mxu0 %v3181
        %3753 = vmatprep.subr.mxu0 %v3185
        %3754 = vmatpush1.msra.mxu0 %v3184
        %3755 = vmatprep.subr.mxu0 %v3188
        %3756 = vmatpush1.msra.mxu0 %v3187
        %3757 = vmatprep.subr.mxu0 %v3191
        %3758 = vmatpush1.msra.mxu0 %v3190
        %3759 = vmatprep.subr.mxu0 %v3194
        %3760 = vmatpush1.msra.mxu0 %v3193
        %3761 = vmatprep.subr.mxu0 %v3197
        %3762 = vmatpush1.msra.mxu0 %v3196
        %3763 = vmatprep.subr.mxu0 %v3200
        %3764 = vmatpush1.msra.mxu0 %v3199
        %3765 = vmatprep.subr.mxu0 %v3203
        %3766 = vmatpush1.msra.mxu0 %v3202
        %3767 = vmatprep.subr.mxu0 %v3206
        %3768 = vmatpush1.msra.mxu0 %v3205
        %3769 = vmatprep.mubr.f32.mxu0 %v2921
        %3770 = vmatmul.mubr.f32.gmra.mrb[0].mxu0 %v2920
        %v3771 = vpop.f32.mrb[0].mxu0
        %v3772 = vadd.f32 %v3693, %v3771
        %v3773 = vpop.f32.mrb[0].mxu0
        %v3774 = vadd.f32 %v3697, %v3773
        %3775 = vmatprep.mubr.f32.mxu0 %v2933
        %3776 = vmatmul.mubr.f32.gmra.mrb[0].mxu0 %v2932
        %v3777 = vpop.f32.mrb[0].mxu0
        %v3778 = vadd.f32 %v3693, %v3777
        %v3779 = vpop.f32.mrb[0].mxu0
        %v3780 = vadd.f32 %v3697, %v3779
        %3781 = vmatprep.mubr.f32.mxu0 %v2945
        %3782 = vmatmul.mubr.f32.gmra.mrb[0].mxu0 %v2944
        %v3783 = vpop.f32.mrb[0].mxu0
        %v3784 = vadd.f32 %v3693, %v3783
        %v3785 = vpop.f32.mrb[0].mxu0
        %v3786 = vadd.f32 %v3697, %v3785
        %3787 = vmatprep.mubr.f32.mxu0 %v2957
        %3788 = vmatmul.mubr.f32.gmra.mrb[0].mxu0 %v2956
        %v3789 = vpop.f32.mrb[0].mxu0
        %v3790 = vadd.f32 %v3693, %v3789
        %v3791 = vpop.f32.mrb[0].mxu0
        %v3792 = vadd.f32 %v3697, %v3791
        %3793 = vmatprep.mubr.f32.mxu0 %v2969
        %3794 = vmatmul.mubr.f32.gmra.mrb[0].mxu0 %v2968
        %v3795 = vpop.f32.mrb[0].mxu0
        %v3796 = vadd.f32 %v3693, %v3795
        %v3797 = vpop.f32.mrb[0].mxu0
        %v3798 = vadd.f32 %v3697, %v3797
        %3799 = vmatprep.mubr.f32.mxu0 %v2981
        %3800 = vmatmul.mubr.f32.gmra.mrb[0].mxu0 %v2980
        %v3801 = vpop.f32.mrb[0].mxu0
        %v3802 = vadd.f32 %v3693, %v3801
        %v3803 = vpop.f32.mrb[0].mxu0
        %v3804 = vadd.f32 %v3697, %v3803
        %3805 = vmatprep.mubr.f32.mxu0 %v2993
        %3806 = vmatmul.mubr.f32.gmra.mrb[0].mxu0 %v2992
        %v3807 = vpop.f32.mrb[0].mxu0
        %v3808 = vadd.f32 %v3693, %v3807
        %v3809 = vpop.f32.mrb[0].mxu0
        %v3810 = vadd.f32 %v3697, %v3809
        %3811 = vmatprep.mubr.f32.mxu0 %v3005
        %3812 = vmatmul.mubr.f32.gmra.mrb[0].mxu0 %v3004
        %v3813 = vpop.f32.mrb[0].mxu0
        %v3814 = vadd.f32 %v3693, %v3813
        %v3815 = vpop.f32.mrb[0].mxu0
        %v3816 = vadd.f32 %v3697, %v3815
        %3817 = vmatprep.mubr.f32.mxu0 %v3017
        %3818 = vmatmul.mubr.f32.gmra.mrb[0].mxu0 %v3016
        %v3819 = vpop.f32.mrb[0].mxu0
        %v3820 = vadd.f32 %v3693, %v3819
        %v3821 = vpop.f32.mrb[0].mxu0
        %v3822 = vadd.f32 %v3697, %v3821
        %3823 = vmatprep.mubr.f32.mxu0 %v3029
        %3824 = vmatmul.mubr.f32.gmra.mrb[0].mxu0 %v3028
        %v3825 = vpop.f32.mrb[0].mxu0
        %v3826 = vadd.f32 %v3693, %v3825
        %v3827 = vpop.f32.mrb[0].mxu0
        %v3828 = vadd.f32 %v3697, %v3827
        %3829 = vmatprep.mubr.f32.mxu0 %v3041
        %3830 = vmatmul.mubr.f32.gmra.mrb[0].mxu0 %v3040
        %v3831 = vpop.f32.mrb[0].mxu0
        %v3832 = vadd.f32 %v3693, %v3831
        %v3833 = vpop.f32.mrb[0].mxu0
        %v3834 = vadd.f32 %v3697, %v3833
        %3835 = vmatprep.mubr.f32.mxu0 %v3053
        %3836 = vmatmul.mubr.f32.gmra.mrb[0].mxu0 %v3052
        %v3837 = vpop.f32.mrb[0].mxu0
        %v3838 = vadd.f32 %v3693, %v3837
        %v3839 = vpop.f32.mrb[0].mxu0
        %v3840 = vadd.f32 %v3697, %v3839
        %3841 = vmatprep.mubr.f32.mxu0 %v3065
        %3842 = vmatmul.mubr.f32.gmra.mrb[0].mxu0 %v3064
        %v3843 = vpop.f32.mrb[0].mxu0
        %v3844 = vadd.f32 %v3693, %v3843
        %v3845 = vpop.f32.mrb[0].mxu0
        %v3846 = vadd.f32 %v3697, %v3845
        %3847 = vmatprep.mubr.f32.mxu0 %v3077
        %3848 = vmatmul.mubr.f32.gmra.mrb[0].mxu0 %v3076
        %v3849 = vpop.f32.mrb[0].mxu0
        %v3850 = vadd.f32 %v3693, %v3849
        %v3851 = vpop.f32.mrb[0].mxu0
        %v3852 = vadd.f32 %v3697, %v3851
        %3853 = vmatprep.mubr.f32.mxu0 %v3089
        %3854 = vmatmul.mubr.f32.gmra.mrb[0].mxu0 %v3088
        %v3855 = vpop.f32.mrb[0].mxu0
        %v3856 = vadd.f32 %v3693, %v3855
        %v3857 = vpop.f32.mrb[0].mxu0
        %v3858 = vadd.f32 %v3697, %v3857
        %3859 = vmatprep.mubr.f32.mxu0 %v3101
        %3860 = vmatmul.mubr.f32.gmra.mrb[0].mxu0 %v3100
        %v3861 = vpop.f32.mrb[0].mxu0
        %v3862 = vadd.f32 %v3693, %v3861
        %v3863 = vpop.f32.mrb[0].mxu0
        %v3864 = vadd.f32 %v3697, %v3863
        %3865 = vdwg.mxu0
        %3866 = vmatprep.subr.mxu0 %v3209
        %3867 = vmatpush1.msra.mxu0 %v3208
        %3868 = vmatprep.subr.mxu0 %v3212
        %3869 = vmatpush1.msra.mxu0 %v3211
        %3870 = vmatprep.subr.mxu0 %v3215
        %3871 = vmatpush1.msra.mxu0 %v3214
        %3872 = vmatprep.subr.mxu0 %v3218
        %3873 = vmatpush1.msra.mxu0 %v3217
        %3874 = vmatprep.subr.mxu0 %v3221
        %3875 = vmatpush1.msra.mxu0 %v3220
        %3876 = vmatprep.subr.mxu0 %v3224
        %3877 = vmatpush1.msra.mxu0 %v3223
        %3878 = vmatprep.subr.mxu0 %v3227
        %3879 = vmatpush1.msra.mxu0 %v3226
        %3880 = vmatprep.subr.mxu0 %v3230
        %3881 = vmatpush1.msra.mxu0 %v3229
        %3882 = vmatprep.subr.mxu0 %v3233
        %3883 = vmatpush1.msra.mxu0 %v3232
        %3884 = vmatprep.subr.mxu0 %v3236
        %3885 = vmatpush1.msra.mxu0 %v3235
        %3886 = vmatprep.subr.mxu0 %v3239
        %3887 = vmatpush1.msra.mxu0 %v3238
        %3888 = vmatprep.subr.mxu0 %v3242
        %3889 = vmatpush1.msra.mxu0 %v3241
        %3890 = vmatprep.subr.mxu0 %v3245
        %3891 = vmatpush1.msra.mxu0 %v3244
        %3892 = vmatprep.subr.mxu0 %v3248
        %3893 = vmatpush1.msra.mxu0 %v3247
        %3894 = vmatprep.subr.mxu0 %v3251
        %3895 = vmatpush1.msra.mxu0 %v3250
        %3896 = vmatprep.subr.mxu0 %v3254
        %3897 = vmatpush1.msra.mxu0 %v3253
        %3898 = vmatprep.subr.mxu0 %v3257
        %3899 = vmatpush1.msra.mxu0 %v3256
        %3900 = vmatprep.subr.mxu0 %v3260
        %3901 = vmatpush1.msra.mxu0 %v3259
        %3902 = vmatprep.subr.mxu0 %v3263
        %3903 = vmatpush1.msra.mxu0 %v3262
        %3904 = vmatprep.subr.mxu0 %v3266
        %3905 = vmatpush1.msra.mxu0 %v3265
        %3906 = vmatprep.subr.mxu0 %v3269
        %3907 = vmatpush1.msra.mxu0 %v3268
        %3908 = vmatprep.subr.mxu0 %v3272
        %3909 = vmatpush1.msra.mxu0 %v3271
        %3910 = vmatprep.subr.mxu0 %v3275
        %3911 = vmatpush1.msra.mxu0 %v3274
        %3912 = vmatprep.subr.mxu0 %v3278
        %3913 = vmatpush1.msra.mxu0 %v3277
        %3914 = vmatprep.subr.mxu0 %v3281
        %3915 = vmatpush1.msra.mxu0 %v3280
        %3916 = vmatprep.subr.mxu0 %v3284
        %3917 = vmatpush1.msra.mxu0 %v3283
        %3918 = vmatprep.subr.mxu0 %v3287
        %3919 = vmatpush1.msra.mxu0 %v3286
        %3920 = vmatprep.subr.mxu0 %v3290
        %3921 = vmatpush1.msra.mxu0 %v3289
        %3922 = vmatprep.subr.mxu0 %v3293
        %3923 = vmatpush1.msra.mxu0 %v3292
        %3924 = vmatprep.subr.mxu0 %v3296
        %3925 = vmatpush1.msra.mxu0 %v3295
        %3926 = vmatprep.subr.mxu0 %v3299
        %3927 = vmatpush1.msra.mxu0 %v3298
        %3928 = vmatprep.subr.mxu0 %v3302
        %3929 = vmatpush1.msra.mxu0 %v3301
        %3930 = vmatprep.mubr.f32.mxu0 %v2923
        %3931 = vmatmul.mubr.f32.gmra.mrb[0].mxu0 %v2922
        %v3932 = vpop.f32.mrb[0].mxu0
        %v3933 = vadd.f32 %v3772, %v3932
        %v3934 = vpop.f32.mrb[0].mxu0
        %v3935 = vadd.f32 %v3774, %v3934
        %3936 = vmatprep.mubr.f32.mxu0 %v2935
        %3937 = vmatmul.mubr.f32.gmra.mrb[0].mxu0 %v2934
        %v3938 = vpop.f32.mrb[0].mxu0
        %v3939 = vadd.f32 %v3778, %v3938
        %v3940 = vpop.f32.mrb[0].mxu0
        %v3941 = vadd.f32 %v3780, %v3940
        %3942 = vmatprep.mubr.f32.mxu0 %v2947
        %3943 = vmatmul.mubr.f32.gmra.mrb[0].mxu0 %v2946
        %v3944 = vpop.f32.mrb[0].mxu0
        %v3945 = vadd.f32 %v3784, %v3944
        %v3946 = vpop.f32.mrb[0].mxu0
        %v3947 = vadd.f32 %v3786, %v3946
        %3948 = vmatprep.mubr.f32.mxu0 %v2959
        %3949 = vmatmul.mubr.f32.gmra.mrb[0].mxu0 %v2958
        %v3950 = vpop.f32.mrb[0].mxu0
        %v3951 = vadd.f32 %v3790, %v3950
        %v3952 = vpop.f32.mrb[0].mxu0
        %v3953 = vadd.f32 %v3792, %v3952
        %3954 = vmatprep.mubr.f32.mxu0 %v2971
        %3955 = vmatmul.mubr.f32.gmra.mrb[0].mxu0 %v2970
        %v3956 = vpop.f32.mrb[0].mxu0
        %v3957 = vadd.f32 %v3796, %v3956
        %v3958 = vpop.f32.mrb[0].mxu0
        %v3959 = vadd.f32 %v3798, %v3958
        %3960 = vmatprep.mubr.f32.mxu0 %v2983
        %3961 = vmatmul.mubr.f32.gmra.mrb[0].mxu0 %v2982
        %v3962 = vpop.f32.mrb[0].mxu0
        %v3963 = vadd.f32 %v3802, %v3962
        %v3964 = vpop.f32.mrb[0].mxu0
        %v3965 = vadd.f32 %v3804, %v3964
        %3966 = vmatprep.mubr.f32.mxu0 %v2995
        %3967 = vmatmul.mubr.f32.gmra.mrb[0].mxu0 %v2994
        %v3968 = vpop.f32.mrb[0].mxu0
        %v3969 = vadd.f32 %v3808, %v3968
        %v3970 = vpop.f32.mrb[0].mxu0
        %v3971 = vadd.f32 %v3810, %v3970
        %3972 = vmatprep.mubr.f32.mxu0 %v3007
        %3973 = vmatmul.mubr.f32.gmra.mrb[0].mxu0 %v3006
        %v3974 = vpop.f32.mrb[0].mxu0
        %v3975 = vadd.f32 %v3814, %v3974
        %v3976 = vpop.f32.mrb[0].mxu0
        %v3977 = vadd.f32 %v3816, %v3976
        %3978 = vmatprep.mubr.f32.mxu0 %v3019
        %3979 = vmatmul.mubr.f32.gmra.mrb[0].mxu0 %v3018
        %v3980 = vpop.f32.mrb[0].mxu0
        %v3981 = vadd.f32 %v3820, %v3980
        %v3982 = vpop.f32.mrb[0].mxu0
        %v3983 = vadd.f32 %v3822, %v3982
        %3984 = vmatprep.mubr.f32.mxu0 %v3031
        %3985 = vmatmul.mubr.f32.gmra.mrb[0].mxu0 %v3030
        %v3986 = vpop.f32.mrb[0].mxu0
        %v3987 = vadd.f32 %v3826, %v3986
        %v3988 = vpop.f32.mrb[0].mxu0
        %v3989 = vadd.f32 %v3828, %v3988
        %3990 = vmatprep.mubr.f32.mxu0 %v3043
        %3991 = vmatmul.mubr.f32.gmra.mrb[0].mxu0 %v3042
        %v3992 = vpop.f32.mrb[0].mxu0
        %v3993 = vadd.f32 %v3832, %v3992
        %v3994 = vpop.f32.mrb[0].mxu0
        %v3995 = vadd.f32 %v3834, %v3994
        %3996 = vmatprep.mubr.f32.mxu0 %v3055
        %3997 = vmatmul.mubr.f32.gmra.mrb[0].mxu0 %v3054
        %v3998 = vpop.f32.mrb[0].mxu0
        %v3999 = vadd.f32 %v3838, %v3998
        %v4000 = vpop.f32.mrb[0].mxu0
        %v4001 = vadd.f32 %v3840, %v4000
        %4002 = vmatprep.mubr.f32.mxu0 %v3067
        %4003 = vmatmul.mubr.f32.gmra.mrb[0].mxu0 %v3066
        %v4004 = vpop.f32.mrb[0].mxu0
        %v4005 = vadd.f32 %v3844, %v4004
        %v4006 = vpop.f32.mrb[0].mxu0
        %v4007 = vadd.f32 %v3846, %v4006
        %4008 = vmatprep.mubr.f32.mxu0 %v3079
        %4009 = vmatmul.mubr.f32.gmra.mrb[0].mxu0 %v3078
        %v4010 = vpop.f32.mrb[0].mxu0
        %v4011 = vadd.f32 %v3850, %v4010
        %v4012 = vpop.f32.mrb[0].mxu0
        %v4013 = vadd.f32 %v3852, %v4012
        %4014 = vmatprep.mubr.f32.mxu0 %v3091
        %4015 = vmatmul.mubr.f32.gmra.mrb[0].mxu0 %v3090
        %v4016 = vpop.f32.mrb[0].mxu0
        %v4017 = vadd.f32 %v3856, %v4016
        %v4018 = vpop.f32.mrb[0].mxu0
        %v4019 = vadd.f32 %v3858, %v4018
        %4020 = vmatprep.mubr.f32.mxu0 %v3103
        %4021 = vmatmul.mubr.f32.gmra.mrb[0].mxu0 %v3102
        %v4022 = vpop.f32.mrb[0].mxu0
        %v4023 = vadd.f32 %v3862, %v4022
        %v4024 = vpop.f32.mrb[0].mxu0
        %v4025 = vadd.f32 %v3864, %v4024
        %4026 = vdwg.mxu0
        %4027 = vmatprep.subr.mxu0 %v3305
        %4028 = vmatpush1.msra.mxu0 %v3304
        %4029 = vmatprep.subr.mxu0 %v3308
        %4030 = vmatpush1.msra.mxu0 %v3307
        %4031 = vmatprep.subr.mxu0 %v3311
        %4032 = vmatpush1.msra.mxu0 %v3310
        %4033 = vmatprep.subr.mxu0 %v3314
        %4034 = vmatpush1.msra.mxu0 %v3313
        %4035 = vmatprep.subr.mxu0 %v3317
        %4036 = vmatpush1.msra.mxu0 %v3316
        %4037 = vmatprep.subr.mxu0 %v3320
        %4038 = vmatpush1.msra.mxu0 %v3319
        %4039 = vmatprep.subr.mxu0 %v3323
        %4040 = vmatpush1.msra.mxu0 %v3322
        %4041 = vmatprep.subr.mxu0 %v3326
        %4042 = vmatpush1.msra.mxu0 %v3325
        %4043 = vmatprep.subr.mxu0 %v3329
        %4044 = vmatpush1.msra.mxu0 %v3328
        %4045 = vmatprep.subr.mxu0 %v3332
        %4046 = vmatpush1.msra.mxu0 %v3331
        %4047 = vmatprep.subr.mxu0 %v3335
        %4048 = vmatpush1.msra.mxu0 %v3334
        %4049 = vmatprep.subr.mxu0 %v3338
        %4050 = vmatpush1.msra.mxu0 %v3337
        %4051 = vmatprep.subr.mxu0 %v3341
        %4052 = vmatpush1.msra.mxu0 %v3340
        %4053 = vmatprep.subr.mxu0 %v3344
        %4054 = vmatpush1.msra.mxu0 %v3343
        %4055 = vmatprep.subr.mxu0 %v3347
        %4056 = vmatpush1.msra.mxu0 %v3346
        %4057 = vmatprep.subr.mxu0 %v3350
        %4058 = vmatpush1.msra.mxu0 %v3349
        %4059 = vmatprep.subr.mxu0 %v3353
        %4060 = vmatpush1.msra.mxu0 %v3352
        %4061 = vmatprep.subr.mxu0 %v3356
        %4062 = vmatpush1.msra.mxu0 %v3355
        %4063 = vmatprep.subr.mxu0 %v3359
        %4064 = vmatpush1.msra.mxu0 %v3358
        %4065 = vmatprep.subr.mxu0 %v3362
        %4066 = vmatpush1.msra.mxu0 %v3361
        %4067 = vmatprep.subr.mxu0 %v3365
        %4068 = vmatpush1.msra.mxu0 %v3364
        %4069 = vmatprep.subr.mxu0 %v3368
        %4070 = vmatpush1.msra.mxu0 %v3367
        %4071 = vmatprep.subr.mxu0 %v3371
        %4072 = vmatpush1.msra.mxu0 %v3370
        %4073 = vmatprep.subr.mxu0 %v3374
        %4074 = vmatpush1.msra.mxu0 %v3373
        %4075 = vmatprep.subr.mxu0 %v3377
        %4076 = vmatpush1.msra.mxu0 %v3376
        %4077 = vmatprep.subr.mxu0 %v3380
        %4078 = vmatpush1.msra.mxu0 %v3379
        %4079 = vmatprep.subr.mxu0 %v3383
        %4080 = vmatpush1.msra.mxu0 %v3382
        %4081 = vmatprep.subr.mxu0 %v3386
        %4082 = vmatpush1.msra.mxu0 %v3385
        %4083 = vmatprep.subr.mxu0 %v3389
        %4084 = vmatpush1.msra.mxu0 %v3388
        %4085 = vmatprep.subr.mxu0 %v3392
        %4086 = vmatpush1.msra.mxu0 %v3391
        %4087 = vmatprep.subr.mxu0 %v3395
        %4088 = vmatpush1.msra.mxu0 %v3394
        %4089 = vmatprep.subr.mxu0 %v3398
        %4090 = vmatpush1.msra.mxu0 %v3397
        %4091 = vmatprep.mubr.f32.mxu0 %v2925
        %4092 = vmatmul.mubr.f32.gmra.mrb[0].mxu0 %v2924
        %v4093 = vpop.f32.mrb[0].mxu0
        %v4094 = vadd.f32 %v3933, %v4093
        %v4095 = vpop.f32.mrb[0].mxu0
        %v4096 = vadd.f32 %v3935, %v4095
        %4097 = vmatprep.mubr.f32.mxu0 %v2937
        %4098 = vmatmul.mubr.f32.gmra.mrb[0].mxu0 %v2936
        %v4099 = vpop.f32.mrb[0].mxu0
        %v4100 = vadd.f32 %v3939, %v4099
        %v4101 = vpop.f32.mrb[0].mxu0
        %v4102 = vadd.f32 %v3941, %v4101
        %4103 = vmatprep.mubr.f32.mxu0 %v2949
        %4104 = vmatmul.mubr.f32.gmra.mrb[0].mxu0 %v2948
        %v4105 = vpop.f32.mrb[0].mxu0
        %v4106 = vadd.f32 %v3945, %v4105
        %v4107 = vpop.f32.mrb[0].mxu0
        %v4108 = vadd.f32 %v3947, %v4107
        %4109 = vmatprep.mubr.f32.mxu0 %v2961
        %4110 = vmatmul.mubr.f32.gmra.mrb[0].mxu0 %v2960
        %v4111 = vpop.f32.mrb[0].mxu0
        %v4112 = vadd.f32 %v3951, %v4111
        %v4113 = vpop.f32.mrb[0].mxu0
        %v4114 = vadd.f32 %v3953, %v4113
        %4115 = vmatprep.mubr.f32.mxu0 %v2973
        %4116 = vmatmul.mubr.f32.gmra.mrb[0].mxu0 %v2972
        %v4117 = vpop.f32.mrb[0].mxu0
        %v4118 = vadd.f32 %v3957, %v4117
        %v4119 = vpop.f32.mrb[0].mxu0
        %v4120 = vadd.f32 %v3959, %v4119
        %4121 = vmatprep.mubr.f32.mxu0 %v2985
        %4122 = vmatmul.mubr.f32.gmra.mrb[0].mxu0 %v2984
        %v4123 = vpop.f32.mrb[0].mxu0
        %v4124 = vadd.f32 %v3963, %v4123
        %v4125 = vpop.f32.mrb[0].mxu0
        %v4126 = vadd.f32 %v3965, %v4125
        %4127 = vmatprep.mubr.f32.mxu0 %v2997
        %4128 = vmatmul.mubr.f32.gmra.mrb[0].mxu0 %v2996
        %v4129 = vpop.f32.mrb[0].mxu0
        %v4130 = vadd.f32 %v3969, %v4129
        %v4131 = vpop.f32.mrb[0].mxu0
        %v4132 = vadd.f32 %v3971, %v4131
        %4133 = vmatprep.mubr.f32.mxu0 %v3009
        %4134 = vmatmul.mubr.f32.gmra.mrb[0].mxu0 %v3008
        %v4135 = vpop.f32.mrb[0].mxu0
        %v4136 = vadd.f32 %v3975, %v4135
        %v4137 = vpop.f32.mrb[0].mxu0
        %v4138 = vadd.f32 %v3977, %v4137
        %4139 = vmatprep.mubr.f32.mxu0 %v3021
        %4140 = vmatmul.mubr.f32.gmra.mrb[0].mxu0 %v3020
        %v4141 = vpop.f32.mrb[0].mxu0
        %v4142 = vadd.f32 %v3981, %v4141
        %v4143 = vpop.f32.mrb[0].mxu0
        %v4144 = vadd.f32 %v3983, %v4143
        %4145 = vmatprep.mubr.f32.mxu0 %v3033
        %4146 = vmatmul.mubr.f32.gmra.mrb[0].mxu0 %v3032
        %v4147 = vpop.f32.mrb[0].mxu0
        %v4148 = vadd.f32 %v3987, %v4147
        %v4149 = vpop.f32.mrb[0].mxu0
        %v4150 = vadd.f32 %v3989, %v4149
        %4151 = vmatprep.mubr.f32.mxu0 %v3045
        %4152 = vmatmul.mubr.f32.gmra.mrb[0].mxu0 %v3044
        %v4153 = vpop.f32.mrb[0].mxu0
        %v4154 = vadd.f32 %v3993, %v4153
        %v4155 = vpop.f32.mrb[0].mxu0
        %v4156 = vadd.f32 %v3995, %v4155
        %4157 = vmatprep.mubr.f32.mxu0 %v3057
        %4158 = vmatmul.mubr.f32.gmra.mrb[0].mxu0 %v3056
        %v4159 = vpop.f32.mrb[0].mxu0
        %v4160 = vadd.f32 %v3999, %v4159
        %v4161 = vpop.f32.mrb[0].mxu0
        %v4162 = vadd.f32 %v4001, %v4161
        %4163 = vmatprep.mubr.f32.mxu0 %v3069
        %4164 = vmatmul.mubr.f32.gmra.mrb[0].mxu0 %v3068
        %v4165 = vpop.f32.mrb[0].mxu0
        %v4166 = vadd.f32 %v4005, %v4165
        %v4167 = vpop.f32.mrb[0].mxu0
        %v4168 = vadd.f32 %v4007, %v4167
        %4169 = vmatprep.mubr.f32.mxu0 %v3081
        %4170 = vmatmul.mubr.f32.gmra.mrb[0].mxu0 %v3080
        %v4171 = vpop.f32.mrb[0].mxu0
        %v4172 = vadd.f32 %v4011, %v4171
        %v4173 = vpop.f32.mrb[0].mxu0
        %v4174 = vadd.f32 %v4013, %v4173
        %4175 = vmatprep.mubr.f32.mxu0 %v3093
        %4176 = vmatmul.mubr.f32.gmra.mrb[0].mxu0 %v3092
        %v4177 = vpop.f32.mrb[0].mxu0
        %v4178 = vadd.f32 %v4017, %v4177
        %v4179 = vpop.f32.mrb[0].mxu0
        %v4180 = vadd.f32 %v4019, %v4179
        %4181 = vmatprep.mubr.f32.mxu0 %v3105
        %4182 = vmatmul.mubr.f32.gmra.mrb[0].mxu0 %v3104
        %v4183 = vpop.f32.mrb[0].mxu0
        %v4184 = vadd.f32 %v4023, %v4183
        %v4185 = vpop.f32.mrb[0].mxu0
        %v4186 = vadd.f32 %v4025, %v4185
        %4187 = vdwg.mxu0
        %4188 = vmatprep.subr.mxu0 %v3401
        %4189 = vmatpush1.msra.mxu0 %v3400
        %4190 = vmatprep.subr.mxu0 %v3404
        %4191 = vmatpush1.msra.mxu0 %v3403
        %4192 = vmatprep.subr.mxu0 %v3407
        %4193 = vmatpush1.msra.mxu0 %v3406
        %4194 = vmatprep.subr.mxu0 %v3410
        %4195 = vmatpush1.msra.mxu0 %v3409
        %4196 = vmatprep.subr.mxu0 %v3413
        %4197 = vmatpush1.msra.mxu0 %v3412
        %4198 = vmatprep.subr.mxu0 %v3416
        %4199 = vmatpush1.msra.mxu0 %v3415
        %4200 = vmatprep.subr.mxu0 %v3419
        %4201 = vmatpush1.msra.mxu0 %v3418
        %4202 = vmatprep.subr.mxu0 %v3422
        %4203 = vmatpush1.msra.mxu0 %v3421
        %4204 = vmatprep.subr.mxu0 %v3425
        %4205 = vmatpush1.msra.mxu0 %v3424
        %4206 = vmatprep.subr.mxu0 %v3428
        %4207 = vmatpush1.msra.mxu0 %v3427
        %4208 = vmatprep.subr.mxu0 %v3431
        %4209 = vmatpush1.msra.mxu0 %v3430
        %4210 = vmatprep.subr.mxu0 %v3434
        %4211 = vmatpush1.msra.mxu0 %v3433
        %4212 = vmatprep.subr.mxu0 %v3437
        %4213 = vmatpush1.msra.mxu0 %v3436
        %4214 = vmatprep.subr.mxu0 %v3440
        %4215 = vmatpush1.msra.mxu0 %v3439
        %4216 = vmatprep.subr.mxu0 %v3443
        %4217 = vmatpush1.msra.mxu0 %v3442
        %4218 = vmatprep.subr.mxu0 %v3446
        %4219 = vmatpush1.msra.mxu0 %v3445
        %4220 = vmatprep.subr.mxu0 %v3449
        %4221 = vmatpush1.msra.mxu0 %v3448
        %4222 = vmatprep.subr.mxu0 %v3452
        %4223 = vmatpush1.msra.mxu0 %v3451
        %4224 = vmatprep.subr.mxu0 %v3455
        %4225 = vmatpush1.msra.mxu0 %v3454
        %4226 = vmatprep.subr.mxu0 %v3458
        %4227 = vmatpush1.msra.mxu0 %v3457
        %4228 = vmatprep.subr.mxu0 %v3461
        %4229 = vmatpush1.msra.mxu0 %v3460
        %4230 = vmatprep.subr.mxu0 %v3464
        %4231 = vmatpush1.msra.mxu0 %v3463
        %4232 = vmatprep.subr.mxu0 %v3467
        %4233 = vmatpush1.msra.mxu0 %v3466
        %4234 = vmatprep.subr.mxu0 %v3470
        %4235 = vmatpush1.msra.mxu0 %v3469
        %4236 = vmatprep.subr.mxu0 %v3473
        %4237 = vmatpush1.msra.mxu0 %v3472
        %4238 = vmatprep.subr.mxu0 %v3476
        %4239 = vmatpush1.msra.mxu0 %v3475
        %4240 = vmatprep.subr.mxu0 %v3479
        %4241 = vmatpush1.msra.mxu0 %v3478
        %4242 = vmatprep.subr.mxu0 %v3482
        %4243 = vmatpush1.msra.mxu0 %v3481
        %4244 = vmatprep.subr.mxu0 %v3485
        %4245 = vmatpush1.msra.mxu0 %v3484
        %4246 = vmatprep.subr.mxu0 %v3488
        %4247 = vmatpush1.msra.mxu0 %v3487
        %4248 = vmatprep.subr.mxu0 %v3491
        %4249 = vmatpush1.msra.mxu0 %v3490
        %4250 = vmatprep.subr.mxu0 %v3494
        %4251 = vmatpush1.msra.mxu0 %v3493
        %4252 = vmatprep.mubr.f32.mxu0 %v2927
        %4253 = vmatmul.mubr.f32.gmra.mrb[0].mxu0 %v2926
        %v4254 = vpop.f32.mrb[0].mxu0
        %v4255 = vadd.f32 %v4094, %v4254
        %v4256 = vpop.f32.mrb[0].mxu0
        %v4257 = vadd.f32 %v4096, %v4256
        %4258 = vmatprep.mubr.f32.mxu0 %v2939
        %4259 = vmatmul.mubr.f32.gmra.mrb[0].mxu0 %v2938
        %v4260 = vpop.f32.mrb[0].mxu0
        %v4261 = vadd.f32 %v4100, %v4260
        %v4262 = vpop.f32.mrb[0].mxu0
        %v4263 = vadd.f32 %v4102, %v4262
        %4264 = vmatprep.mubr.f32.mxu0 %v2951
        %4265 = vmatmul.mubr.f32.gmra.mrb[0].mxu0 %v2950
        %v4266 = vpop.f32.mrb[0].mxu0
        %v4267 = vadd.f32 %v4106, %v4266
        %v4268 = vpop.f32.mrb[0].mxu0
        %v4269 = vadd.f32 %v4108, %v4268
        %4270 = vmatprep.mubr.f32.mxu0 %v2963
        %4271 = vmatmul.mubr.f32.gmra.mrb[0].mxu0 %v2962
        %v4272 = vpop.f32.mrb[0].mxu0
        %v4273 = vadd.f32 %v4112, %v4272
        %v4274 = vpop.f32.mrb[0].mxu0
        %v4275 = vadd.f32 %v4114, %v4274
        %4276 = vmatprep.mubr.f32.mxu0 %v2975
        %4277 = vmatmul.mubr.f32.gmra.mrb[0].mxu0 %v2974
        %v4278 = vpop.f32.mrb[0].mxu0
        %v4279 = vadd.f32 %v4118, %v4278
        %v4280 = vpop.f32.mrb[0].mxu0
        %v4281 = vadd.f32 %v4120, %v4280
        %4282 = vmatprep.mubr.f32.mxu0 %v2987
        %4283 = vmatmul.mubr.f32.gmra.mrb[0].mxu0 %v2986
        %v4284 = vpop.f32.mrb[0].mxu0
        %v4285 = vadd.f32 %v4124, %v4284
        %v4286 = vpop.f32.mrb[0].mxu0
        %v4287 = vadd.f32 %v4126, %v4286
        %4288 = vmatprep.mubr.f32.mxu0 %v2999
        %4289 = vmatmul.mubr.f32.gmra.mrb[0].mxu0 %v2998
        %v4290 = vpop.f32.mrb[0].mxu0
        %v4291 = vadd.f32 %v4130, %v4290
        %v4292 = vpop.f32.mrb[0].mxu0
        %v4293 = vadd.f32 %v4132, %v4292
        %4294 = vmatprep.mubr.f32.mxu0 %v3011
        %4295 = vmatmul.mubr.f32.gmra.mrb[0].mxu0 %v3010
        %v4296 = vpop.f32.mrb[0].mxu0
        %v4297 = vadd.f32 %v4136, %v4296
        %v4298 = vpop.f32.mrb[0].mxu0
        %v4299 = vadd.f32 %v4138, %v4298
        %4300 = vmatprep.mubr.f32.mxu0 %v3023
        %4301 = vmatmul.mubr.f32.gmra.mrb[0].mxu0 %v3022
        %v4302 = vpop.f32.mrb[0].mxu0
        %v4303 = vadd.f32 %v4142, %v4302
        %v4304 = vpop.f32.mrb[0].mxu0
        %v4305 = vadd.f32 %v4144, %v4304
        %4306 = vmatprep.mubr.f32.mxu0 %v3035
        %4307 = vmatmul.mubr.f32.gmra.mrb[0].mxu0 %v3034
        %v4308 = vpop.f32.mrb[0].mxu0
        %v4309 = vadd.f32 %v4148, %v4308
        %v4310 = vpop.f32.mrb[0].mxu0
        %v4311 = vadd.f32 %v4150, %v4310
        %4312 = vmatprep.mubr.f32.mxu0 %v3047
        %4313 = vmatmul.mubr.f32.gmra.mrb[0].mxu0 %v3046
        %v4314 = vpop.f32.mrb[0].mxu0
        %v4315 = vadd.f32 %v4154, %v4314
        %v4316 = vpop.f32.mrb[0].mxu0
        %v4317 = vadd.f32 %v4156, %v4316
        %4318 = vmatprep.mubr.f32.mxu0 %v3059
        %4319 = vmatmul.mubr.f32.gmra.mrb[0].mxu0 %v3058
        %v4320 = vpop.f32.mrb[0].mxu0
        %v4321 = vadd.f32 %v4160, %v4320
        %v4322 = vpop.f32.mrb[0].mxu0
        %v4323 = vadd.f32 %v4162, %v4322
        %4324 = vmatprep.mubr.f32.mxu0 %v3071
        %4325 = vmatmul.mubr.f32.gmra.mrb[0].mxu0 %v3070
        %v4326 = vpop.f32.mrb[0].mxu0
        %v4327 = vadd.f32 %v4166, %v4326
        %v4328 = vpop.f32.mrb[0].mxu0
        %v4329 = vadd.f32 %v4168, %v4328
        %4330 = vmatprep.mubr.f32.mxu0 %v3083
        %4331 = vmatmul.mubr.f32.gmra.mrb[0].mxu0 %v3082
        %v4332 = vpop.f32.mrb[0].mxu0
        %v4333 = vadd.f32 %v4172, %v4332
        %v4334 = vpop.f32.mrb[0].mxu0
        %v4335 = vadd.f32 %v4174, %v4334
        %4336 = vmatprep.mubr.f32.mxu0 %v3095
        %4337 = vmatmul.mubr.f32.gmra.mrb[0].mxu0 %v3094
        %v4338 = vpop.f32.mrb[0].mxu0
        %v4339 = vadd.f32 %v4178, %v4338
        %v4340 = vpop.f32.mrb[0].mxu0
        %v4341 = vadd.f32 %v4180, %v4340
        %4342 = vmatprep.mubr.f32.mxu0 %v3107
        %4343 = vmatmul.mubr.f32.gmra.mrb[0].mxu0 %v3106
        %v4344 = vpop.f32.mrb[0].mxu0
        %v4345 = vadd.f32 %v4184, %v4344
        %v4346 = vpop.f32.mrb[0].mxu0
        %v4347 = vadd.f32 %v4186, %v4346
        %4348 = vdwg.mxu0
        %4349 = vmatprep.subr.mxu0 %v3497
        %4350 = vmatpush1.msra.mxu0 %v3496
        %4351 = vmatprep.subr.mxu0 %v3500
        %4352 = vmatpush1.msra.mxu0 %v3499
        %4353 = vmatprep.subr.mxu0 %v3503
        %4354 = vmatpush1.msra.mxu0 %v3502
        %4355 = vmatprep.subr.mxu0 %v3506
        %4356 = vmatpush1.msra.mxu0 %v3505
        %4357 = vmatprep.subr.mxu0 %v3509
        %4358 = vmatpush1.msra.mxu0 %v3508
        %4359 = vmatprep.subr.mxu0 %v3512
        %4360 = vmatpush1.msra.mxu0 %v3511
        %4361 = vmatprep.subr.mxu0 %v3515
        %4362 = vmatpush1.msra.mxu0 %v3514
        %4363 = vmatprep.subr.mxu0 %v3518
        %4364 = vmatpush1.msra.mxu0 %v3517
        %4365 = vmatprep.subr.mxu0 %v3521
        %4366 = vmatpush1.msra.mxu0 %v3520
        %4367 = vmatprep.subr.mxu0 %v3524
        %4368 = vmatpush1.msra.mxu0 %v3523
        %4369 = vmatprep.subr.mxu0 %v3527
        %4370 = vmatpush1.msra.mxu0 %v3526
        %4371 = vmatprep.subr.mxu0 %v3530
        %4372 = vmatpush1.msra.mxu0 %v3529
        %4373 = vmatprep.subr.mxu0 %v3533
        %4374 = vmatpush1.msra.mxu0 %v3532
        %4375 = vmatprep.subr.mxu0 %v3536
        %4376 = vmatpush1.msra.mxu0 %v3535
        %4377 = vmatprep.subr.mxu0 %v3539
        %4378 = vmatpush1.msra.mxu0 %v3538
        %4379 = vmatprep.subr.mxu0 %v3542
        %4380 = vmatpush1.msra.mxu0 %v3541
        %4381 = vmatprep.subr.mxu0 %v3545
        %4382 = vmatpush1.msra.mxu0 %v3544
        %4383 = vmatprep.subr.mxu0 %v3548
        %4384 = vmatpush1.msra.mxu0 %v3547
        %4385 = vmatprep.subr.mxu0 %v3551
        %4386 = vmatpush1.msra.mxu0 %v3550
        %4387 = vmatprep.subr.mxu0 %v3554
        %4388 = vmatpush1.msra.mxu0 %v3553
        %4389 = vmatprep.subr.mxu0 %v3557
        %4390 = vmatpush1.msra.mxu0 %v3556
        %4391 = vmatprep.subr.mxu0 %v3560
        %4392 = vmatpush1.msra.mxu0 %v3559
        %4393 = vmatprep.subr.mxu0 %v3563
        %4394 = vmatpush1.msra.mxu0 %v3562
        %4395 = vmatprep.subr.mxu0 %v3566
        %4396 = vmatpush1.msra.mxu0 %v3565
        %4397 = vmatprep.subr.mxu0 %v3569
        %4398 = vmatpush1.msra.mxu0 %v3568
        %4399 = vmatprep.subr.mxu0 %v3572
        %4400 = vmatpush1.msra.mxu0 %v3571
        %4401 = vmatprep.subr.mxu0 %v3575
        %4402 = vmatpush1.msra.mxu0 %v3574
        %4403 = vmatprep.subr.mxu0 %v3578
        %4404 = vmatpush1.msra.mxu0 %v3577
        %4405 = vmatprep.subr.mxu0 %v3581
        %4406 = vmatpush1.msra.mxu0 %v3580
        %4407 = vmatprep.subr.mxu0 %v3584
        %4408 = vmatpush1.msra.mxu0 %v3583
        %4409 = vmatprep.subr.mxu0 %v3587
        %4410 = vmatpush1.msra.mxu0 %v3586
        %4411 = vmatprep.subr.mxu0 %v3590
        %4412 = vmatpush1.msra.mxu0 %v3589
        %4413 = vmatprep.mubr.f32.mxu0 %v2929
        %4414 = vmatmul.mubr.f32.gmra.mrb[0].mxu0 %v2928
        %v4415 = vpop.f32.mrb[0].mxu0
        %v4416 = vadd.f32 %v4255, %v4415
        %v4417 = vpop.f32.mrb[0].mxu0
        %v4418 = vadd.f32 %v4257, %v4417
        %4419 = vmatprep.mubr.f32.mxu0 %v2941
        %4420 = vmatmul.mubr.f32.gmra.mrb[0].mxu0 %v2940
        %v4421 = vpop.f32.mrb[0].mxu0
        %v4422 = vadd.f32 %v4261, %v4421
        %v4423 = vpop.f32.mrb[0].mxu0
        %v4424 = vadd.f32 %v4263, %v4423
        %4425 = vmatprep.mubr.f32.mxu0 %v2953
        %4426 = vmatmul.mubr.f32.gmra.mrb[0].mxu0 %v2952
        %v4427 = vpop.f32.mrb[0].mxu0
        %v4428 = vadd.f32 %v4267, %v4427
        %v4429 = vpop.f32.mrb[0].mxu0
        %v4430 = vadd.f32 %v4269, %v4429
        %4431 = vmatprep.mubr.f32.mxu0 %v2965
        %4432 = vmatmul.mubr.f32.gmra.mrb[0].mxu0 %v2964
        %v4433 = vpop.f32.mrb[0].mxu0
        %v4434 = vadd.f32 %v4273, %v4433
        %v4435 = vpop.f32.mrb[0].mxu0
        %v4436 = vadd.f32 %v4275, %v4435
        %4437 = vmatprep.mubr.f32.mxu0 %v2977
        %4438 = vmatmul.mubr.f32.gmra.mrb[0].mxu0 %v2976
        %v4439 = vpop.f32.mrb[0].mxu0
        %v4440 = vadd.f32 %v4279, %v4439
        %v4441 = vpop.f32.mrb[0].mxu0
        %v4442 = vadd.f32 %v4281, %v4441
        %4443 = vmatprep.mubr.f32.mxu0 %v2989
        %4444 = vmatmul.mubr.f32.gmra.mrb[0].mxu0 %v2988
        %v4445 = vpop.f32.mrb[0].mxu0
        %v4446 = vadd.f32 %v4285, %v4445
        %v4447 = vpop.f32.mrb[0].mxu0
        %v4448 = vadd.f32 %v4287, %v4447
        %4449 = vmatprep.mubr.f32.mxu0 %v3001
        %4450 = vmatmul.mubr.f32.gmra.mrb[0].mxu0 %v3000
        %v4451 = vpop.f32.mrb[0].mxu0
        %v4452 = vadd.f32 %v4291, %v4451
        %v4453 = vpop.f32.mrb[0].mxu0
        %v4454 = vadd.f32 %v4293, %v4453
        %4455 = vmatprep.mubr.f32.mxu0 %v3013
        %4456 = vmatmul.mubr.f32.gmra.mrb[0].mxu0 %v3012
        %v4457 = vpop.f32.mrb[0].mxu0
        %v4458 = vadd.f32 %v4297, %v4457
        %v4459 = vpop.f32.mrb[0].mxu0
        %v4460 = vadd.f32 %v4299, %v4459
        %4461 = vmatprep.mubr.f32.mxu0 %v3025
        %4462 = vmatmul.mubr.f32.gmra.mrb[0].mxu0 %v3024
        %v4463 = vpop.f32.mrb[0].mxu0
        %v4464 = vadd.f32 %v4303, %v4463
        %v4465 = vpop.f32.mrb[0].mxu0
        %v4466 = vadd.f32 %v4305, %v4465
        %4467 = vmatprep.mubr.f32.mxu0 %v3037
        %4468 = vmatmul.mubr.f32.gmra.mrb[0].mxu0 %v3036
        %v4469 = vpop.f32.mrb[0].mxu0
        %v4470 = vadd.f32 %v4309, %v4469
        %v4471 = vpop.f32.mrb[0].mxu0
        %v4472 = vadd.f32 %v4311, %v4471
        %4473 = vmatprep.mubr.f32.mxu0 %v3049
        %4474 = vmatmul.mubr.f32.gmra.mrb[0].mxu0 %v3048
        %v4475 = vpop.f32.mrb[0].mxu0
        %v4476 = vadd.f32 %v4315, %v4475
        %v4477 = vpop.f32.mrb[0].mxu0
        %v4478 = vadd.f32 %v4317, %v4477
        %4479 = vmatprep.mubr.f32.mxu0 %v3061
        %4480 = vmatmul.mubr.f32.gmra.mrb[0].mxu0 %v3060
        %v4481 = vpop.f32.mrb[0].mxu0
        %v4482 = vadd.f32 %v4321, %v4481
        %v4483 = vpop.f32.mrb[0].mxu0
        %v4484 = vadd.f32 %v4323, %v4483
        %4485 = vmatprep.mubr.f32.mxu0 %v3073
        %4486 = vmatmul.mubr.f32.gmra.mrb[0].mxu0 %v3072
        %v4487 = vpop.f32.mrb[0].mxu0
        %v4488 = vadd.f32 %v4327, %v4487
        %v4489 = vpop.f32.mrb[0].mxu0
        %v4490 = vadd.f32 %v4329, %v4489
        %4491 = vmatprep.mubr.f32.mxu0 %v3085
        %4492 = vmatmul.mubr.f32.gmra.mrb[0].mxu0 %v3084
        %v4493 = vpop.f32.mrb[0].mxu0
        %v4494 = vadd.f32 %v4333, %v4493
        %v4495 = vpop.f32.mrb[0].mxu0
        %v4496 = vadd.f32 %v4335, %v4495
        %4497 = vmatprep.mubr.f32.mxu0 %v3097
        %4498 = vmatmul.mubr.f32.gmra.mrb[0].mxu0 %v3096
        %v4499 = vpop.f32.mrb[0].mxu0
        %v4500 = vadd.f32 %v4339, %v4499
        %v4501 = vpop.f32.mrb[0].mxu0
        %v4502 = vadd.f32 %v4341, %v4501
        %4503 = vmatprep.mubr.f32.mxu0 %v3109
        %4504 = vmatmul.mubr.f32.gmra.mrb[0].mxu0 %v3108
        %v4505 = vpop.f32.mrb[0].mxu0
        %v4506 = vadd.f32 %v4345, %v4505
        %v4507 = vpop.f32.mrb[0].mxu0
        %v4508 = vadd.f32 %v4347, %v4507
        %4509 = vdwg.mxu0
        %4510 = vmatprep.subr.mxu0 %v3593
        %4511 = vmatpush1.msra.mxu0 %v3592
        %4512 = vmatprep.subr.mxu0 %v3596
        %4513 = vmatpush1.msra.mxu0 %v3595
        %4514 = vmatprep.subr.mxu0 %v3599
        %4515 = vmatpush1.msra.mxu0 %v3598
        %4516 = vmatprep.subr.mxu0 %v3602
        %4517 = vmatpush1.msra.mxu0 %v3601
        %4518 = vmatprep.subr.mxu0 %v3605
        %4519 = vmatpush1.msra.mxu0 %v3604
        %4520 = vmatprep.subr.mxu0 %v3608
        %4521 = vmatpush1.msra.mxu0 %v3607
        %4522 = vmatprep.subr.mxu0 %v3611
        %4523 = vmatpush1.msra.mxu0 %v3610
        %4524 = vmatprep.subr.mxu0 %v3614
        %4525 = vmatpush1.msra.mxu0 %v3613
        %4526 = vmatprep.subr.mxu0 %v3617
        %4527 = vmatpush1.msra.mxu0 %v3616
        %4528 = vmatprep.subr.mxu0 %v3620
        %4529 = vmatpush1.msra.mxu0 %v3619
        %4530 = vmatprep.subr.mxu0 %v3623
        %4531 = vmatpush1.msra.mxu0 %v3622
        %4532 = vmatprep.subr.mxu0 %v3626
        %4533 = vmatpush1.msra.mxu0 %v3625
        %4534 = vmatprep.subr.mxu0 %v3629
        %4535 = vmatpush1.msra.mxu0 %v3628
        %4536 = vmatprep.subr.mxu0 %v3632
        %4537 = vmatpush1.msra.mxu0 %v3631
        %4538 = vmatprep.subr.mxu0 %v3635
        %4539 = vmatpush1.msra.mxu0 %v3634
        %4540 = vmatprep.subr.mxu0 %v3638
        %4541 = vmatpush1.msra.mxu0 %v3637
        %4542 = vmatprep.subr.mxu0 %v3641
        %4543 = vmatpush1.msra.mxu0 %v3640
        %4544 = vmatprep.subr.mxu0 %v3644
        %4545 = vmatpush1.msra.mxu0 %v3643
        %4546 = vmatprep.subr.mxu0 %v3647
        %4547 = vmatpush1.msra.mxu0 %v3646
        %4548 = vmatprep.subr.mxu0 %v3650
        %4549 = vmatpush1.msra.mxu0 %v3649
        %4550 = vmatprep.subr.mxu0 %v3653
        %4551 = vmatpush1.msra.mxu0 %v3652
        %4552 = vmatprep.subr.mxu0 %v3656
        %4553 = vmatpush1.msra.mxu0 %v3655
        %4554 = vmatprep.subr.mxu0 %v3659
        %4555 = vmatpush1.msra.mxu0 %v3658
        %4556 = vmatprep.subr.mxu0 %v3662
        %4557 = vmatpush1.msra.mxu0 %v3661
        %4558 = vmatprep.subr.mxu0 %v3665
        %4559 = vmatpush1.msra.mxu0 %v3664
        %4560 = vmatprep.subr.mxu0 %v3668
        %4561 = vmatpush1.msra.mxu0 %v3667
        %4562 = vmatprep.subr.mxu0 %v3671
        %4563 = vmatpush1.msra.mxu0 %v3670
        %4564 = vmatprep.subr.mxu0 %v3674
        %4565 = vmatpush1.msra.mxu0 %v3673
        %4566 = vmatprep.subr.mxu0 %v3677
        %4567 = vmatpush1.msra.mxu0 %v3676
        %4568 = vmatprep.subr.mxu0 %v3680
        %4569 = vmatpush1.msra.mxu0 %v3679
        %4570 = vmatprep.subr.mxu0 %v3683
        %4571 = vmatpush1.msra.mxu0 %v3682
        %4572 = vmatprep.subr.mxu0 %v3686
        %4573 = vmatpush1.msra.mxu0 %v3685
        %4574 = vmatprep.mubr.f32.mxu0 %v2931
        %4575 = vmatmul.mubr.f32.gmra.mrb[0].mxu0 %v2930
        %v4576 = vpop.f32.mrb[0].mxu0
        %v4577 = vadd.f32 %v4416, %v4576
        %v4578 = vpop.f32.mrb[0].mxu0
        %v4579 = vadd.f32 %v4418, %v4578
        %4580 = vmatprep.mubr.f32.mxu0 %v2943
        %4581 = vmatmul.mubr.f32.gmra.mrb[0].mxu0 %v2942
        %v4582 = vpop.f32.mrb[0].mxu0
        %v4583 = vadd.f32 %v4422, %v4582
        %v4584 = vpop.f32.mrb[0].mxu0
        %v4585 = vadd.f32 %v4424, %v4584
        %4586 = vmatprep.mubr.f32.mxu0 %v2955
        %4587 = vmatmul.mubr.f32.gmra.mrb[0].mxu0 %v2954
        %v4588 = vpop.f32.mrb[0].mxu0
        %v4589 = vadd.f32 %v4428, %v4588
        %v4590 = vpop.f32.mrb[0].mxu0
        %v4591 = vadd.f32 %v4430, %v4590
        %4592 = vmatprep.mubr.f32.mxu0 %v2967
        %4593 = vmatmul.mubr.f32.gmra.mrb[0].mxu0 %v2966
        %v4594 = vpop.f32.mrb[0].mxu0
        %v4595 = vadd.f32 %v4434, %v4594
        %v4596 = vpop.f32.mrb[0].mxu0
        %v4597 = vadd.f32 %v4436, %v4596
        %4598 = vmatprep.mubr.f32.mxu0 %v2979
        %4599 = vmatmul.mubr.f32.gmra.mrb[0].mxu0 %v2978
        %v4600 = vpop.f32.mrb[0].mxu0
        %v4601 = vadd.f32 %v4440, %v4600
        %v4602 = vpop.f32.mrb[0].mxu0
        %v4603 = vadd.f32 %v4442, %v4602
        %4604 = vmatprep.mubr.f32.mxu0 %v2991
        %4605 = vmatmul.mubr.f32.gmra.mrb[0].mxu0 %v2990
        %v4606 = vpop.f32.mrb[0].mxu0
        %v4607 = vadd.f32 %v4446, %v4606
        %v4608 = vpop.f32.mrb[0].mxu0
        %v4609 = vadd.f32 %v4448, %v4608
        %4610 = vmatprep.mubr.f32.mxu0 %v3003
        %4611 = vmatmul.mubr.f32.gmra.mrb[0].mxu0 %v3002
        %v4612 = vpop.f32.mrb[0].mxu0
        %v4613 = vadd.f32 %v4452, %v4612
        %v4614 = vpop.f32.mrb[0].mxu0
        %v4615 = vadd.f32 %v4454, %v4614
        %4616 = vmatprep.mubr.f32.mxu0 %v3015
        %4617 = vmatmul.mubr.f32.gmra.mrb[0].mxu0 %v3014
        %v4618 = vpop.f32.mrb[0].mxu0
        %v4619 = vadd.f32 %v4458, %v4618
        %v4620 = vpop.f32.mrb[0].mxu0
        %v4621 = vadd.f32 %v4460, %v4620
        %4622 = vmatprep.mubr.f32.mxu0 %v3027
        %4623 = vmatmul.mubr.f32.gmra.mrb[0].mxu0 %v3026
        %v4624 = vpop.f32.mrb[0].mxu0
        %v4625 = vadd.f32 %v4464, %v4624
        %v4626 = vpop.f32.mrb[0].mxu0
        %v4627 = vadd.f32 %v4466, %v4626
        %4628 = vmatprep.mubr.f32.mxu0 %v3039
        %4629 = vmatmul.mubr.f32.gmra.mrb[0].mxu0 %v3038
        %v4630 = vpop.f32.mrb[0].mxu0
        %v4631 = vadd.f32 %v4470, %v4630
        %v4632 = vpop.f32.mrb[0].mxu0
        %v4633 = vadd.f32 %v4472, %v4632
        %4634 = vmatprep.mubr.f32.mxu0 %v3051
        %4635 = vmatmul.mubr.f32.gmra.mrb[0].mxu0 %v3050
        %v4636 = vpop.f32.mrb[0].mxu0
        %v4637 = vadd.f32 %v4476, %v4636
        %v4638 = vpop.f32.mrb[0].mxu0
        %v4639 = vadd.f32 %v4478, %v4638
        %4640 = vmatprep.mubr.f32.mxu0 %v3063
        %4641 = vmatmul.mubr.f32.gmra.mrb[0].mxu0 %v3062
        %v4642 = vpop.f32.mrb[0].mxu0
        %v4643 = vadd.f32 %v4482, %v4642
        %v4644 = vpop.f32.mrb[0].mxu0
        %v4645 = vadd.f32 %v4484, %v4644
        %4646 = vmatprep.mubr.f32.mxu0 %v3075
        %4647 = vmatmul.mubr.f32.gmra.mrb[0].mxu0 %v3074
        %v4648 = vpop.f32.mrb[0].mxu0
        %v4649 = vadd.f32 %v4488, %v4648
        %v4650 = vpop.f32.mrb[0].mxu0
        %v4651 = vadd.f32 %v4490, %v4650
        %4652 = vmatprep.mubr.f32.mxu0 %v3087
        %4653 = vmatmul.mubr.f32.gmra.mrb[0].mxu0 %v3086
        %v4654 = vpop.f32.mrb[0].mxu0
        %v4655 = vadd.f32 %v4494, %v4654
        %v4656 = vpop.f32.mrb[0].mxu0
        %v4657 = vadd.f32 %v4496, %v4656
        %4658 = vmatprep.mubr.f32.mxu0 %v3099
        %4659 = vmatmul.mubr.f32.gmra.mrb[0].mxu0 %v3098
        %v4660 = vpop.f32.mrb[0].mxu0
        %v4661 = vadd.f32 %v4500, %v4660
        %v4662 = vpop.f32.mrb[0].mxu0
        %v4663 = vadd.f32 %v4502, %v4662
        %4664 = vmatprep.mubr.f32.mxu0 %v3111
        %4665 = vmatmul.mubr.f32.gmra.mrb[0].mxu0 %v3110
        %v4666 = vpop.f32.mrb[0].mxu0
        %v4667 = vadd.f32 %v4506, %v4666
        %v4668 = vpop.f32.mrb[0].mxu0
        %v4669 = vadd.f32 %v4508, %v4668
        %4670 = vdwg.mxu0
        %4671 = vmatprep.subr.mxu0 0.0
        %4672 = vmatpush1.msra.mxu0 %v3114
        %4673 = vmatprep.subr.mxu0 0.0
        %4674 = vmatpush1.msra.mxu0 %v3117
        %4675 = vmatprep.subr.mxu0 0.0
        %4676 = vmatpush1.msra.mxu0 %v3120
        %4677 = vmatprep.subr.mxu0 0.0
        %4678 = vmatpush1.msra.mxu0 %v3123
        %4679 = vmatprep.subr.mxu0 0.0
        %4680 = vmatpush1.msra.mxu0 %v3126
        %4681 = vmatprep.subr.mxu0 0.0
        %4682 = vmatpush1.msra.mxu0 %v3129
        %4683 = vmatprep.subr.mxu0 0.0
        %4684 = vmatpush1.msra.mxu0 %v3132
        %4685 = vmatprep.subr.mxu0 0.0
        %4686 = vmatpush1.msra.mxu0 %v3135
        %4687 = vmatprep.subr.mxu0 0.0
        %4688 = vmatpush1.msra.mxu0 %v3138
        %4689 = vmatprep.subr.mxu0 0.0
        %4690 = vmatpush1.msra.mxu0 %v3141
        %4691 = vmatprep.subr.mxu0 0.0
        %4692 = vmatpush1.msra.mxu0 %v3144
        %4693 = vmatprep.subr.mxu0 0.0
        %4694 = vmatpush1.msra.mxu0 %v3147
        %4695 = vmatprep.subr.mxu0 0.0
        %4696 = vmatpush1.msra.mxu0 %v3150
        %4697 = vmatprep.subr.mxu0 0.0
        %4698 = vmatpush1.msra.mxu0 %v3153
        %4699 = vmatprep.subr.mxu0 0.0
        %4700 = vmatpush1.msra.mxu0 %v3156
        %4701 = vmatprep.subr.mxu0 0.0
        %4702 = vmatpush1.msra.mxu0 %v3159
        %4703 = vmatprep.subr.mxu0 0.0
        %4704 = vmatpush1.msra.mxu0 %v3162
        %4705 = vmatprep.subr.mxu0 0.0
        %4706 = vmatpush1.msra.mxu0 %v3165
        %4707 = vmatprep.subr.mxu0 0.0
        %4708 = vmatpush1.msra.mxu0 %v3168
        %4709 = vmatprep.subr.mxu0 0.0
        %4710 = vmatpush1.msra.mxu0 %v3171
        %4711 = vmatprep.subr.mxu0 0.0
        %4712 = vmatpush1.msra.mxu0 %v3174
        %4713 = vmatprep.subr.mxu0 0.0
        %4714 = vmatpush1.msra.mxu0 %v3177
        %4715 = vmatprep.subr.mxu0 0.0
        %4716 = vmatpush1.msra.mxu0 %v3180
        %4717 = vmatprep.subr.mxu0 0.0
        %4718 = vmatpush1.msra.mxu0 %v3183
        %4719 = vmatprep.subr.mxu0 0.0
        %4720 = vmatpush1.msra.mxu0 %v3186
        %4721 = vmatprep.subr.mxu0 0.0
        %4722 = vmatpush1.msra.mxu0 %v3189
        %4723 = vmatprep.subr.mxu0 0.0
        %4724 = vmatpush1.msra.mxu0 %v3192
        %4725 = vmatprep.subr.mxu0 0.0
        %4726 = vmatpush1.msra.mxu0 %v3195
        %4727 = vmatprep.subr.mxu0 0.0
        %4728 = vmatpush1.msra.mxu0 %v3198
        %4729 = vmatprep.subr.mxu0 0.0
        %4730 = vmatpush1.msra.mxu0 %v3201
        %4731 = vmatprep.subr.mxu0 0.0
        %4732 = vmatpush1.msra.mxu0 %v3204
        %4733 = vmatprep.subr.mxu0 0.0
        %4734 = vmatpush1.msra.mxu0 %v3207
        %4735 = vmatprep.mubr.f32.mxu0 %v2921
        %4736 = vmatmul.mubr.f32.gmra.mrb[0].mxu0 %v2920
        %v4737 = vpop.f32.mrb[0].mxu0
        %v4738 = vadd.f32 %v3701, %v4737
        %v4739 = vpop.f32.mrb[0].mxu0
        %4740 = vmatprep.mubr.f32.mxu0 %v2933
        %4741 = vmatmul.mubr.f32.gmra.mrb[0].mxu0 %v2932
        %v4742 = vpop.f32.mrb[0].mxu0
        %v4743 = vadd.f32 %v3701, %v4742
        %v4744 = vpop.f32.mrb[0].mxu0
        %4745 = vmatprep.mubr.f32.mxu0 %v2945
        %4746 = vmatmul.mubr.f32.gmra.mrb[0].mxu0 %v2944
        %v4747 = vpop.f32.mrb[0].mxu0
        %v4748 = vadd.f32 %v3701, %v4747
        %v4749 = vpop.f32.mrb[0].mxu0
        %4750 = vmatprep.mubr.f32.mxu0 %v2957
        %4751 = vmatmul.mubr.f32.gmra.mrb[0].mxu0 %v2956
        %v4752 = vpop.f32.mrb[0].mxu0
        %v4753 = vadd.f32 %v3701, %v4752
        %v4754 = vpop.f32.mrb[0].mxu0
        %4755 = vmatprep.mubr.f32.mxu0 %v2969
        %4756 = vmatmul.mubr.f32.gmra.mrb[0].mxu0 %v2968
        %v4757 = vpop.f32.mrb[0].mxu0
        %v4758 = vadd.f32 %v3701, %v4757
        %v4759 = vpop.f32.mrb[0].mxu0
        %4760 = vmatprep.mubr.f32.mxu0 %v2981
        %4761 = vmatmul.mubr.f32.gmra.mrb[0].mxu0 %v2980
        %v4762 = vpop.f32.mrb[0].mxu0
        %v4763 = vadd.f32 %v3701, %v4762
        %v4764 = vpop.f32.mrb[0].mxu0
        %4765 = vmatprep.mubr.f32.mxu0 %v2993
        %4766 = vmatmul.mubr.f32.gmra.mrb[0].mxu0 %v2992
        %v4767 = vpop.f32.mrb[0].mxu0
        %v4768 = vadd.f32 %v3701, %v4767
        %v4769 = vpop.f32.mrb[0].mxu0
        %4770 = vmatprep.mubr.f32.mxu0 %v3005
        %4771 = vmatmul.mubr.f32.gmra.mrb[0].mxu0 %v3004
        %v4772 = vpop.f32.mrb[0].mxu0
        %v4773 = vadd.f32 %v3701, %v4772
        %v4774 = vpop.f32.mrb[0].mxu0
        %4775 = vmatprep.mubr.f32.mxu0 %v3017
        %4776 = vmatmul.mubr.f32.gmra.mrb[0].mxu0 %v3016
        %v4777 = vpop.f32.mrb[0].mxu0
        %v4778 = vadd.f32 %v3701, %v4777
        %v4779 = vpop.f32.mrb[0].mxu0
        %4780 = vmatprep.mubr.f32.mxu0 %v3029
        %4781 = vmatmul.mubr.f32.gmra.mrb[0].mxu0 %v3028
        %v4782 = vpop.f32.mrb[0].mxu0
        %v4783 = vadd.f32 %v3701, %v4782
        %v4784 = vpop.f32.mrb[0].mxu0
        %4785 = vmatprep.mubr.f32.mxu0 %v3041
        %4786 = vmatmul.mubr.f32.gmra.mrb[0].mxu0 %v3040
        %v4787 = vpop.f32.mrb[0].mxu0
        %v4788 = vadd.f32 %v3701, %v4787
        %v4789 = vpop.f32.mrb[0].mxu0
        %4790 = vmatprep.mubr.f32.mxu0 %v3053
        %4791 = vmatmul.mubr.f32.gmra.mrb[0].mxu0 %v3052
        %v4792 = vpop.f32.mrb[0].mxu0
        %v4793 = vadd.f32 %v3701, %v4792
        %v4794 = vpop.f32.mrb[0].mxu0
        %4795 = vmatprep.mubr.f32.mxu0 %v3065
        %4796 = vmatmul.mubr.f32.gmra.mrb[0].mxu0 %v3064
        %v4797 = vpop.f32.mrb[0].mxu0
        %v4798 = vadd.f32 %v3701, %v4797
        %v4799 = vpop.f32.mrb[0].mxu0
        %4800 = vmatprep.mubr.f32.mxu0 %v3077
        %4801 = vmatmul.mubr.f32.gmra.mrb[0].mxu0 %v3076
        %v4802 = vpop.f32.mrb[0].mxu0
        %v4803 = vadd.f32 %v3701, %v4802
        %v4804 = vpop.f32.mrb[0].mxu0
        %4805 = vmatprep.mubr.f32.mxu0 %v3089
        %4806 = vmatmul.mubr.f32.gmra.mrb[0].mxu0 %v3088
        %v4807 = vpop.f32.mrb[0].mxu0
        %v4808 = vadd.f32 %v3701, %v4807
        %v4809 = vpop.f32.mrb[0].mxu0
        %4810 = vmatprep.mubr.f32.mxu0 %v3101
        %4811 = vmatmul.mubr.f32.gmra.mrb[0].mxu0 %v3100
        %v4812 = vpop.f32.mrb[0].mxu0
        %v4813 = vadd.f32 %v3701, %v4812
        %v4814 = vpop.f32.mrb[0].mxu0
        %4815 = vdwg.mxu0
        %4816 = vmatprep.subr.mxu0 0.0
        %4817 = vmatpush1.msra.mxu0 %v3210
        %4818 = vmatprep.subr.mxu0 0.0
        %4819 = vmatpush1.msra.mxu0 %v3213
        %4820 = vmatprep.subr.mxu0 0.0
        %4821 = vmatpush1.msra.mxu0 %v3216
        %4822 = vmatprep.subr.mxu0 0.0
        %4823 = vmatpush1.msra.mxu0 %v3219
        %4824 = vmatprep.subr.mxu0 0.0
        %4825 = vmatpush1.msra.mxu0 %v3222
        %4826 = vmatprep.subr.mxu0 0.0
        %4827 = vmatpush1.msra.mxu0 %v3225
        %4828 = vmatprep.subr.mxu0 0.0
        %4829 = vmatpush1.msra.mxu0 %v3228
        %4830 = vmatprep.subr.mxu0 0.0
        %4831 = vmatpush1.msra.mxu0 %v3231
        %4832 = vmatprep.subr.mxu0 0.0
        %4833 = vmatpush1.msra.mxu0 %v3234
        %4834 = vmatprep.subr.mxu0 0.0
        %4835 = vmatpush1.msra.mxu0 %v3237
        %4836 = vmatprep.subr.mxu0 0.0
        %4837 = vmatpush1.msra.mxu0 %v3240
        %4838 = vmatprep.subr.mxu0 0.0
        %4839 = vmatpush1.msra.mxu0 %v3243
        %4840 = vmatprep.subr.mxu0 0.0
        %4841 = vmatpush1.msra.mxu0 %v3246
        %4842 = vmatprep.subr.mxu0 0.0
        %4843 = vmatpush1.msra.mxu0 %v3249
        %4844 = vmatprep.subr.mxu0 0.0
        %4845 = vmatpush1.msra.mxu0 %v3252
        %4846 = vmatprep.subr.mxu0 0.0
        %4847 = vmatpush1.msra.mxu0 %v3255
        %4848 = vmatprep.subr.mxu0 0.0
        %4849 = vmatpush1.msra.mxu0 %v3258
        %4850 = vmatprep.subr.mxu0 0.0
        %4851 = vmatpush1.msra.mxu0 %v3261
        %4852 = vmatprep.subr.mxu0 0.0
        %4853 = vmatpush1.msra.mxu0 %v3264
        %4854 = vmatprep.subr.mxu0 0.0
        %4855 = vmatpush1.msra.mxu0 %v3267
        %4856 = vmatprep.subr.mxu0 0.0
        %4857 = vmatpush1.msra.mxu0 %v3270
        %4858 = vmatprep.subr.mxu0 0.0
        %4859 = vmatpush1.msra.mxu0 %v3273
        %4860 = vmatprep.subr.mxu0 0.0
        %4861 = vmatpush1.msra.mxu0 %v3276
        %4862 = vmatprep.subr.mxu0 0.0
        %4863 = vmatpush1.msra.mxu0 %v3279
        %4864 = vmatprep.subr.mxu0 0.0
        %4865 = vmatpush1.msra.mxu0 %v3282
        %4866 = vmatprep.subr.mxu0 0.0
        %4867 = vmatpush1.msra.mxu0 %v3285
        %4868 = vmatprep.subr.mxu0 0.0
        %4869 = vmatpush1.msra.mxu0 %v3288
        %4870 = vmatprep.subr.mxu0 0.0
        %4871 = vmatpush1.msra.mxu0 %v3291
        %4872 = vmatprep.subr.mxu0 0.0
        %4873 = vmatpush1.msra.mxu0 %v3294
        %4874 = vmatprep.subr.mxu0 0.0
        %4875 = vmatpush1.msra.mxu0 %v3297
        %4876 = vmatprep.subr.mxu0 0.0
        %4877 = vmatpush1.msra.mxu0 %v3300
        %4878 = vmatprep.subr.mxu0 0.0
        %4879 = vmatpush1.msra.mxu0 %v3303
        %4880 = vmatprep.mubr.f32.mxu0 %v2923
        %4881 = vmatmul.mubr.f32.gmra.mrb[0].mxu0 %v2922
        %v4882 = vpop.f32.mrb[0].mxu0
        %v4883 = vadd.f32 %v4738, %v4882
        %v4884 = vpop.f32.mrb[0].mxu0
        %4885 = vmatprep.mubr.f32.mxu0 %v2935
        %4886 = vmatmul.mubr.f32.gmra.mrb[0].mxu0 %v2934
        %v4887 = vpop.f32.mrb[0].mxu0
        %v4888 = vadd.f32 %v4743, %v4887
        %v4889 = vpop.f32.mrb[0].mxu0
        %4890 = vmatprep.mubr.f32.mxu0 %v2947
        %4891 = vmatmul.mubr.f32.gmra.mrb[0].mxu0 %v2946
        %v4892 = vpop.f32.mrb[0].mxu0
        %v4893 = vadd.f32 %v4748, %v4892
        %v4894 = vpop.f32.mrb[0].mxu0
        %4895 = vmatprep.mubr.f32.mxu0 %v2959
        %4896 = vmatmul.mubr.f32.gmra.mrb[0].mxu0 %v2958
        %v4897 = vpop.f32.mrb[0].mxu0
        %v4898 = vadd.f32 %v4753, %v4897
        %v4899 = vpop.f32.mrb[0].mxu0
        %4900 = vmatprep.mubr.f32.mxu0 %v2971
        %4901 = vmatmul.mubr.f32.gmra.mrb[0].mxu0 %v2970
        %v4902 = vpop.f32.mrb[0].mxu0
        %v4903 = vadd.f32 %v4758, %v4902
        %v4904 = vpop.f32.mrb[0].mxu0
        %4905 = vmatprep.mubr.f32.mxu0 %v2983
        %4906 = vmatmul.mubr.f32.gmra.mrb[0].mxu0 %v2982
        %v4907 = vpop.f32.mrb[0].mxu0
        %v4908 = vadd.f32 %v4763, %v4907
        %v4909 = vpop.f32.mrb[0].mxu0
        %4910 = vmatprep.mubr.f32.mxu0 %v2995
        %4911 = vmatmul.mubr.f32.gmra.mrb[0].mxu0 %v2994
        %v4912 = vpop.f32.mrb[0].mxu0
        %v4913 = vadd.f32 %v4768, %v4912
        %v4914 = vpop.f32.mrb[0].mxu0
        %4915 = vmatprep.mubr.f32.mxu0 %v3007
        %4916 = vmatmul.mubr.f32.gmra.mrb[0].mxu0 %v3006
        %v4917 = vpop.f32.mrb[0].mxu0
        %v4918 = vadd.f32 %v4773, %v4917
        %v4919 = vpop.f32.mrb[0].mxu0
        %4920 = vmatprep.mubr.f32.mxu0 %v3019
        %4921 = vmatmul.mubr.f32.gmra.mrb[0].mxu0 %v3018
        %v4922 = vpop.f32.mrb[0].mxu0
        %v4923 = vadd.f32 %v4778, %v4922
        %v4924 = vpop.f32.mrb[0].mxu0
        %4925 = vmatprep.mubr.f32.mxu0 %v3031
        %4926 = vmatmul.mubr.f32.gmra.mrb[0].mxu0 %v3030
        %v4927 = vpop.f32.mrb[0].mxu0
        %v4928 = vadd.f32 %v4783, %v4927
        %v4929 = vpop.f32.mrb[0].mxu0
        %4930 = vmatprep.mubr.f32.mxu0 %v3043
        %4931 = vmatmul.mubr.f32.gmra.mrb[0].mxu0 %v3042
        %v4932 = vpop.f32.mrb[0].mxu0
        %v4933 = vadd.f32 %v4788, %v4932
        %v4934 = vpop.f32.mrb[0].mxu0
        %4935 = vmatprep.mubr.f32.mxu0 %v3055
        %4936 = vmatmul.mubr.f32.gmra.mrb[0].mxu0 %v3054
        %v4937 = vpop.f32.mrb[0].mxu0
        %v4938 = vadd.f32 %v4793, %v4937
        %v4939 = vpop.f32.mrb[0].mxu0
        %4940 = vmatprep.mubr.f32.mxu0 %v3067
        %4941 = vmatmul.mubr.f32.gmra.mrb[0].mxu0 %v3066
        %v4942 = vpop.f32.mrb[0].mxu0
        %v4943 = vadd.f32 %v4798, %v4942
        %v4944 = vpop.f32.mrb[0].mxu0
        %4945 = vmatprep.mubr.f32.mxu0 %v3079
        %4946 = vmatmul.mubr.f32.gmra.mrb[0].mxu0 %v3078
        %v4947 = vpop.f32.mrb[0].mxu0
        %v4948 = vadd.f32 %v4803, %v4947
        %v4949 = vpop.f32.mrb[0].mxu0
        %4950 = vmatprep.mubr.f32.mxu0 %v3091
        %4951 = vmatmul.mubr.f32.gmra.mrb[0].mxu0 %v3090
        %v4952 = vpop.f32.mrb[0].mxu0
        %v4953 = vadd.f32 %v4808, %v4952
        %v4954 = vpop.f32.mrb[0].mxu0
        %4955 = vmatprep.mubr.f32.mxu0 %v3103
        %4956 = vmatmul.mubr.f32.gmra.mrb[0].mxu0 %v3102
        %v4957 = vpop.f32.mrb[0].mxu0
        %v4958 = vadd.f32 %v4813, %v4957
        %v4959 = vpop.f32.mrb[0].mxu0
        %4960 = vdwg.mxu0
        %4961 = vmatprep.subr.mxu0 0.0
        %4962 = vmatpush1.msra.mxu0 %v3306
        %4963 = vmatprep.subr.mxu0 0.0
        %4964 = vmatpush1.msra.mxu0 %v3309
        %4965 = vmatprep.subr.mxu0 0.0
        %4966 = vmatpush1.msra.mxu0 %v3312
        %4967 = vmatprep.subr.mxu0 0.0
        %4968 = vmatpush1.msra.mxu0 %v3315
        %4969 = vmatprep.subr.mxu0 0.0
        %4970 = vmatpush1.msra.mxu0 %v3318
        %4971 = vmatprep.subr.mxu0 0.0
        %4972 = vmatpush1.msra.mxu0 %v3321
        %4973 = vmatprep.subr.mxu0 0.0
        %4974 = vmatpush1.msra.mxu0 %v3324
        %4975 = vmatprep.subr.mxu0 0.0
        %4976 = vmatpush1.msra.mxu0 %v3327
        %4977 = vmatprep.subr.mxu0 0.0
        %4978 = vmatpush1.msra.mxu0 %v3330
        %4979 = vmatprep.subr.mxu0 0.0
        %4980 = vmatpush1.msra.mxu0 %v3333
        %4981 = vmatprep.subr.mxu0 0.0
        %4982 = vmatpush1.msra.mxu0 %v3336
        %4983 = vmatprep.subr.mxu0 0.0
        %4984 = vmatpush1.msra.mxu0 %v3339
        %4985 = vmatprep.subr.mxu0 0.0
        %4986 = vmatpush1.msra.mxu0 %v3342
        %4987 = vmatprep.subr.mxu0 0.0
        %4988 = vmatpush1.msra.mxu0 %v3345
        %4989 = vmatprep.subr.mxu0 0.0
        %4990 = vmatpush1.msra.mxu0 %v3348
        %4991 = vmatprep.subr.mxu0 0.0
        %4992 = vmatpush1.msra.mxu0 %v3351
        %4993 = vmatprep.subr.mxu0 0.0
        %4994 = vmatpush1.msra.mxu0 %v3354
        %4995 = vmatprep.subr.mxu0 0.0
        %4996 = vmatpush1.msra.mxu0 %v3357
        %4997 = vmatprep.subr.mxu0 0.0
        %4998 = vmatpush1.msra.mxu0 %v3360
        %4999 = vmatprep.subr.mxu0 0.0
        %5000 = vmatpush1.msra.mxu0 %v3363
        %5001 = vmatprep.subr.mxu0 0.0
        %5002 = vmatpush1.msra.mxu0 %v3366
        %5003 = vmatprep.subr.mxu0 0.0
        %5004 = vmatpush1.msra.mxu0 %v3369
        %5005 = vmatprep.subr.mxu0 0.0
        %5006 = vmatpush1.msra.mxu0 %v3372
        %5007 = vmatprep.subr.mxu0 0.0
        %5008 = vmatpush1.msra.mxu0 %v3375
        %5009 = vmatprep.subr.mxu0 0.0
        %5010 = vmatpush1.msra.mxu0 %v3378
        %5011 = vmatprep.subr.mxu0 0.0
        %5012 = vmatpush1.msra.mxu0 %v3381
        %5013 = vmatprep.subr.mxu0 0.0
        %5014 = vmatpush1.msra.mxu0 %v3384
        %5015 = vmatprep.subr.mxu0 0.0
        %5016 = vmatpush1.msra.mxu0 %v3387
        %5017 = vmatprep.subr.mxu0 0.0
        %5018 = vmatpush1.msra.mxu0 %v3390
        %5019 = vmatprep.subr.mxu0 0.0
        %5020 = vmatpush1.msra.mxu0 %v3393
        %5021 = vmatprep.subr.mxu0 0.0
        %5022 = vmatpush1.msra.mxu0 %v3396
        %5023 = vmatprep.subr.mxu0 0.0
        %5024 = vmatpush1.msra.mxu0 %v3399
        %5025 = vmatprep.mubr.f32.mxu0 %v2925
        %5026 = vmatmul.mubr.f32.gmra.mrb[0].mxu0 %v2924
        %v5027 = vpop.f32.mrb[0].mxu0
        %v5028 = vadd.f32 %v4883, %v5027
        %v5029 = vpop.f32.mrb[0].mxu0
        %5030 = vmatprep.mubr.f32.mxu0 %v2937
        %5031 = vmatmul.mubr.f32.gmra.mrb[0].mxu0 %v2936
        %v5032 = vpop.f32.mrb[0].mxu0
        %v5033 = vadd.f32 %v4888, %v5032
        %v5034 = vpop.f32.mrb[0].mxu0
        %5035 = vmatprep.mubr.f32.mxu0 %v2949
        %5036 = vmatmul.mubr.f32.gmra.mrb[0].mxu0 %v2948
        %v5037 = vpop.f32.mrb[0].mxu0
        %v5038 = vadd.f32 %v4893, %v5037
        %v5039 = vpop.f32.mrb[0].mxu0
        %5040 = vmatprep.mubr.f32.mxu0 %v2961
        %5041 = vmatmul.mubr.f32.gmra.mrb[0].mxu0 %v2960
        %v5042 = vpop.f32.mrb[0].mxu0
        %v5043 = vadd.f32 %v4898, %v5042
        %v5044 = vpop.f32.mrb[0].mxu0
        %5045 = vmatprep.mubr.f32.mxu0 %v2973
        %5046 = vmatmul.mubr.f32.gmra.mrb[0].mxu0 %v2972
        %v5047 = vpop.f32.mrb[0].mxu0
        %v5048 = vadd.f32 %v4903, %v5047
        %v5049 = vpop.f32.mrb[0].mxu0
        %5050 = vmatprep.mubr.f32.mxu0 %v2985
        %5051 = vmatmul.mubr.f32.gmra.mrb[0].mxu0 %v2984
        %v5052 = vpop.f32.mrb[0].mxu0
        %v5053 = vadd.f32 %v4908, %v5052
        %v5054 = vpop.f32.mrb[0].mxu0
        %5055 = vmatprep.mubr.f32.mxu0 %v2997
        %5056 = vmatmul.mubr.f32.gmra.mrb[0].mxu0 %v2996
        %v5057 = vpop.f32.mrb[0].mxu0
        %v5058 = vadd.f32 %v4913, %v5057
        %v5059 = vpop.f32.mrb[0].mxu0
        %5060 = vmatprep.mubr.f32.mxu0 %v3009
        %5061 = vmatmul.mubr.f32.gmra.mrb[0].mxu0 %v3008
        %v5062 = vpop.f32.mrb[0].mxu0
        %v5063 = vadd.f32 %v4918, %v5062
        %v5064 = vpop.f32.mrb[0].mxu0
        %5065 = vmatprep.mubr.f32.mxu0 %v3021
        %5066 = vmatmul.mubr.f32.gmra.mrb[0].mxu0 %v3020
        %v5067 = vpop.f32.mrb[0].mxu0
        %v5068 = vadd.f32 %v4923, %v5067
        %v5069 = vpop.f32.mrb[0].mxu0
        %5070 = vmatprep.mubr.f32.mxu0 %v3033
        %5071 = vmatmul.mubr.f32.gmra.mrb[0].mxu0 %v3032
        %v5072 = vpop.f32.mrb[0].mxu0
        %v5073 = vadd.f32 %v4928, %v5072
        %v5074 = vpop.f32.mrb[0].mxu0
        %5075 = vmatprep.mubr.f32.mxu0 %v3045
        %5076 = vmatmul.mubr.f32.gmra.mrb[0].mxu0 %v3044
        %v5077 = vpop.f32.mrb[0].mxu0
        %v5078 = vadd.f32 %v4933, %v5077
        %v5079 = vpop.f32.mrb[0].mxu0
        %5080 = vmatprep.mubr.f32.mxu0 %v3057
        %5081 = vmatmul.mubr.f32.gmra.mrb[0].mxu0 %v3056
        %v5082 = vpop.f32.mrb[0].mxu0
        %v5083 = vadd.f32 %v4938, %v5082
        %v5084 = vpop.f32.mrb[0].mxu0
        %5085 = vmatprep.mubr.f32.mxu0 %v3069
        %5086 = vmatmul.mubr.f32.gmra.mrb[0].mxu0 %v3068
        %v5087 = vpop.f32.mrb[0].mxu0
        %v5088 = vadd.f32 %v4943, %v5087
        %v5089 = vpop.f32.mrb[0].mxu0
        %5090 = vmatprep.mubr.f32.mxu0 %v3081
        %5091 = vmatmul.mubr.f32.gmra.mrb[0].mxu0 %v3080
        %v5092 = vpop.f32.mrb[0].mxu0
        %v5093 = vadd.f32 %v4948, %v5092
        %v5094 = vpop.f32.mrb[0].mxu0
        %5095 = vmatprep.mubr.f32.mxu0 %v3093
        %5096 = vmatmul.mubr.f32.gmra.mrb[0].mxu0 %v3092
        %v5097 = vpop.f32.mrb[0].mxu0
        %v5098 = vadd.f32 %v4953, %v5097
        %v5099 = vpop.f32.mrb[0].mxu0
        %5100 = vmatprep.mubr.f32.mxu0 %v3105
        %5101 = vmatmul.mubr.f32.gmra.mrb[0].mxu0 %v3104
        %v5102 = vpop.f32.mrb[0].mxu0
        %v5103 = vadd.f32 %v4958, %v5102
        %v5104 = vpop.f32.mrb[0].mxu0
        %5105 = vdwg.mxu0
        %5106 = vmatprep.subr.mxu0 0.0
        %5107 = vmatpush1.msra.mxu0 %v3402
        %5108 = vmatprep.subr.mxu0 0.0
        %5109 = vmatpush1.msra.mxu0 %v3405
        %5110 = vmatprep.subr.mxu0 0.0
        %5111 = vmatpush1.msra.mxu0 %v3408
        %5112 = vmatprep.subr.mxu0 0.0
        %5113 = vmatpush1.msra.mxu0 %v3411
        %5114 = vmatprep.subr.mxu0 0.0
        %5115 = vmatpush1.msra.mxu0 %v3414
        %5116 = vmatprep.subr.mxu0 0.0
        %5117 = vmatpush1.msra.mxu0 %v3417
        %5118 = vmatprep.subr.mxu0 0.0
        %5119 = vmatpush1.msra.mxu0 %v3420
        %5120 = vmatprep.subr.mxu0 0.0
        %5121 = vmatpush1.msra.mxu0 %v3423
        %5122 = vmatprep.subr.mxu0 0.0
        %5123 = vmatpush1.msra.mxu0 %v3426
        %5124 = vmatprep.subr.mxu0 0.0
        %5125 = vmatpush1.msra.mxu0 %v3429
        %5126 = vmatprep.subr.mxu0 0.0
        %5127 = vmatpush1.msra.mxu0 %v3432
        %5128 = vmatprep.subr.mxu0 0.0
        %5129 = vmatpush1.msra.mxu0 %v3435
        %5130 = vmatprep.subr.mxu0 0.0
        %5131 = vmatpush1.msra.mxu0 %v3438
        %5132 = vmatprep.subr.mxu0 0.0
        %5133 = vmatpush1.msra.mxu0 %v3441
        %5134 = vmatprep.subr.mxu0 0.0
        %5135 = vmatpush1.msra.mxu0 %v3444
        %5136 = vmatprep.subr.mxu0 0.0
        %5137 = vmatpush1.msra.mxu0 %v3447
        %5138 = vmatprep.subr.mxu0 0.0
        %5139 = vmatpush1.msra.mxu0 %v3450
        %5140 = vmatprep.subr.mxu0 0.0
        %5141 = vmatpush1.msra.mxu0 %v3453
        %5142 = vmatprep.subr.mxu0 0.0
        %5143 = vmatpush1.msra.mxu0 %v3456
        %5144 = vmatprep.subr.mxu0 0.0
        %5145 = vmatpush1.msra.mxu0 %v3459
        %5146 = vmatprep.subr.mxu0 0.0
        %5147 = vmatpush1.msra.mxu0 %v3462
        %5148 = vmatprep.subr.mxu0 0.0
        %5149 = vmatpush1.msra.mxu0 %v3465
        %5150 = vmatprep.subr.mxu0 0.0
        %5151 = vmatpush1.msra.mxu0 %v3468
        %5152 = vmatprep.subr.mxu0 0.0
        %5153 = vmatpush1.msra.mxu0 %v3471
        %5154 = vmatprep.subr.mxu0 0.0
        %5155 = vmatpush1.msra.mxu0 %v3474
        %5156 = vmatprep.subr.mxu0 0.0
        %5157 = vmatpush1.msra.mxu0 %v3477
        %5158 = vmatprep.subr.mxu0 0.0
        %5159 = vmatpush1.msra.mxu0 %v3480
        %5160 = vmatprep.subr.mxu0 0.0
        %5161 = vmatpush1.msra.mxu0 %v3483
        %5162 = vmatprep.subr.mxu0 0.0
        %5163 = vmatpush1.msra.mxu0 %v3486
        %5164 = vmatprep.subr.mxu0 0.0
        %5165 = vmatpush1.msra.mxu0 %v3489
        %5166 = vmatprep.subr.mxu0 0.0
        %5167 = vmatpush1.msra.mxu0 %v3492
        %5168 = vmatprep.subr.mxu0 0.0
        %5169 = vmatpush1.msra.mxu0 %v3495
        %5170 = vmatprep.mubr.f32.mxu0 %v2927
        %5171 = vmatmul.mubr.f32.gmra.mrb[0].mxu0 %v2926
        %v5172 = vpop.f32.mrb[0].mxu0
        %v5173 = vadd.f32 %v5028, %v5172
        %v5174 = vpop.f32.mrb[0].mxu0
        %5175 = vmatprep.mubr.f32.mxu0 %v2939
        %5176 = vmatmul.mubr.f32.gmra.mrb[0].mxu0 %v2938
        %v5177 = vpop.f32.mrb[0].mxu0
        %v5178 = vadd.f32 %v5033, %v5177
        %v5179 = vpop.f32.mrb[0].mxu0
        %5180 = vmatprep.mubr.f32.mxu0 %v2951
        %5181 = vmatmul.mubr.f32.gmra.mrb[0].mxu0 %v2950
        %v5182 = vpop.f32.mrb[0].mxu0
        %v5183 = vadd.f32 %v5038, %v5182
        %v5184 = vpop.f32.mrb[0].mxu0
        %5185 = vmatprep.mubr.f32.mxu0 %v2963
        %5186 = vmatmul.mubr.f32.gmra.mrb[0].mxu0 %v2962
        %v5187 = vpop.f32.mrb[0].mxu0
        %v5188 = vadd.f32 %v5043, %v5187
        %v5189 = vpop.f32.mrb[0].mxu0
        %5190 = vmatprep.mubr.f32.mxu0 %v2975
        %5191 = vmatmul.mubr.f32.gmra.mrb[0].mxu0 %v2974
        %v5192 = vpop.f32.mrb[0].mxu0
        %v5193 = vadd.f32 %v5048, %v5192
        %v5194 = vpop.f32.mrb[0].mxu0
        %5195 = vmatprep.mubr.f32.mxu0 %v2987
        %5196 = vmatmul.mubr.f32.gmra.mrb[0].mxu0 %v2986
        %v5197 = vpop.f32.mrb[0].mxu0
        %v5198 = vadd.f32 %v5053, %v5197
        %v5199 = vpop.f32.mrb[0].mxu0
        %5200 = vmatprep.mubr.f32.mxu0 %v2999
        %5201 = vmatmul.mubr.f32.gmra.mrb[0].mxu0 %v2998
        %v5202 = vpop.f32.mrb[0].mxu0
        %v5203 = vadd.f32 %v5058, %v5202
        %v5204 = vpop.f32.mrb[0].mxu0
        %5205 = vmatprep.mubr.f32.mxu0 %v3011
        %5206 = vmatmul.mubr.f32.gmra.mrb[0].mxu0 %v3010
        %v5207 = vpop.f32.mrb[0].mxu0
        %v5208 = vadd.f32 %v5063, %v5207
        %v5209 = vpop.f32.mrb[0].mxu0
        %5210 = vmatprep.mubr.f32.mxu0 %v3023
        %5211 = vmatmul.mubr.f32.gmra.mrb[0].mxu0 %v3022
        %v5212 = vpop.f32.mrb[0].mxu0
        %v5213 = vadd.f32 %v5068, %v5212
        %v5214 = vpop.f32.mrb[0].mxu0
        %5215 = vmatprep.mubr.f32.mxu0 %v3035
        %5216 = vmatmul.mubr.f32.gmra.mrb[0].mxu0 %v3034
        %v5217 = vpop.f32.mrb[0].mxu0
        %v5218 = vadd.f32 %v5073, %v5217
        %v5219 = vpop.f32.mrb[0].mxu0
        %5220 = vmatprep.mubr.f32.mxu0 %v3047
        %5221 = vmatmul.mubr.f32.gmra.mrb[0].mxu0 %v3046
        %v5222 = vpop.f32.mrb[0].mxu0
        %v5223 = vadd.f32 %v5078, %v5222
        %v5224 = vpop.f32.mrb[0].mxu0
        %5225 = vmatprep.mubr.f32.mxu0 %v3059
        %5226 = vmatmul.mubr.f32.gmra.mrb[0].mxu0 %v3058
        %v5227 = vpop.f32.mrb[0].mxu0
        %v5228 = vadd.f32 %v5083, %v5227
        %v5229 = vpop.f32.mrb[0].mxu0
        %5230 = vmatprep.mubr.f32.mxu0 %v3071
        %5231 = vmatmul.mubr.f32.gmra.mrb[0].mxu0 %v3070
        %v5232 = vpop.f32.mrb[0].mxu0
        %v5233 = vadd.f32 %v5088, %v5232
        %v5234 = vpop.f32.mrb[0].mxu0
        %5235 = vmatprep.mubr.f32.mxu0 %v3083
        %5236 = vmatmul.mubr.f32.gmra.mrb[0].mxu0 %v3082
        %v5237 = vpop.f32.mrb[0].mxu0
        %v5238 = vadd.f32 %v5093, %v5237
        %v5239 = vpop.f32.mrb[0].mxu0
        %5240 = vmatprep.mubr.f32.mxu0 %v3095
        %5241 = vmatmul.mubr.f32.gmra.mrb[0].mxu0 %v3094
        %v5242 = vpop.f32.mrb[0].mxu0
        %v5243 = vadd.f32 %v5098, %v5242
        %v5244 = vpop.f32.mrb[0].mxu0
        %5245 = vmatprep.mubr.f32.mxu0 %v3107
        %5246 = vmatmul.mubr.f32.gmra.mrb[0].mxu0 %v3106
        %v5247 = vpop.f32.mrb[0].mxu0
        %v5248 = vadd.f32 %v5103, %v5247
        %v5249 = vpop.f32.mrb[0].mxu0
        %5250 = vdwg.mxu0
        %5251 = vmatprep.subr.mxu0 0.0
        %5252 = vmatpush1.msra.mxu0 %v3498
        %5253 = vmatprep.subr.mxu0 0.0
        %5254 = vmatpush1.msra.mxu0 %v3501
        %5255 = vmatprep.subr.mxu0 0.0
        %5256 = vmatpush1.msra.mxu0 %v3504
        %5257 = vmatprep.subr.mxu0 0.0
        %5258 = vmatpush1.msra.mxu0 %v3507
        %5259 = vmatprep.subr.mxu0 0.0
        %5260 = vmatpush1.msra.mxu0 %v3510
        %5261 = vmatprep.subr.mxu0 0.0
        %5262 = vmatpush1.msra.mxu0 %v3513
        %5263 = vmatprep.subr.mxu0 0.0
        %5264 = vmatpush1.msra.mxu0 %v3516
        %5265 = vmatprep.subr.mxu0 0.0
        %5266 = vmatpush1.msra.mxu0 %v3519
        %5267 = vmatprep.subr.mxu0 0.0
        %5268 = vmatpush1.msra.mxu0 %v3522
        %5269 = vmatprep.subr.mxu0 0.0
        %5270 = vmatpush1.msra.mxu0 %v3525
        %5271 = vmatprep.subr.mxu0 0.0
        %5272 = vmatpush1.msra.mxu0 %v3528
        %5273 = vmatprep.subr.mxu0 0.0
        %5274 = vmatpush1.msra.mxu0 %v3531
        %5275 = vmatprep.subr.mxu0 0.0
        %5276 = vmatpush1.msra.mxu0 %v3534
        %5277 = vmatprep.subr.mxu0 0.0
        %5278 = vmatpush1.msra.mxu0 %v3537
        %5279 = vmatprep.subr.mxu0 0.0
        %5280 = vmatpush1.msra.mxu0 %v3540
        %5281 = vmatprep.subr.mxu0 0.0
        %5282 = vmatpush1.msra.mxu0 %v3543
        %5283 = vmatprep.subr.mxu0 0.0
        %5284 = vmatpush1.msra.mxu0 %v3546
        %5285 = vmatprep.subr.mxu0 0.0
        %5286 = vmatpush1.msra.mxu0 %v3549
        %5287 = vmatprep.subr.mxu0 0.0
        %5288 = vmatpush1.msra.mxu0 %v3552
        %5289 = vmatprep.subr.mxu0 0.0
        %5290 = vmatpush1.msra.mxu0 %v3555
        %5291 = vmatprep.subr.mxu0 0.0
        %5292 = vmatpush1.msra.mxu0 %v3558
        %5293 = vmatprep.subr.mxu0 0.0
        %5294 = vmatpush1.msra.mxu0 %v3561
        %5295 = vmatprep.subr.mxu0 0.0
        %5296 = vmatpush1.msra.mxu0 %v3564
        %5297 = vmatprep.subr.mxu0 0.0
        %5298 = vmatpush1.msra.mxu0 %v3567
        %5299 = vmatprep.subr.mxu0 0.0
        %5300 = vmatpush1.msra.mxu0 %v3570
        %5301 = vmatprep.subr.mxu0 0.0
        %5302 = vmatpush1.msra.mxu0 %v3573
        %5303 = vmatprep.subr.mxu0 0.0
        %5304 = vmatpush1.msra.mxu0 %v3576
        %5305 = vmatprep.subr.mxu0 0.0
        %5306 = vmatpush1.msra.mxu0 %v3579
        %5307 = vmatprep.subr.mxu0 0.0
        %5308 = vmatpush1.msra.mxu0 %v3582
        %5309 = vmatprep.subr.mxu0 0.0
        %5310 = vmatpush1.msra.mxu0 %v3585
        %5311 = vmatprep.subr.mxu0 0.0
        %5312 = vmatpush1.msra.mxu0 %v3588
        %5313 = vmatprep.subr.mxu0 0.0
        %5314 = vmatpush1.msra.mxu0 %v3591
        %5315 = vmatprep.mubr.f32.mxu0 %v2929
        %5316 = vmatmul.mubr.f32.gmra.mrb[0].mxu0 %v2928
        %v5317 = vpop.f32.mrb[0].mxu0
        %v5318 = vadd.f32 %v5173, %v5317
        %v5319 = vpop.f32.mrb[0].mxu0
        %5320 = vmatprep.mubr.f32.mxu0 %v2941
        %5321 = vmatmul.mubr.f32.gmra.mrb[0].mxu0 %v2940
        %v5322 = vpop.f32.mrb[0].mxu0
        %v5323 = vadd.f32 %v5178, %v5322
        %v5324 = vpop.f32.mrb[0].mxu0
        %5325 = vmatprep.mubr.f32.mxu0 %v2953
        %5326 = vmatmul.mubr.f32.gmra.mrb[0].mxu0 %v2952
        %v5327 = vpop.f32.mrb[0].mxu0
        %v5328 = vadd.f32 %v5183, %v5327
        %v5329 = vpop.f32.mrb[0].mxu0
        %5330 = vmatprep.mubr.f32.mxu0 %v2965
        %5331 = vmatmul.mubr.f32.gmra.mrb[0].mxu0 %v2964
        %v5332 = vpop.f32.mrb[0].mxu0
        %v5333 = vadd.f32 %v5188, %v5332
        %v5334 = vpop.f32.mrb[0].mxu0
        %5335 = vmatprep.mubr.f32.mxu0 %v2977
        %5336 = vmatmul.mubr.f32.gmra.mrb[0].mxu0 %v2976
        %v5337 = vpop.f32.mrb[0].mxu0
        %v5338 = vadd.f32 %v5193, %v5337
        %v5339 = vpop.f32.mrb[0].mxu0
        %5340 = vmatprep.mubr.f32.mxu0 %v2989
        %5341 = vmatmul.mubr.f32.gmra.mrb[0].mxu0 %v2988
        %v5342 = vpop.f32.mrb[0].mxu0
        %v5343 = vadd.f32 %v5198, %v5342
        %v5344 = vpop.f32.mrb[0].mxu0
        %5345 = vmatprep.mubr.f32.mxu0 %v3001
        %5346 = vmatmul.mubr.f32.gmra.mrb[0].mxu0 %v3000
        %v5347 = vpop.f32.mrb[0].mxu0
        %v5348 = vadd.f32 %v5203, %v5347
        %v5349 = vpop.f32.mrb[0].mxu0
        %5350 = vmatprep.mubr.f32.mxu0 %v3013
        %5351 = vmatmul.mubr.f32.gmra.mrb[0].mxu0 %v3012
        %v5352 = vpop.f32.mrb[0].mxu0
        %v5353 = vadd.f32 %v5208, %v5352
        %v5354 = vpop.f32.mrb[0].mxu0
        %5355 = vmatprep.mubr.f32.mxu0 %v3025
        %5356 = vmatmul.mubr.f32.gmra.mrb[0].mxu0 %v3024
        %v5357 = vpop.f32.mrb[0].mxu0
        %v5358 = vadd.f32 %v5213, %v5357
        %v5359 = vpop.f32.mrb[0].mxu0
        %5360 = vmatprep.mubr.f32.mxu0 %v3037
        %5361 = vmatmul.mubr.f32.gmra.mrb[0].mxu0 %v3036
        %v5362 = vpop.f32.mrb[0].mxu0
        %v5363 = vadd.f32 %v5218, %v5362
        %v5364 = vpop.f32.mrb[0].mxu0
        %5365 = vmatprep.mubr.f32.mxu0 %v3049
        %5366 = vmatmul.mubr.f32.gmra.mrb[0].mxu0 %v3048
        %v5367 = vpop.f32.mrb[0].mxu0
        %v5368 = vadd.f32 %v5223, %v5367
        %v5369 = vpop.f32.mrb[0].mxu0
        %5370 = vmatprep.mubr.f32.mxu0 %v3061
        %5371 = vmatmul.mubr.f32.gmra.mrb[0].mxu0 %v3060
        %v5372 = vpop.f32.mrb[0].mxu0
        %v5373 = vadd.f32 %v5228, %v5372
        %v5374 = vpop.f32.mrb[0].mxu0
        %5375 = vmatprep.mubr.f32.mxu0 %v3073
        %5376 = vmatmul.mubr.f32.gmra.mrb[0].mxu0 %v3072
        %v5377 = vpop.f32.mrb[0].mxu0
        %v5378 = vadd.f32 %v5233, %v5377
        %v5379 = vpop.f32.mrb[0].mxu0
        %5380 = vmatprep.mubr.f32.mxu0 %v3085
        %5381 = vmatmul.mubr.f32.gmra.mrb[0].mxu0 %v3084
        %v5382 = vpop.f32.mrb[0].mxu0
        %v5383 = vadd.f32 %v5238, %v5382
        %v5384 = vpop.f32.mrb[0].mxu0
        %5385 = vmatprep.mubr.f32.mxu0 %v3097
        %5386 = vmatmul.mubr.f32.gmra.mrb[0].mxu0 %v3096
        %v5387 = vpop.f32.mrb[0].mxu0
        %v5388 = vadd.f32 %v5243, %v5387
        %v5389 = vpop.f32.mrb[0].mxu0
        %5390 = vmatprep.mubr.f32.mxu0 %v3109
        %5391 = vmatmul.mubr.f32.gmra.mrb[0].mxu0 %v3108
        %v5392 = vpop.f32.mrb[0].mxu0
        %v5393 = vadd.f32 %v5248, %v5392
        %v5394 = vpop.f32.mrb[0].mxu0
        %5395 = vdwg.mxu0
        %5396 = vmatprep.subr.mxu0 0.0
        %5397 = vmatpush1.msra.mxu0 %v3594
        %5398 = vmatprep.subr.mxu0 0.0
        %5399 = vmatpush1.msra.mxu0 %v3597
        %5400 = vmatprep.subr.mxu0 0.0
        %5401 = vmatpush1.msra.mxu0 %v3600
        %5402 = vmatprep.subr.mxu0 0.0
        %5403 = vmatpush1.msra.mxu0 %v3603
        %5404 = vmatprep.subr.mxu0 0.0
        %5405 = vmatpush1.msra.mxu0 %v3606
        %5406 = vmatprep.subr.mxu0 0.0
        %5407 = vmatpush1.msra.mxu0 %v3609
        %5408 = vmatprep.subr.mxu0 0.0
        %5409 = vmatpush1.msra.mxu0 %v3612
        %5410 = vmatprep.subr.mxu0 0.0
        %5411 = vmatpush1.msra.mxu0 %v3615
        %5412 = vmatprep.subr.mxu0 0.0
        %5413 = vmatpush1.msra.mxu0 %v3618
        %5414 = vmatprep.subr.mxu0 0.0
        %5415 = vmatpush1.msra.mxu0 %v3621
        %5416 = vmatprep.subr.mxu0 0.0
        %5417 = vmatpush1.msra.mxu0 %v3624
        %5418 = vmatprep.subr.mxu0 0.0
        %5419 = vmatpush1.msra.mxu0 %v3627
        %5420 = vmatprep.subr.mxu0 0.0
        %5421 = vmatpush1.msra.mxu0 %v3630
        %5422 = vmatprep.subr.mxu0 0.0
        %5423 = vmatpush1.msra.mxu0 %v3633
        %5424 = vmatprep.subr.mxu0 0.0
        %5425 = vmatpush1.msra.mxu0 %v3636
        %5426 = vmatprep.subr.mxu0 0.0
        %5427 = vmatpush1.msra.mxu0 %v3639
        %5428 = vmatprep.subr.mxu0 0.0
        %5429 = vmatpush1.msra.mxu0 %v3642
        %5430 = vmatprep.subr.mxu0 0.0
        %5431 = vmatpush1.msra.mxu0 %v3645
        %5432 = vmatprep.subr.mxu0 0.0
        %5433 = vmatpush1.msra.mxu0 %v3648
        %5434 = vmatprep.subr.mxu0 0.0
        %5435 = vmatpush1.msra.mxu0 %v3651
        %5436 = vmatprep.subr.mxu0 0.0
        %5437 = vmatpush1.msra.mxu0 %v3654
        %5438 = vmatprep.subr.mxu0 0.0
        %5439 = vmatpush1.msra.mxu0 %v3657
        %5440 = vmatprep.subr.mxu0 0.0
        %5441 = vmatpush1.msra.mxu0 %v3660
        %5442 = vmatprep.subr.mxu0 0.0
        %5443 = vmatpush1.msra.mxu0 %v3663
        %5444 = vmatprep.subr.mxu0 0.0
        %5445 = vmatpush1.msra.mxu0 %v3666
        %5446 = vmatprep.subr.mxu0 0.0
        %5447 = vmatpush1.msra.mxu0 %v3669
        %5448 = vmatprep.subr.mxu0 0.0
        %5449 = vmatpush1.msra.mxu0 %v3672
        %5450 = vmatprep.subr.mxu0 0.0
        %5451 = vmatpush1.msra.mxu0 %v3675
        %5452 = vmatprep.subr.mxu0 0.0
        %5453 = vmatpush1.msra.mxu0 %v3678
        %5454 = vmatprep.subr.mxu0 0.0
        %5455 = vmatpush1.msra.mxu0 %v3681
        %5456 = vmatprep.subr.mxu0 0.0
        %5457 = vmatpush1.msra.mxu0 %v3684
        %5458 = vmatprep.subr.mxu0 0.0
        %5459 = vmatpush1.msra.mxu0 %v3687
        %5460 = vmatprep.mubr.f32.mxu0 %v2931
        %5461 = vmatmul.mubr.f32.gmra.mrb[0].mxu0 %v2930
        %v5462 = vpop.f32.mrb[0].mxu0
        %v5463 = vadd.f32 %v5318, %v5462
        %v5464 = vpop.f32.mrb[0].mxu0
        %5465 = vmatprep.mubr.f32.mxu0 %v2943
        %5466 = vmatmul.mubr.f32.gmra.mrb[0].mxu0 %v2942
        %v5467 = vpop.f32.mrb[0].mxu0
        %v5468 = vadd.f32 %v5323, %v5467
        %v5469 = vpop.f32.mrb[0].mxu0
        %5470 = vmatprep.mubr.f32.mxu0 %v2955
        %5471 = vmatmul.mubr.f32.gmra.mrb[0].mxu0 %v2954
        %v5472 = vpop.f32.mrb[0].mxu0
        %v5473 = vadd.f32 %v5328, %v5472
        %v5474 = vpop.f32.mrb[0].mxu0
        %5475 = vmatprep.mubr.f32.mxu0 %v2967
        %5476 = vmatmul.mubr.f32.gmra.mrb[0].mxu0 %v2966
        %v5477 = vpop.f32.mrb[0].mxu0
        %v5478 = vadd.f32 %v5333, %v5477
        %v5479 = vpop.f32.mrb[0].mxu0
        %5480 = vmatprep.mubr.f32.mxu0 %v2979
        %5481 = vmatmul.mubr.f32.gmra.mrb[0].mxu0 %v2978
        %v5482 = vpop.f32.mrb[0].mxu0
        %v5483 = vadd.f32 %v5338, %v5482
        %v5484 = vpop.f32.mrb[0].mxu0
        %5485 = vmatprep.mubr.f32.mxu0 %v2991
        %5486 = vmatmul.mubr.f32.gmra.mrb[0].mxu0 %v2990
        %v5487 = vpop.f32.mrb[0].mxu0
        %v5488 = vadd.f32 %v5343, %v5487
        %v5489 = vpop.f32.mrb[0].mxu0
        %5490 = vmatprep.mubr.f32.mxu0 %v3003
        %5491 = vmatmul.mubr.f32.gmra.mrb[0].mxu0 %v3002
        %v5492 = vpop.f32.mrb[0].mxu0
        %v5493 = vadd.f32 %v5348, %v5492
        %v5494 = vpop.f32.mrb[0].mxu0
        %5495 = vmatprep.mubr.f32.mxu0 %v3015
        %5496 = vmatmul.mubr.f32.gmra.mrb[0].mxu0 %v3014
        %v5497 = vpop.f32.mrb[0].mxu0
        %v5498 = vadd.f32 %v5353, %v5497
        %v5499 = vpop.f32.mrb[0].mxu0
        %5500 = vmatprep.mubr.f32.mxu0 %v3027
        %5501 = vmatmul.mubr.f32.gmra.mrb[0].mxu0 %v3026
        %v5502 = vpop.f32.mrb[0].mxu0
        %v5503 = vadd.f32 %v5358, %v5502
        %v5504 = vpop.f32.mrb[0].mxu0
        %5505 = vmatprep.mubr.f32.mxu0 %v3039
        %5506 = vmatmul.mubr.f32.gmra.mrb[0].mxu0 %v3038
        %v5507 = vpop.f32.mrb[0].mxu0
        %v5508 = vadd.f32 %v5363, %v5507
        %v5509 = vpop.f32.mrb[0].mxu0
        %5510 = vmatprep.mubr.f32.mxu0 %v3051
        %5511 = vmatmul.mubr.f32.gmra.mrb[0].mxu0 %v3050
        %v5512 = vpop.f32.mrb[0].mxu0
        %v5513 = vadd.f32 %v5368, %v5512
        %v5514 = vpop.f32.mrb[0].mxu0
        %5515 = vmatprep.mubr.f32.mxu0 %v3063
        %5516 = vmatmul.mubr.f32.gmra.mrb[0].mxu0 %v3062
        %v5517 = vpop.f32.mrb[0].mxu0
        %v5518 = vadd.f32 %v5373, %v5517
        %v5519 = vpop.f32.mrb[0].mxu0
        %5520 = vmatprep.mubr.f32.mxu0 %v3075
        %5521 = vmatmul.mubr.f32.gmra.mrb[0].mxu0 %v3074
        %v5522 = vpop.f32.mrb[0].mxu0
        %v5523 = vadd.f32 %v5378, %v5522
        %v5524 = vpop.f32.mrb[0].mxu0
        %5525 = vmatprep.mubr.f32.mxu0 %v3087
        %5526 = vmatmul.mubr.f32.gmra.mrb[0].mxu0 %v3086
        %v5527 = vpop.f32.mrb[0].mxu0
        %v5528 = vadd.f32 %v5383, %v5527
        %v5529 = vpop.f32.mrb[0].mxu0
        %5530 = vmatprep.mubr.f32.mxu0 %v3099
        %5531 = vmatmul.mubr.f32.gmra.mrb[0].mxu0 %v3098
        %v5532 = vpop.f32.mrb[0].mxu0
        %v5533 = vadd.f32 %v5388, %v5532
        %v5534 = vpop.f32.mrb[0].mxu0
        %5535 = vmatprep.mubr.f32.mxu0 %v3111
        %5536 = vmatmul.mubr.f32.gmra.mrb[0].mxu0 %v3110
        %v5537 = vpop.f32.mrb[0].mxu0
        %v5538 = vadd.f32 %v5393, %v5537
        %v5539 = vpop.f32.mrb[0].mxu0
        %5540 = vdwg.mxu0
        %5541 = vst [vmem:[%s297] sm:$0xff] %v4577
        %5542 = vst [vmem:[%s297 + $0x8] sm:$0xff] %v4579
        %5543 = vst [vmem:[%s297 + $0x10] sm:$0xff] %v5463
        %5544 = vst [vmem:[%s297 + $0x18] sm:$0xff] %v4583
        %5545 = vst [vmem:[%s297 + $0x20] sm:$0xff] %v4585
        %5546 = vst [vmem:[%s297 + $0x28] sm:$0xff] %v5468
        %5547 = vst [vmem:[%s297 + $0x30] sm:$0xff] %v4589
        %5548 = vst [vmem:[%s297 + $0x38] sm:$0xff] %v4591
        %5549 = vst [vmem:[%s297 + $0x40] sm:$0xff] %v5473
        %5550 = vst [vmem:[%s297 + $0x48] sm:$0xff] %v4595
        %5551 = vst [vmem:[%s297 + $0x50] sm:$0xff] %v4597
        %5552 = vst [vmem:[%s297 + $0x58] sm:$0xff] %v5478
        %5553 = vst [vmem:[%s297 + $0x60] sm:$0xff] %v4601
        %5554 = vst [vmem:[%s297 + $0x68] sm:$0xff] %v4603
        %5555 = vst [vmem:[%s297 + $0x70] sm:$0xff] %v5483
        %5556 = vst [vmem:[%s297 + $0x78] sm:$0xff] %v4607
        %5557 = vst [vmem:[%s297 + $0x80] sm:$0xff] %v4609
        %5558 = vst [vmem:[%s297 + $0x88] sm:$0xff] %v5488
        %5559 = vst [vmem:[%s297 + $0x90] sm:$0xff] %v4613
        %5560 = vst [vmem:[%s297 + $0x98] sm:$0xff] %v4615
        %5561 = vst [vmem:[%s297 + $0xa0] sm:$0xff] %v5493
        %5562 = vst [vmem:[%s297 + $0xa8] sm:$0xff] %v4619
        %5563 = vst [vmem:[%s297 + $0xb0] sm:$0xff] %v4621
        %5564 = vst [vmem:[%s297 + $0xb8] sm:$0xff] %v5498
        %5565 = vst [vmem:[%s297 + $0xc0] sm:$0xff] %v4625
        %5566 = vst [vmem:[%s297 + $0xc8] sm:$0xff] %v4627
        %5567 = vst [vmem:[%s297 + $0xd0] sm:$0xff] %v5503
        %5568 = vst [vmem:[%s297 + $0xd8] sm:$0xff] %v4631
        %5569 = vst [vmem:[%s297 + $0xe0] sm:$0xff] %v4633
        %5570 = vst [vmem:[%s297 + $0xe8] sm:$0xff] %v5508
        %5571 = vst [vmem:[%s297 + $0xf0] sm:$0xff] %v4637
        %5572 = vst [vmem:[%s297 + $0xf8] sm:$0xff] %v4639
        %5573 = vst [vmem:[%s297 + $0x100] sm:$0xff] %v5513
        %5574 = vst [vmem:[%s297 + $0x108] sm:$0xff] %v4643
        %5575 = vst [vmem:[%s297 + $0x110] sm:$0xff] %v4645
        %5576 = vst [vmem:[%s297 + $0x118] sm:$0xff] %v5518
        %5577 = vst [vmem:[%s297 + $0x120] sm:$0xff] %v4649
        %5578 = vst [vmem:[%s297 + $0x128] sm:$0xff] %v4651
        %5579 = vst [vmem:[%s297 + $0x130] sm:$0xff] %v5523
        %5580 = vst [vmem:[%s297 + $0x138] sm:$0xff] %v4655
        %5581 = vst [vmem:[%s297 + $0x140] sm:$0xff] %v4657
        %5582 = vst [vmem:[%s297 + $0x148] sm:$0xff] %v5528
        %5583 = vst [vmem:[%s297 + $0x150] sm:$0xff] %v4661
        %5584 = vst [vmem:[%s297 + $0x158] sm:$0xff] %v4663
        %5585 = vst [vmem:[%s297 + $0x160] sm:$0xff] %v5533
        %5586 = vst [vmem:[%s297 + $0x168] sm:$0xff] %v4667
        %5587 = vst [vmem:[%s297 + $0x170] sm:$0xff] %v4669
        %5588 = vst [vmem:[%s297 + $0x178] sm:$0xff] %v5538
        %s5589 = sand.u32 %s142, 1
        %s5590 = scalar_lea.sflag [#allocation4], %s5589
        %s5591 = sand.u32 %s142, 1
        %s5592 = smul.addr %s5591, 384
        %s5593 = scalar_lea.vmem [#allocation11], %s5592
        // Predicated region
        $region61: #{tpu_custom_call.1} parent=39 // pred_check
          %p5594 = pneg %p152
        $region62: #{tpu_custom_call.1} parent=39 // pred_check_branch
          %5596 = sbr.rel (%p5594) target = $region64
        $region63: #{tpu_custom_call.1} parent=39 // pred_region
          %s5597 = smul.u32 16, %s24
          %s5599 = ssub.s32 6144, 6144
          %5600 = vsyncadd %s5590, %s5599
          %s5601 = smul.addr %s5597, 3
          %s5602 = smul.addr %s5601, 128
          %s5603 = scalar_lea.hbm %s5, %s5602
          %s5604 = sshll.u32 %s5593, 4
          %s5605 = int_to_ptr.vmem [resolvable:$true] %s5604
          %5610 = dma.vmem_to_hbm [thread:$0]  %s5605, 6144, %s5603, %s5590, 384, 384, 24
        $region64: #{tpu_custom_call.1} parent=39 // pred_fallthru
          _
      $region40: #{tpu_custom_call.1} parent=5 // pred_fallthru
        _
      %p5611 = scmp.le.s32.totalorder 2, %s19
      // Predicated region
      $region65: #{tpu_custom_call.1} parent=5 // pred_check
        %p5612 = pneg %p5611
      $region66: #{tpu_custom_call.1} parent=5 // pred_check_branch
        %5614 = sbr.rel (%p5612) target = $region68
      $region67: #{tpu_custom_call.1} parent=5 // pred_region
        %s5615 = ssub.s32 %s19, 2
        // Predicated region
        $region69: #{tpu_custom_call.1} parent=67 // pred_check
          %p5616 = pneg %p158
        $region70: #{tpu_custom_call.1} parent=67 // pred_check_branch
          %5618 = sbr.rel (%p5616) target = $region72
        $region71: #{tpu_custom_call.1} parent=67 // pred_region
          %s5619 = sand.u32 %s143, 1
          %s5620 = scalar_lea.sflag [#allocation4], %s5619
          %s5621 = sand.u32 %s143, 1
          %s5622 = smul.addr %s5621, 384
          %s5623 = scalar_lea.vmem [#allocation11], %s5622
          %5624 = dma.done %s5620, 6144
        $region72: #{tpu_custom_call.1} parent=67 // pred_fallthru
          _
      $region68: #{tpu_custom_call.1} parent=5 // pred_fallthru
        _
    $region6: #{tpu_custom_call.1} parent=1 // loop_footer
      %s23 = sadd.s32 1, %s19
    $region7: #{tpu_custom_call.1} parent=1 // loop_footer_branch
      %18 = sbr.rel target = $region3
    $region8: #{tpu_custom_call.1} parent=1 // loop_exit
      _
    %5625 = vsyncpa [#allocation3], 1
    %s5626 = scalar_lea.sflag [#allocation3], 1
    %5627 = vsyncpa %s5626, 1
    %5628 = vsyncpa [#allocation6], 1
    %5629 = vsyncpa [#allocation9], 1
    %5630 = vsyncpa [#allocation4], 1
    %s5631 = scalar_lea.sflag [#allocation4], 1
    %5632 = vsyncpa %s5631, 1

</llo_original>
